<compile_context>
chip_gen: v5e
topology: v5e:2x2
jax: 0.10.0
libtpu: 0.0.40
codegen_flags: <defaults>
</compile_context>

<pallas_src>
import functools
import math

import jax
import jax.numpy as jnp
from jax.experimental import pallas as pl
from jax.experimental.pallas import tpu as pltpu


# =============================================================================
# Fused decoder-stack kernel (one pallas_call for all layers + final norm)
# =============================================================================

def _decoder_stack_kernel(*refs, nhead, eps, has_qpos, has_pos, has_mask):
    it = iter(refs)
    tgt_ref = next(it)
    mem_ref = next(it)
    qpos_ref = next(it) if has_qpos else None
    pos_ref = next(it) if has_pos else None
    kbias_ref = next(it) if has_mask else None
    (wqk_s_ref, bqk_s_ref, wv_s_ref, bv_s_ref, wo_s_ref, bo_s_ref,
     wq_c_ref, bq_c_ref, wk_all_ref, bk_all_ref, wv_all_ref, bv_all_ref,
     wo_c_ref, bo_c_ref,
     w1_ref, b1_ref, w2_ref, b2_ref,
     ln1_ref, ln2_ref, ln3_ref, lnf_ref,
     out_ref) = list(it)

    num_layers = wqk_s_ref.shape[0]
    B, Q, E = tgt_ref.shape
    Dh = E // nhead
    f32 = jnp.float32
    bf16 = jnp.bfloat16

    def linear(x16, w, b):
        # x16: bf16 [B, S, Din]; w: bf16 [Din, Dout]; b: f32 [1, Dout].
        y = jnp.einsum('bsi,io->bso', x16, w, preferred_element_type=f32)
        return y + b

    def attention(q16, k16, v16, wo, bo, bias):
        # q16: bf16 [B, Sq, E] (Q already scaled by 1/sqrt(Dh) via weights),
        # k16/v16: bf16 [B, Sk, E], wo: bf16 [E, E], bo: f32 [1, E],
        # bias: f32 [B, 1, Sk] or None.  Returns f32 [B, Sq, E] incl. out-proj.
        Sq = q16.shape[1]
        acc = jnp.zeros((B, Sq, E), f32)
        for h in range(nhead):                       # static unroll, nhead=4
            lo = h * Dh
            s = jnp.einsum('bqd,bkd->bqk',
                           q16[:, :, lo:lo + Dh], k16[:, :, lo:lo + Dh],
                           preferred_element_type=f32)
            if bias is not None:
                s = s + bias                          # [B, 1, Sk] broadcast
            m = jnp.max(s, axis=-1, keepdims=True)
            p = jnp.exp(s - m)
            denom = jnp.sum(p, axis=-1, keepdims=True)
            o = jnp.einsum('bqk,bkd->bqd', p.astype(bf16), v16[:, :, lo:lo + Dh],
                           preferred_element_type=f32)
            o = o * pl.reciprocal(denom, approx=True)
            # out-projection folded in per head:
            # concat_h(o_h) @ Wo == sum_h o_h @ Wo[h*Dh:(h+1)*Dh, :]
            acc = acc + jnp.einsum('bqd,de->bqe', o.astype(bf16),
                                   wo[lo:lo + Dh, :],
                                   preferred_element_type=f32)
        return acc + bo

    def add_layer_norm(x, res, ln):
        # ln: f32 [2, E] (row 0 = gamma, row 1 = beta). Residual fused in.
        y = x if res is None else x + res
        mu = jnp.mean(y, axis=-1, keepdims=True)
        var = jnp.mean(jnp.square(y - mu), axis=-1, keepdims=True)
        return (y - mu) * jax.lax.rsqrt(var + eps) * ln[0:1, :] + ln[1:2, :]

    # ---- loads + loop-invariant precompute (hoisted out of the layer loop) --
    x = tgt_ref[...]                                  # f32 [B, Q, E]
    qpos = qpos_ref[...] if has_qpos else None        # f32 [B, Q, E]
    memv = mem_ref[...]                               # f32 [B, L, E]
    mem16 = memv.astype(bf16)
    mem_pos16 = (memv + pos_ref[...]).astype(bf16) if has_pos else mem16
    kbias = kbias_ref[...] if has_mask else None      # f32 [B, 1, L]

    # Cross-attention K / V for ALL layers at once (wide matmuls, [E, NL*E]).
    kc_all16 = (jnp.einsum('bsi,io->bso', mem_pos16, wk_all_ref[...],
                           preferred_element_type=f32)
                + bk_all_ref[...]).astype(bf16)       # [B, L, NL*E]
    vc_all16 = (jnp.einsum('bsi,io->bso', mem16, wv_all_ref[...],
                           preferred_element_type=f32)
                + bv_all_ref[...]).astype(bf16)       # [B, L, NL*E]

    # ---- decoder layers (static unroll) ------------------------------------
    for l in range(num_layers):
        # self-attention: q = k = x + query_pos, v = x, no mask
        xq16 = ((x + qpos) if has_qpos else x).astype(bf16)
        qk16 = linear(xq16, wqk_s_ref[l], bqk_s_ref[l]).astype(bf16)  # [B,Q,2E]
        q16 = qk16[:, :, 0:E]                         # Q half is pre-scaled
        k16 = qk16[:, :, E:2 * E]
        v16 = linear(x.astype(bf16), wv_s_ref[l], bv_s_ref[l]).astype(bf16)
        sa = attention(q16, k16, v16, wo_s_ref[l], bo_s_ref[l], bias=None)
        x = add_layer_norm(x, sa, ln1_ref[l])

        # cross-attention: q = x + query_pos, k = mem + pos, v = mem
        xq16 = ((x + qpos) if has_qpos else x).astype(bf16)
        qc16 = linear(xq16, wq_c_ref[l], bq_c_ref[l]).astype(bf16)
        kc16 = kc_all16[:, :, l * E:(l + 1) * E]
        vc16 = vc_all16[:, :, l * E:(l + 1) * E]
        ca = attention(qc16, kc16, vc16, wo_c_ref[l], bo_c_ref[l], bias=kbias)
        x = add_layer_norm(x, ca, ln2_ref[l])

        # feed-forward (relu); dropout = identity (inference)
        h = jnp.maximum(linear(x.astype(bf16), w1_ref[l], b1_ref[l]), 0.0)
        f = linear(h.astype(bf16), w2_ref[l], b2_ref[l])
        x = add_layer_norm(x, f, ln3_ref[l])

    # final decoder norm (self.norm)
    out_ref[...] = add_layer_norm(x, None, lnf_ref[...]).astype(out_ref.dtype)


# =============================================================================
# Wrapper (PyTorch seq-first layout in/out; single fused pallas_call)
# =============================================================================

def transformer_decoder_forward(params, tgt, memory,
                                memory_key_padding_mask=None,
                                pos=None, query_pos=None, *,
                                nhead, eps=1e-5):
    """TransformerDecoder.forward (return_intermediate=False).

    tgt:    [Q, B, E]   memory: [L, B, E]   (seq-first, PyTorch layout)
    memory_key_padding_mask: [B, L] bool (True = padded key) or None
    pos: [L, B, E] or None        query_pos: [Q, B, E] or None
    params: output of prepare_params() (bf16 weights, pre-scaled Q, wide K/V)
    returns: [1, Q, B, E]   (== output.unsqueeze(0))
    """
    Q, B, E = tgt.shape
    L = memory.shape[0]
    has_qpos = query_pos is not None
    has_pos = pos is not None
    has_mask = memory_key_padding_mask is not None

    args = [jnp.transpose(tgt, (1, 0, 2)).astype(jnp.float32),      # [B, Q, E]
            jnp.transpose(memory, (1, 0, 2)).astype(jnp.float32)]   # [B, L, E]
    if has_qpos:
        args.append(jnp.transpose(query_pos, (1, 0, 2)).astype(jnp.float32))
    if has_pos:
        args.append(jnp.transpose(pos, (1, 0, 2)).astype(jnp.float32))
    if has_mask:
        args.append(jnp.where(memory_key_padding_mask, jnp.float32(-1e30),
                              jnp.float32(0.0)).reshape(B, 1, L))

    args += [params[k] for k in (
        'wqk_s', 'bqk_s', 'wv_s', 'bv_s', 'wo_s', 'bo_s',
        'wq_c', 'bq_c', 'wk_all', 'bk_all', 'wv_all', 'bv_all',
        'wo_c', 'bo_c', 'w1', 'b1', 'w2', 'b2',
        'ln1', 'ln2', 'ln3', 'lnf')]

    kernel = functools.partial(_decoder_stack_kernel, nhead=nhead, eps=eps,
                               has_qpos=has_qpos, has_pos=has_pos,
                               has_mask=has_mask)
    out = pl.pallas_call(
        kernel,
        out_shape=jax.ShapeDtypeStruct((B, Q, E), jnp.float32),
        in_specs=[pl.BlockSpec(memory_space=pltpu.MemorySpace.VMEM)
                  for _ in args],
        out_specs=pl.BlockSpec(memory_space=pltpu.MemorySpace.VMEM),
    )(*args)

    # back to PyTorch seq-first layout, then unsqueeze(0)
    return jnp.transpose(out, (1, 0, 2))[None]


# =============================================================================
# Parameter preparation: fold softmax scale into Q, bf16 weights, wide K/V
# =============================================================================

def prepare_params(p, *, nhead):
    """Convert natural f32 stacked params into kernel-ready params.

    NOTE: when loading real PyTorch checkpoints, MultiheadAttention's packed
    in_proj [3E, E] must first be transposed/split into wqk_s / wv_s / wq_c /
    wk_c / wv_c before calling this (the synthetic init below already is).
    """
    NL, E, _ = p['wv_s'].shape
    Dh = E // nhead
    scale = 1.0 / math.sqrt(Dh)
    bf16 = jnp.bfloat16

    wqk_s = p['wqk_s'].at[:, :, :E].multiply(scale)      # scale Q half
    bqk_s = p['bqk_s'].at[:, :, :E].multiply(scale)
    wq_c = p['wq_c'] * scale
    bq_c = p['bq_c'] * scale

    # Stack per-layer cross-attn K/V weights wide: [E, NL*E] / [1, NL*E]
    wk_all = jnp.concatenate([p['wk_c'][l] for l in range(NL)], axis=1)
    bk_all = jnp.concatenate([p['bk_c'][l] for l in range(NL)], axis=1)
    wv_all = jnp.concatenate([p['wv_c'][l] for l in range(NL)], axis=1)
    bv_all = jnp.concatenate([p['bv_c'][l] for l in range(NL)], axis=1)

    return {
        'wqk_s': wqk_s.astype(bf16), 'bqk_s': bqk_s,
        'wv_s': p['wv_s'].astype(bf16), 'bv_s': p['bv_s'],
        'wo_s': p['wo_s'].astype(bf16), 'bo_s': p['bo_s'],
        'wq_c': wq_c.astype(bf16), 'bq_c': bq_c,
        'wk_all': wk_all.astype(bf16), 'bk_all': bk_all,
        'wv_all': wv_all.astype(bf16), 'bv_all': bv_all,
        'wo_c': p['wo_c'].astype(bf16), 'bo_c': p['bo_c'],
        'w1': p['w1'].astype(bf16), 'b1': p['b1'],
        'w2': p['w2'].astype(bf16), 'b2': p['b2'],
        'ln1': p['ln1'], 'ln2': p['ln2'], 'ln3': p['ln3'], 'lnf': p['lnf'],
    }


# =============================================================================
# Deterministic synthetic parameters (xavier-uniform weights, zero biases)
# =============================================================================

def _xavier(key, shape):
    fan_in, fan_out = shape[-2], shape[-1]
    limit = math.sqrt(6.0 / (fan_in + fan_out))
    return jax.random.uniform(key, shape, jnp.float32, -limit, limit)


def init_params(key, num_layers, d_model, dff):
    E, F, NL = d_model, dff, num_layers
    ks = jax.random.split(key, 9)

    def stack(k, shape):
        return _xavier(k, (NL,) + shape)

    def zeros(*s):
        return jnp.zeros(s, jnp.float32)

    def ln_stack():          # separate arrays per LN (no aliasing)
        return jnp.stack([jnp.ones((NL, E), jnp.float32),
                          jnp.zeros((NL, E), jnp.float32)], axis=1)  # [NL,2,E]

    return {
        'wqk_s': stack(ks[0], (E, 2 * E)), 'bqk_s': zeros(NL, 1, 2 * E),
        'wv_s': stack(ks[1], (E, E)),      'bv_s': zeros(NL, 1, E),
        'wo_s': stack(ks[2], (E, E)),      'bo_s': zeros(NL, 1, E),
        'wq_c': stack(ks[3], (E, E)),      'bq_c': zeros(NL, 1, E),
        'wk_c': stack(ks[4], (E, E)),      'bk_c': zeros(NL, 1, E),
        'wv_c': stack(ks[5], (E, E)),      'bv_c': zeros(NL, 1, E),
        'wo_c': stack(ks[6], (E, E)),      'bo_c': zeros(NL, 1, E),
        'w1': stack(ks[7], (E, F)),        'b1': zeros(NL, 1, F),
        'w2': stack(ks[8], (F, E)),        'b2': zeros(NL, 1, E),
        'ln1': ln_stack(), 'ln2': ln_stack(), 'ln3': ln_stack(),
        'lnf': jnp.stack([jnp.ones((E,), jnp.float32),
                          jnp.zeros((E,), jnp.float32)], axis=0),  # [2, E]
    }


# =============================================================================
# Demo
# =============================================================================

if __name__ == "__main__":
    D_MODEL, NHEAD, DFF = 32, 4, 64
    NUM_LAYERS = 2
    B, NQ = 2, 8
    H, W = 8, 8
    L = H * W

    key = jax.random.PRNGKey(0)
    kp, k1, k2, k3, k4 = jax.random.split(key, 5)
    params = prepare_params(init_params(kp, NUM_LAYERS, D_MODEL, DFF),
                            nhead=NHEAD)

    tgt = 0.1 * jax.random.normal(k4, (NQ, B, D_MODEL), jnp.float32)
    memory = jax.random.normal(k1, (L, B, D_MODEL), jnp.float32)
    pos = jax.random.normal(k2, (L, B, D_MODEL), jnp.float32)
    query_pos = jax.random.normal(k3, (NQ, B, D_MODEL), jnp.float32)
    # padding mask: True = padded key position (last 8 keys of batch 1)
    mask = jnp.zeros((B, L), bool).at[1, L - 8:].set(True)

    fwd = jax.jit(functools.partial(transformer_decoder_forward, nhead=NHEAD))
    hs = fwd(params, tgt, memory, mask, pos, query_pos)
    jax.block_until_ready(hs)

    assert hs.shape == (1, NQ, B, D_MODEL)
    assert bool(jnp.all(jnp.isfinite(hs)))
    print("KERNEL_OK")
</pallas_src>

<mosaic_0001>
module attributes {stable_mosaic.version = 11 : i64} {
  func.func @_decoder_stack_kernel(%arg0: memref<2x8x32xf32, #tpu.memory_space<vmem>>, %arg1: memref<2x64x32xf32, #tpu.memory_space<vmem>>, %arg2: memref<2x8x32xf32, #tpu.memory_space<vmem>>, %arg3: memref<2x64x32xf32, #tpu.memory_space<vmem>>, %arg4: memref<2x1x64xf32, #tpu.memory_space<vmem>>, %arg5: memref<2x32x64xbf16, #tpu.memory_space<vmem>>, %arg6: memref<2x1x64xf32, #tpu.memory_space<vmem>>, %arg7: memref<2x32x32xbf16, #tpu.memory_space<vmem>>, %arg8: memref<2x1x32xf32, #tpu.memory_space<vmem>>, %arg9: memref<2x32x32xbf16, #tpu.memory_space<vmem>>, %arg10: memref<2x1x32xf32, #tpu.memory_space<vmem>>, %arg11: memref<2x32x32xbf16, #tpu.memory_space<vmem>>, %arg12: memref<2x1x32xf32, #tpu.memory_space<vmem>>, %arg13: memref<32x64xbf16, #tpu.memory_space<vmem>>, %arg14: memref<1x64xf32, #tpu.memory_space<vmem>>, %arg15: memref<32x64xbf16, #tpu.memory_space<vmem>>, %arg16: memref<1x64xf32, #tpu.memory_space<vmem>>, %arg17: memref<2x32x32xbf16, #tpu.memory_space<vmem>>, %arg18: memref<2x1x32xf32, #tpu.memory_space<vmem>>, %arg19: memref<2x32x64xbf16, #tpu.memory_space<vmem>>, %arg20: memref<2x1x64xf32, #tpu.memory_space<vmem>>, %arg21: memref<2x64x32xbf16, #tpu.memory_space<vmem>>, %arg22: memref<2x1x32xf32, #tpu.memory_space<vmem>>, %arg23: memref<2x2x32xf32, #tpu.memory_space<vmem>>, %arg24: memref<2x2x32xf32, #tpu.memory_space<vmem>>, %arg25: memref<2x2x32xf32, #tpu.memory_space<vmem>>, %arg26: memref<2x32xf32, #tpu.memory_space<vmem>>, %arg27: memref<2x8x32xf32, #tpu.memory_space<vmem>>) attributes {dimension_semantics = [], scalar_prefetch = 0 : i64, scratch_operands = 0 : i64, tpu.core_type = #tpu.core_type<tc>} {
    %c0 = arith.constant 0 : index
    %c0_0 = arith.constant 0 : index
    %c0_1 = arith.constant 0 : index
    %0 = vector.load %arg0[%c0, %c0_0, %c0_1] : memref<2x8x32xf32, #tpu.memory_space<vmem>>, vector<2x8x32xf32>
    %c0_2 = arith.constant 0 : index
    %c0_3 = arith.constant 0 : index
    %c0_4 = arith.constant 0 : index
    %1 = vector.load %arg2[%c0_2, %c0_3, %c0_4] : memref<2x8x32xf32, #tpu.memory_space<vmem>>, vector<2x8x32xf32>
    %c0_5 = arith.constant 0 : index
    %c0_6 = arith.constant 0 : index
    %c0_7 = arith.constant 0 : index
    %2 = vector.load %arg1[%c0_5, %c0_6, %c0_7] : memref<2x64x32xf32, #tpu.memory_space<vmem>>, vector<2x64x32xf32>
    %3 = arith.truncf %2 : vector<2x64x32xf32> to vector<2x64x32xbf16>
    %c0_8 = arith.constant 0 : index
    %c0_9 = arith.constant 0 : index
    %c0_10 = arith.constant 0 : index
    %4 = vector.load %arg3[%c0_8, %c0_9, %c0_10] : memref<2x64x32xf32, #tpu.memory_space<vmem>>, vector<2x64x32xf32>
    %5 = arith.addf %2, %4 : vector<2x64x32xf32>
    %6 = arith.truncf %5 : vector<2x64x32xf32> to vector<2x64x32xbf16>
    %c0_11 = arith.constant 0 : index
    %c0_12 = arith.constant 0 : index
    %c0_13 = arith.constant 0 : index
    %7 = vector.load %arg4[%c0_11, %c0_12, %c0_13] : memref<2x1x64xf32, #tpu.memory_space<vmem>>, vector<2x1x64xf32>
    %c0_14 = arith.constant 0 : index
    %c0_15 = arith.constant 0 : index
    %8 = vector.load %arg13[%c0_14, %c0_15] : memref<32x64xbf16, #tpu.memory_space<vmem>>, vector<32x64xbf16>
    "tpu.trace_start"() <{level = 10 : i32, message = "bsi,io->bso"}> : () -> ()
    %cst = arith.constant dense<0.000000e+00> : vector<2x64x64xf32>
    %9 = tpu.matmul %6, %8, %cst {dimension_numbers = #tpu.dot_dimension_numbers<[2], [0], [0, 1], [1], [0, 0, 0, 1, 1, 1], [], []>} : vector<2x64x32xbf16>, vector<32x64xbf16>, vector<2x64x64xf32> -> vector<2x64x64xf32>
    "tpu.trace_stop"() : () -> ()
    %c0_16 = arith.constant 0 : index
    %c0_17 = arith.constant 0 : index
    %10 = vector.load %arg14[%c0_16, %c0_17] : memref<1x64xf32, #tpu.memory_space<vmem>>, vector<1x64xf32>
    %11 = vector.shape_cast %10 : vector<1x64xf32> to vector<1x1x64xf32>
    %12 = vector.broadcast %11 : vector<1x1x64xf32> to vector<2x64x64xf32>
    %13 = arith.addf %9, %12 : vector<2x64x64xf32>
    %14 = arith.truncf %13 : vector<2x64x64xf32> to vector<2x64x64xbf16>
    %c0_18 = arith.constant 0 : index
    %c0_19 = arith.constant 0 : index
    %15 = vector.load %arg15[%c0_18, %c0_19] : memref<32x64xbf16, #tpu.memory_space<vmem>>, vector<32x64xbf16>
    "tpu.trace_start"() <{level = 10 : i32, message = "bsi,io->bso"}> : () -> ()
    %cst_20 = arith.constant dense<0.000000e+00> : vector<2x64x64xf32>
    %16 = tpu.matmul %3, %15, %cst_20 {dimension_numbers = #tpu.dot_dimension_numbers<[2], [0], [0, 1], [1], [0, 0, 0, 1, 1, 1], [], []>} : vector<2x64x32xbf16>, vector<32x64xbf16>, vector<2x64x64xf32> -> vector<2x64x64xf32>
    "tpu.trace_stop"() : () -> ()
    %c0_21 = arith.constant 0 : index
    %c0_22 = arith.constant 0 : index
    %17 = vector.load %arg16[%c0_21, %c0_22] : memref<1x64xf32, #tpu.memory_space<vmem>>, vector<1x64xf32>
    %18 = vector.shape_cast %17 : vector<1x64xf32> to vector<1x1x64xf32>
    %19 = vector.broadcast %18 : vector<1x1x64xf32> to vector<2x64x64xf32>
    %20 = arith.addf %16, %19 : vector<2x64x64xf32>
    %21 = arith.truncf %20 : vector<2x64x64xf32> to vector<2x64x64xbf16>
    %22 = arith.addf %0, %1 : vector<2x8x32xf32>
    %23 = arith.truncf %22 : vector<2x8x32xf32> to vector<2x8x32xbf16>
    %c0_23 = arith.constant 0 : index
    %c0_24 = arith.constant 0 : index
    %c0_25 = arith.constant 0 : index
    %24 = vector.load %arg5[%c0_23, %c0_24, %c0_25] : memref<2x32x64xbf16, #tpu.memory_space<vmem>>, vector<1x32x64xbf16>
    %25 = vector.shape_cast %24 : vector<1x32x64xbf16> to vector<32x64xbf16>
    %c0_26 = arith.constant 0 : index
    %c0_27 = arith.constant 0 : index
    %c0_28 = arith.constant 0 : index
    %26 = vector.load %arg6[%c0_26, %c0_27, %c0_28] : memref<2x1x64xf32, #tpu.memory_space<vmem>>, vector<1x1x64xf32>
    %27 = vector.shape_cast %26 : vector<1x1x64xf32> to vector<1x64xf32>
    "tpu.trace_start"() <{level = 10 : i32, message = "bsi,io->bso"}> : () -> ()
    %cst_29 = arith.constant dense<0.000000e+00> : vector<2x8x64xf32>
    %28 = tpu.matmul %23, %25, %cst_29 {dimension_numbers = #tpu.dot_dimension_numbers<[2], [0], [0, 1], [1], [0, 0, 0, 1, 1, 1], [], []>} : vector<2x8x32xbf16>, vector<32x64xbf16>, vector<2x8x64xf32> -> vector<2x8x64xf32>
    "tpu.trace_stop"() : () -> ()
    %29 = vector.shape_cast %27 : vector<1x64xf32> to vector<1x1x64xf32>
    %30 = vector.broadcast %29 : vector<1x1x64xf32> to vector<2x8x64xf32>
    %31 = arith.addf %28, %30 : vector<2x8x64xf32>
    %32 = arith.truncf %31 : vector<2x8x64xf32> to vector<2x8x64xbf16>
    %33 = vector.extract_strided_slice %32 {offsets = [0, 0, 0], sizes = [2, 8, 32], strides = [1, 1, 1]} : vector<2x8x64xbf16> to vector<2x8x32xbf16>
    %34 = vector.extract_strided_slice %32 {offsets = [0, 0, 32], sizes = [2, 8, 32], strides = [1, 1, 1]} : vector<2x8x64xbf16> to vector<2x8x32xbf16>
    %35 = arith.truncf %0 : vector<2x8x32xf32> to vector<2x8x32xbf16>
    %c0_30 = arith.constant 0 : index
    %c0_31 = arith.constant 0 : index
    %c0_32 = arith.constant 0 : index
    %36 = vector.load %arg7[%c0_30, %c0_31, %c0_32] : memref<2x32x32xbf16, #tpu.memory_space<vmem>>, vector<1x32x32xbf16>
    %37 = vector.shape_cast %36 : vector<1x32x32xbf16> to vector<32x32xbf16>
    %c0_33 = arith.constant 0 : index
    %c0_34 = arith.constant 0 : index
    %c0_35 = arith.constant 0 : index
    %38 = vector.load %arg8[%c0_33, %c0_34, %c0_35] : memref<2x1x32xf32, #tpu.memory_space<vmem>>, vector<1x1x32xf32>
    %39 = vector.shape_cast %38 : vector<1x1x32xf32> to vector<1x32xf32>
    "tpu.trace_start"() <{level = 10 : i32, message = "bsi,io->bso"}> : () -> ()
    %cst_36 = arith.constant dense<0.000000e+00> : vector<2x8x32xf32>
    %40 = tpu.matmul %35, %37, %cst_36 {dimension_numbers = #tpu.dot_dimension_numbers<[2], [0], [0, 1], [1], [0, 0, 0, 1, 1, 1], [], []>} : vector<2x8x32xbf16>, vector<32x32xbf16>, vector<2x8x32xf32> -> vector<2x8x32xf32>
    "tpu.trace_stop"() : () -> ()
    %41 = vector.shape_cast %39 : vector<1x32xf32> to vector<1x1x32xf32>
    %42 = vector.broadcast %41 : vector<1x1x32xf32> to vector<2x8x32xf32>
    %43 = arith.addf %40, %42 : vector<2x8x32xf32>
    %44 = arith.truncf %43 : vector<2x8x32xf32> to vector<2x8x32xbf16>
    %c0_37 = arith.constant 0 : index
    %c0_38 = arith.constant 0 : index
    %c0_39 = arith.constant 0 : index
    %45 = vector.load %arg9[%c0_37, %c0_38, %c0_39] : memref<2x32x32xbf16, #tpu.memory_space<vmem>>, vector<1x32x32xbf16>
    %46 = vector.shape_cast %45 : vector<1x32x32xbf16> to vector<32x32xbf16>
    %c0_40 = arith.constant 0 : index
    %c0_41 = arith.constant 0 : index
    %c0_42 = arith.constant 0 : index
    %47 = vector.load %arg10[%c0_40, %c0_41, %c0_42] : memref<2x1x32xf32, #tpu.memory_space<vmem>>, vector<1x1x32xf32>
    %48 = vector.shape_cast %47 : vector<1x1x32xf32> to vector<1x32xf32>
    %cst_43 = arith.constant 0.000000e+00 : f32
    %49 = vector.broadcast %cst_43 : f32 to vector<2x8x32xf32>
    %50 = vector.extract_strided_slice %33 {offsets = [0, 0, 0], sizes = [2, 8, 8], strides = [1, 1, 1]} : vector<2x8x32xbf16> to vector<2x8x8xbf16>
    %51 = vector.extract_strided_slice %34 {offsets = [0, 0, 0], sizes = [2, 8, 8], strides = [1, 1, 1]} : vector<2x8x32xbf16> to vector<2x8x8xbf16>
    "tpu.trace_start"() <{level = 10 : i32, message = "bqd,bkd->bqk"}> : () -> ()
    %cst_44 = arith.constant dense<0.000000e+00> : vector<2x8x8xf32>
    %52 = tpu.matmul %50, %51, %cst_44 {dimension_numbers = #tpu.dot_dimension_numbers<[2], [2], [1], [1], [0, 0, 0, 1, 1, 1], [0], [0]>} : vector<2x8x8xbf16>, vector<2x8x8xbf16>, vector<2x8x8xf32> -> vector<2x8x8xf32>
    "tpu.trace_stop"() : () -> ()
    %cst_45 = arith.constant dense<0xFF800000> : vector<2x8xf32>
    %53 = vector.multi_reduction <maximumf>, %52, %cst_45 [2] : vector<2x8x8xf32> to vector<2x8xf32>
    %54 = vector.shape_cast %53 : vector<2x8xf32> to vector<2x8x1xf32>
    %55 = vector.broadcast %54 : vector<2x8x1xf32> to vector<2x8x8xf32>
    %56 = arith.subf %52, %55 : vector<2x8x8xf32>
    %57 = math.exp %56 : vector<2x8x8xf32>
    %cst_46 = arith.constant dense<0.000000e+00> : vector<2x8xf32>
    %58 = vector.multi_reduction <add>, %57, %cst_46 [2] : vector<2x8x8xf32> to vector<2x8xf32>
    %59 = vector.shape_cast %58 : vector<2x8xf32> to vector<2x8x1xf32>
    %60 = arith.truncf %57 : vector<2x8x8xf32> to vector<2x8x8xbf16>
    %61 = vector.extract_strided_slice %44 {offsets = [0, 0, 0], sizes = [2, 8, 8], strides = [1, 1, 1]} : vector<2x8x32xbf16> to vector<2x8x8xbf16>
    "tpu.trace_start"() <{level = 10 : i32, message = "bqk,bkd->bqd"}> : () -> ()
    %cst_47 = arith.constant dense<0.000000e+00> : vector<2x8x8xf32>
    %62 = tpu.matmul %60, %61, %cst_47 {dimension_numbers = #tpu.dot_dimension_numbers<[2], [1], [1], [2], [0, 0, 0, 1, 1, 2], [0], [0]>} : vector<2x8x8xbf16>, vector<2x8x8xbf16>, vector<2x8x8xf32> -> vector<2x8x8xf32>
    "tpu.trace_stop"() : () -> ()
    %63 = tpu.reciprocal %59 {approx = true} : vector<2x8x1xf32> -> vector<2x8x1xf32>
    %64 = vector.broadcast %63 : vector<2x8x1xf32> to vector<2x8x8xf32>
    %65 = arith.mulf %62, %64 : vector<2x8x8xf32>
    %66 = arith.truncf %65 : vector<2x8x8xf32> to vector<2x8x8xbf16>
    %67 = vector.extract_strided_slice %46 {offsets = [0, 0], sizes = [8, 32], strides = [1, 1]} : vector<32x32xbf16> to vector<8x32xbf16>
    "tpu.trace_start"() <{level = 10 : i32, message = "bqd,de->bqe"}> : () -> ()
    %cst_48 = arith.constant dense<0.000000e+00> : vector<2x8x32xf32>
    %68 = tpu.matmul %66, %67, %cst_48 {dimension_numbers = #tpu.dot_dimension_numbers<[2], [0], [0, 1], [1], [0, 0, 0, 1, 1, 1], [], []>} : vector<2x8x8xbf16>, vector<8x32xbf16>, vector<2x8x32xf32> -> vector<2x8x32xf32>
    "tpu.trace_stop"() : () -> ()
    %69 = arith.addf %49, %68 : vector<2x8x32xf32>
    %70 = vector.extract_strided_slice %33 {offsets = [0, 0, 8], sizes = [2, 8, 8], strides = [1, 1, 1]} : vector<2x8x32xbf16> to vector<2x8x8xbf16>
    %71 = vector.extract_strided_slice %34 {offsets = [0, 0, 8], sizes = [2, 8, 8], strides = [1, 1, 1]} : vector<2x8x32xbf16> to vector<2x8x8xbf16>
    "tpu.trace_start"() <{level = 10 : i32, message = "bqd,bkd->bqk"}> : () -> ()
    %cst_49 = arith.constant dense<0.000000e+00> : vector<2x8x8xf32>
    %72 = tpu.matmul %70, %71, %cst_49 {dimension_numbers = #tpu.dot_dimension_numbers<[2], [2], [1], [1], [0, 0, 0, 1, 1, 1], [0], [0]>} : vector<2x8x8xbf16>, vector<2x8x8xbf16>, vector<2x8x8xf32> -> vector<2x8x8xf32>
    "tpu.trace_stop"() : () -> ()
    %cst_50 = arith.constant dense<0xFF800000> : vector<2x8xf32>
    %73 = vector.multi_reduction <maximumf>, %72, %cst_50 [2] : vector<2x8x8xf32> to vector<2x8xf32>
    %74 = vector.shape_cast %73 : vector<2x8xf32> to vector<2x8x1xf32>
    %75 = vector.broadcast %74 : vector<2x8x1xf32> to vector<2x8x8xf32>
    %76 = arith.subf %72, %75 : vector<2x8x8xf32>
    %77 = math.exp %76 : vector<2x8x8xf32>
    %cst_51 = arith.constant dense<0.000000e+00> : vector<2x8xf32>
    %78 = vector.multi_reduction <add>, %77, %cst_51 [2] : vector<2x8x8xf32> to vector<2x8xf32>
    %79 = vector.shape_cast %78 : vector<2x8xf32> to vector<2x8x1xf32>
    %80 = arith.truncf %77 : vector<2x8x8xf32> to vector<2x8x8xbf16>
    %81 = vector.extract_strided_slice %44 {offsets = [0, 0, 8], sizes = [2, 8, 8], strides = [1, 1, 1]} : vector<2x8x32xbf16> to vector<2x8x8xbf16>
    "tpu.trace_start"() <{level = 10 : i32, message = "bqk,bkd->bqd"}> : () -> ()
    %cst_52 = arith.constant dense<0.000000e+00> : vector<2x8x8xf32>
    %82 = tpu.matmul %80, %81, %cst_52 {dimension_numbers = #tpu.dot_dimension_numbers<[2], [1], [1], [2], [0, 0, 0, 1, 1, 2], [0], [0]>} : vector<2x8x8xbf16>, vector<2x8x8xbf16>, vector<2x8x8xf32> -> vector<2x8x8xf32>
    "tpu.trace_stop"() : () -> ()
    %83 = tpu.reciprocal %79 {approx = true} : vector<2x8x1xf32> -> vector<2x8x1xf32>
    %84 = vector.broadcast %83 : vector<2x8x1xf32> to vector<2x8x8xf32>
    %85 = arith.mulf %82, %84 : vector<2x8x8xf32>
    %86 = arith.truncf %85 : vector<2x8x8xf32> to vector<2x8x8xbf16>
    %87 = vector.extract_strided_slice %46 {offsets = [8, 0], sizes = [8, 32], strides = [1, 1]} : vector<32x32xbf16> to vector<8x32xbf16>
    "tpu.trace_start"() <{level = 10 : i32, message = "bqd,de->bqe"}> : () -> ()
    %cst_53 = arith.constant dense<0.000000e+00> : vector<2x8x32xf32>
    %88 = tpu.matmul %86, %87, %cst_53 {dimension_numbers = #tpu.dot_dimension_numbers<[2], [0], [0, 1], [1], [0, 0, 0, 1, 1, 1], [], []>} : vector<2x8x8xbf16>, vector<8x32xbf16>, vector<2x8x32xf32> -> vector<2x8x32xf32>
    "tpu.trace_stop"() : () -> ()
    %89 = arith.addf %69, %88 : vector<2x8x32xf32>
    %90 = vector.extract_strided_slice %33 {offsets = [0, 0, 16], sizes = [2, 8, 8], strides = [1, 1, 1]} : vector<2x8x32xbf16> to vector<2x8x8xbf16>
    %91 = vector.extract_strided_slice %34 {offsets = [0, 0, 16], sizes = [2, 8, 8], strides = [1, 1, 1]} : vector<2x8x32xbf16> to vector<2x8x8xbf16>
    "tpu.trace_start"() <{level = 10 : i32, message = "bqd,bkd->bqk"}> : () -> ()
    %cst_54 = arith.constant dense<0.000000e+00> : vector<2x8x8xf32>
    %92 = tpu.matmul %90, %91, %cst_54 {dimension_numbers = #tpu.dot_dimension_numbers<[2], [2], [1], [1], [0, 0, 0, 1, 1, 1], [0], [0]>} : vector<2x8x8xbf16>, vector<2x8x8xbf16>, vector<2x8x8xf32> -> vector<2x8x8xf32>
    "tpu.trace_stop"() : () -> ()
    %cst_55 = arith.constant dense<0xFF800000> : vector<2x8xf32>
    %93 = vector.multi_reduction <maximumf>, %92, %cst_55 [2] : vector<2x8x8xf32> to vector<2x8xf32>
    %94 = vector.shape_cast %93 : vector<2x8xf32> to vector<2x8x1xf32>
    %95 = vector.broadcast %94 : vector<2x8x1xf32> to vector<2x8x8xf32>
    %96 = arith.subf %92, %95 : vector<2x8x8xf32>
    %97 = math.exp %96 : vector<2x8x8xf32>
    %cst_56 = arith.constant dense<0.000000e+00> : vector<2x8xf32>
    %98 = vector.multi_reduction <add>, %97, %cst_56 [2] : vector<2x8x8xf32> to vector<2x8xf32>
    %99 = vector.shape_cast %98 : vector<2x8xf32> to vector<2x8x1xf32>
    %100 = arith.truncf %97 : vector<2x8x8xf32> to vector<2x8x8xbf16>
    %101 = vector.extract_strided_slice %44 {offsets = [0, 0, 16], sizes = [2, 8, 8], strides = [1, 1, 1]} : vector<2x8x32xbf16> to vector<2x8x8xbf16>
    "tpu.trace_start"() <{level = 10 : i32, message = "bqk,bkd->bqd"}> : () -> ()
    %cst_57 = arith.constant dense<0.000000e+00> : vector<2x8x8xf32>
    %102 = tpu.matmul %100, %101, %cst_57 {dimension_numbers = #tpu.dot_dimension_numbers<[2], [1], [1], [2], [0, 0, 0, 1, 1, 2], [0], [0]>} : vector<2x8x8xbf16>, vector<2x8x8xbf16>, vector<2x8x8xf32> -> vector<2x8x8xf32>
    "tpu.trace_stop"() : () -> ()
    %103 = tpu.reciprocal %99 {approx = true} : vector<2x8x1xf32> -> vector<2x8x1xf32>
    %104 = vector.broadcast %103 : vector<2x8x1xf32> to vector<2x8x8xf32>
    %105 = arith.mulf %102, %104 : vector<2x8x8xf32>
    %106 = arith.truncf %105 : vector<2x8x8xf32> to vector<2x8x8xbf16>
    %107 = vector.extract_strided_slice %46 {offsets = [16, 0], sizes = [8, 32], strides = [1, 1]} : vector<32x32xbf16> to vector<8x32xbf16>
    "tpu.trace_start"() <{level = 10 : i32, message = "bqd,de->bqe"}> : () -> ()
    %cst_58 = arith.constant dense<0.000000e+00> : vector<2x8x32xf32>
    %108 = tpu.matmul %106, %107, %cst_58 {dimension_numbers = #tpu.dot_dimension_numbers<[2], [0], [0, 1], [1], [0, 0, 0, 1, 1, 1], [], []>} : vector<2x8x8xbf16>, vector<8x32xbf16>, vector<2x8x32xf32> -> vector<2x8x32xf32>
    "tpu.trace_stop"() : () -> ()
    %109 = arith.addf %89, %108 : vector<2x8x32xf32>
    %110 = vector.extract_strided_slice %33 {offsets = [0, 0, 24], sizes = [2, 8, 8], strides = [1, 1, 1]} : vector<2x8x32xbf16> to vector<2x8x8xbf16>
    %111 = vector.extract_strided_slice %34 {offsets = [0, 0, 24], sizes = [2, 8, 8], strides = [1, 1, 1]} : vector<2x8x32xbf16> to vector<2x8x8xbf16>
    "tpu.trace_start"() <{level = 10 : i32, message = "bqd,bkd->bqk"}> : () -> ()
    %cst_59 = arith.constant dense<0.000000e+00> : vector<2x8x8xf32>
    %112 = tpu.matmul %110, %111, %cst_59 {dimension_numbers = #tpu.dot_dimension_numbers<[2], [2], [1], [1], [0, 0, 0, 1, 1, 1], [0], [0]>} : vector<2x8x8xbf16>, vector<2x8x8xbf16>, vector<2x8x8xf32> -> vector<2x8x8xf32>
    "tpu.trace_stop"() : () -> ()
    %cst_60 = arith.constant dense<0xFF800000> : vector<2x8xf32>
    %113 = vector.multi_reduction <maximumf>, %112, %cst_60 [2] : vector<2x8x8xf32> to vector<2x8xf32>
    %114 = vector.shape_cast %113 : vector<2x8xf32> to vector<2x8x1xf32>
    %115 = vector.broadcast %114 : vector<2x8x1xf32> to vector<2x8x8xf32>
    %116 = arith.subf %112, %115 : vector<2x8x8xf32>
    %117 = math.exp %116 : vector<2x8x8xf32>
    %cst_61 = arith.constant dense<0.000000e+00> : vector<2x8xf32>
    %118 = vector.multi_reduction <add>, %117, %cst_61 [2] : vector<2x8x8xf32> to vector<2x8xf32>
    %119 = vector.shape_cast %118 : vector<2x8xf32> to vector<2x8x1xf32>
    %120 = arith.truncf %117 : vector<2x8x8xf32> to vector<2x8x8xbf16>
    %121 = vector.extract_strided_slice %44 {offsets = [0, 0, 24], sizes = [2, 8, 8], strides = [1, 1, 1]} : vector<2x8x32xbf16> to vector<2x8x8xbf16>
    "tpu.trace_start"() <{level = 10 : i32, message = "bqk,bkd->bqd"}> : () -> ()
    %cst_62 = arith.constant dense<0.000000e+00> : vector<2x8x8xf32>
    %122 = tpu.matmul %120, %121, %cst_62 {dimension_numbers = #tpu.dot_dimension_numbers<[2], [1], [1], [2], [0, 0, 0, 1, 1, 2], [0], [0]>} : vector<2x8x8xbf16>, vector<2x8x8xbf16>, vector<2x8x8xf32> -> vector<2x8x8xf32>
    "tpu.trace_stop"() : () -> ()
    %123 = tpu.reciprocal %119 {approx = true} : vector<2x8x1xf32> -> vector<2x8x1xf32>
    %124 = vector.broadcast %123 : vector<2x8x1xf32> to vector<2x8x8xf32>
    %125 = arith.mulf %122, %124 : vector<2x8x8xf32>
    %126 = arith.truncf %125 : vector<2x8x8xf32> to vector<2x8x8xbf16>
    %127 = vector.extract_strided_slice %46 {offsets = [24, 0], sizes = [8, 32], strides = [1, 1]} : vector<32x32xbf16> to vector<8x32xbf16>
    "tpu.trace_start"() <{level = 10 : i32, message = "bqd,de->bqe"}> : () -> ()
    %cst_63 = arith.constant dense<0.000000e+00> : vector<2x8x32xf32>
    %128 = tpu.matmul %126, %127, %cst_63 {dimension_numbers = #tpu.dot_dimension_numbers<[2], [0], [0, 1], [1], [0, 0, 0, 1, 1, 1], [], []>} : vector<2x8x8xbf16>, vector<8x32xbf16>, vector<2x8x32xf32> -> vector<2x8x32xf32>
    "tpu.trace_stop"() : () -> ()
    %129 = arith.addf %109, %128 : vector<2x8x32xf32>
    %130 = vector.shape_cast %48 : vector<1x32xf32> to vector<1x1x32xf32>
    %131 = vector.broadcast %130 : vector<1x1x32xf32> to vector<2x8x32xf32>
    %132 = arith.addf %129, %131 : vector<2x8x32xf32>
    %c0_64 = arith.constant 0 : index
    %c0_65 = arith.constant 0 : index
    %c0_66 = arith.constant 0 : index
    %133 = vector.load %arg23[%c0_64, %c0_65, %c0_66] : memref<2x2x32xf32, #tpu.memory_space<vmem>>, vector<1x2x32xf32>
    %134 = vector.shape_cast %133 : vector<1x2x32xf32> to vector<2x32xf32>
    %135 = arith.addf %0, %132 : vector<2x8x32xf32>
    %cst_67 = arith.constant dense<0.000000e+00> : vector<2x8xf32>
    %136 = vector.multi_reduction <add>, %135, %cst_67 [2] : vector<2x8x32xf32> to vector<2x8xf32>
    %137 = vector.shape_cast %136 : vector<2x8xf32> to vector<2x8x1xf32>
    %cst_68 = arith.constant 3.200000e+01 : f32
    %138 = vector.broadcast %cst_68 : f32 to vector<2x8x1xf32>
    %139 = arith.divf %137, %138 : vector<2x8x1xf32>
    %140 = vector.broadcast %139 : vector<2x8x1xf32> to vector<2x8x32xf32>
    %141 = arith.subf %135, %140 : vector<2x8x32xf32>
    %142 = arith.mulf %141, %141 : vector<2x8x32xf32>
    %cst_69 = arith.constant dense<0.000000e+00> : vector<2x8xf32>
    %143 = vector.multi_reduction <add>, %142, %cst_69 [2] : vector<2x8x32xf32> to vector<2x8xf32>
    %144 = vector.shape_cast %143 : vector<2x8xf32> to vector<2x8x1xf32>
    %cst_70 = arith.constant 3.200000e+01 : f32
    %145 = vector.broadcast %cst_70 : f32 to vector<2x8x1xf32>
    %146 = arith.divf %144, %145 : vector<2x8x1xf32>
    %147 = vector.broadcast %139 : vector<2x8x1xf32> to vector<2x8x32xf32>
    %148 = arith.subf %135, %147 : vector<2x8x32xf32>
    %cst_71 = arith.constant 9.99999974E-6 : f32
    %149 = vector.broadcast %cst_71 : f32 to vector<2x8x1xf32>
    %150 = arith.addf %146, %149 : vector<2x8x1xf32>
    %151 = math.rsqrt %150 : vector<2x8x1xf32>
    %152 = vector.broadcast %151 : vector<2x8x1xf32> to vector<2x8x32xf32>
    %153 = arith.mulf %148, %152 : vector<2x8x32xf32>
    %154 = vector.extract_strided_slice %134 {offsets = [0, 0], sizes = [1, 32], strides = [1, 1]} : vector<2x32xf32> to vector<1x32xf32>
    %155 = vector.shape_cast %154 : vector<1x32xf32> to vector<1x1x32xf32>
    %156 = vector.broadcast %155 : vector<1x1x32xf32> to vector<2x8x32xf32>
    %157 = arith.mulf %153, %156 : vector<2x8x32xf32>
    %158 = vector.extract_strided_slice %134 {offsets = [1, 0], sizes = [1, 32], strides = [1, 1]} : vector<2x32xf32> to vector<1x32xf32>
    %159 = vector.shape_cast %158 : vector<1x32xf32> to vector<1x1x32xf32>
    %160 = vector.broadcast %159 : vector<1x1x32xf32> to vector<2x8x32xf32>
    %161 = arith.addf %157, %160 : vector<2x8x32xf32>
    %162 = arith.addf %161, %1 : vector<2x8x32xf32>
    %163 = arith.truncf %162 : vector<2x8x32xf32> to vector<2x8x32xbf16>
    %c0_72 = arith.constant 0 : index
    %c0_73 = arith.constant 0 : index
    %c0_74 = arith.constant 0 : index
    %164 = vector.load %arg11[%c0_72, %c0_73, %c0_74] : memref<2x32x32xbf16, #tpu.memory_space<vmem>>, vector<1x32x32xbf16>
    %165 = vector.shape_cast %164 : vector<1x32x32xbf16> to vector<32x32xbf16>
    %c0_75 = arith.constant 0 : index
    %c0_76 = arith.constant 0 : index
    %c0_77 = arith.constant 0 : index
    %166 = vector.load %arg12[%c0_75, %c0_76, %c0_77] : memref<2x1x32xf32, #tpu.memory_space<vmem>>, vector<1x1x32xf32>
    %167 = vector.shape_cast %166 : vector<1x1x32xf32> to vector<1x32xf32>
    "tpu.trace_start"() <{level = 10 : i32, message = "bsi,io->bso"}> : () -> ()
    %cst_78 = arith.constant dense<0.000000e+00> : vector<2x8x32xf32>
    %168 = tpu.matmul %163, %165, %cst_78 {dimension_numbers = #tpu.dot_dimension_numbers<[2], [0], [0, 1], [1], [0, 0, 0, 1, 1, 1], [], []>} : vector<2x8x32xbf16>, vector<32x32xbf16>, vector<2x8x32xf32> -> vector<2x8x32xf32>
    "tpu.trace_stop"() : () -> ()
    %169 = vector.shape_cast %167 : vector<1x32xf32> to vector<1x1x32xf32>
    %170 = vector.broadcast %169 : vector<1x1x32xf32> to vector<2x8x32xf32>
    %171 = arith.addf %168, %170 : vector<2x8x32xf32>
    %172 = arith.truncf %171 : vector<2x8x32xf32> to vector<2x8x32xbf16>
    %173 = vector.extract_strided_slice %14 {offsets = [0, 0, 0], sizes = [2, 64, 32], strides = [1, 1, 1]} : vector<2x64x64xbf16> to vector<2x64x32xbf16>
    %174 = vector.extract_strided_slice %21 {offsets = [0, 0, 0], sizes = [2, 64, 32], strides = [1, 1, 1]} : vector<2x64x64xbf16> to vector<2x64x32xbf16>
    %c0_79 = arith.constant 0 : index
    %c0_80 = arith.constant 0 : index
    %c0_81 = arith.constant 0 : index
    %175 = vector.load %arg17[%c0_79, %c0_80, %c0_81] : memref<2x32x32xbf16, #tpu.memory_space<vmem>>, vector<1x32x32xbf16>
    %176 = vector.shape_cast %175 : vector<1x32x32xbf16> to vector<32x32xbf16>
    %c0_82 = arith.constant 0 : index
    %c0_83 = arith.constant 0 : index
    %c0_84 = arith.constant 0 : index
    %177 = vector.load %arg18[%c0_82, %c0_83, %c0_84] : memref<2x1x32xf32, #tpu.memory_space<vmem>>, vector<1x1x32xf32>
    %178 = vector.shape_cast %177 : vector<1x1x32xf32> to vector<1x32xf32>
    %cst_85 = arith.constant 0.000000e+00 : f32
    %179 = vector.broadcast %cst_85 : f32 to vector<2x8x32xf32>
    %180 = vector.extract_strided_slice %172 {offsets = [0, 0, 0], sizes = [2, 8, 8], strides = [1, 1, 1]} : vector<2x8x32xbf16> to vector<2x8x8xbf16>
    %181 = vector.extract_strided_slice %173 {offsets = [0, 0, 0], sizes = [2, 64, 8], strides = [1, 1, 1]} : vector<2x64x32xbf16> to vector<2x64x8xbf16>
    "tpu.trace_start"() <{level = 10 : i32, message = "bqd,bkd->bqk"}> : () -> ()
    %cst_86 = arith.constant dense<0.000000e+00> : vector<2x8x64xf32>
    %182 = tpu.matmul %180, %181, %cst_86 {dimension_numbers = #tpu.dot_dimension_numbers<[2], [2], [1], [1], [0, 0, 0, 1, 1, 1], [0], [0]>} : vector<2x8x8xbf16>, vector<2x64x8xbf16>, vector<2x8x64xf32> -> vector<2x8x64xf32>
    "tpu.trace_stop"() : () -> ()
    %183 = vector.broadcast %7 : vector<2x1x64xf32> to vector<2x8x64xf32>
    %184 = arith.addf %182, %183 : vector<2x8x64xf32>
    %cst_87 = arith.constant dense<0xFF800000> : vector<2x8xf32>
    %185 = vector.multi_reduction <maximumf>, %184, %cst_87 [2] : vector<2x8x64xf32> to vector<2x8xf32>
    %186 = vector.shape_cast %185 : vector<2x8xf32> to vector<2x8x1xf32>
    %187 = vector.broadcast %186 : vector<2x8x1xf32> to vector<2x8x64xf32>
    %188 = arith.subf %184, %187 : vector<2x8x64xf32>
    %189 = math.exp %188 : vector<2x8x64xf32>
    %cst_88 = arith.constant dense<0.000000e+00> : vector<2x8xf32>
    %190 = vector.multi_reduction <add>, %189, %cst_88 [2] : vector<2x8x64xf32> to vector<2x8xf32>
    %191 = vector.shape_cast %190 : vector<2x8xf32> to vector<2x8x1xf32>
    %192 = arith.truncf %189 : vector<2x8x64xf32> to vector<2x8x64xbf16>
    %193 = vector.extract_strided_slice %174 {offsets = [0, 0, 0], sizes = [2, 64, 8], strides = [1, 1, 1]} : vector<2x64x32xbf16> to vector<2x64x8xbf16>
    "tpu.trace_start"() <{level = 10 : i32, message = "bqk,bkd->bqd"}> : () -> ()
    %cst_89 = arith.constant dense<0.000000e+00> : vector<2x8x8xf32>
    %194 = tpu.matmul %192, %193, %cst_89 {dimension_numbers = #tpu.dot_dimension_numbers<[2], [1], [1], [2], [0, 0, 0, 1, 1, 2], [0], [0]>} : vector<2x8x64xbf16>, vector<2x64x8xbf16>, vector<2x8x8xf32> -> vector<2x8x8xf32>
    "tpu.trace_stop"() : () -> ()
    %195 = tpu.reciprocal %191 {approx = true} : vector<2x8x1xf32> -> vector<2x8x1xf32>
    %196 = vector.broadcast %195 : vector<2x8x1xf32> to vector<2x8x8xf32>
    %197 = arith.mulf %194, %196 : vector<2x8x8xf32>
    %198 = arith.truncf %197 : vector<2x8x8xf32> to vector<2x8x8xbf16>
    %199 = vector.extract_strided_slice %176 {offsets = [0, 0], sizes = [8, 32], strides = [1, 1]} : vector<32x32xbf16> to vector<8x32xbf16>
    "tpu.trace_start"() <{level = 10 : i32, message = "bqd,de->bqe"}> : () -> ()
    %cst_90 = arith.constant dense<0.000000e+00> : vector<2x8x32xf32>
    %200 = tpu.matmul %198, %199, %cst_90 {dimension_numbers = #tpu.dot_dimension_numbers<[2], [0], [0, 1], [1], [0, 0, 0, 1, 1, 1], [], []>} : vector<2x8x8xbf16>, vector<8x32xbf16>, vector<2x8x32xf32> -> vector<2x8x32xf32>
    "tpu.trace_stop"() : () -> ()
    %201 = arith.addf %179, %200 : vector<2x8x32xf32>
    %202 = vector.extract_strided_slice %172 {offsets = [0, 0, 8], sizes = [2, 8, 8], strides = [1, 1, 1]} : vector<2x8x32xbf16> to vector<2x8x8xbf16>
    %203 = vector.extract_strided_slice %173 {offsets = [0, 0, 8], sizes = [2, 64, 8], strides = [1, 1, 1]} : vector<2x64x32xbf16> to vector<2x64x8xbf16>
    "tpu.trace_start"() <{level = 10 : i32, message = "bqd,bkd->bqk"}> : () -> ()
    %cst_91 = arith.constant dense<0.000000e+00> : vector<2x8x64xf32>
    %204 = tpu.matmul %202, %203, %cst_91 {dimension_numbers = #tpu.dot_dimension_numbers<[2], [2], [1], [1], [0, 0, 0, 1, 1, 1], [0], [0]>} : vector<2x8x8xbf16>, vector<2x64x8xbf16>, vector<2x8x64xf32> -> vector<2x8x64xf32>
    "tpu.trace_stop"() : () -> ()
    %205 = vector.broadcast %7 : vector<2x1x64xf32> to vector<2x8x64xf32>
    %206 = arith.addf %204, %205 : vector<2x8x64xf32>
    %cst_92 = arith.constant dense<0xFF800000> : vector<2x8xf32>
    %207 = vector.multi_reduction <maximumf>, %206, %cst_92 [2] : vector<2x8x64xf32> to vector<2x8xf32>
    %208 = vector.shape_cast %207 : vector<2x8xf32> to vector<2x8x1xf32>
    %209 = vector.broadcast %208 : vector<2x8x1xf32> to vector<2x8x64xf32>
    %210 = arith.subf %206, %209 : vector<2x8x64xf32>
    %211 = math.exp %210 : vector<2x8x64xf32>
    %cst_93 = arith.constant dense<0.000000e+00> : vector<2x8xf32>
    %212 = vector.multi_reduction <add>, %211, %cst_93 [2] : vector<2x8x64xf32> to vector<2x8xf32>
    %213 = vector.shape_cast %212 : vector<2x8xf32> to vector<2x8x1xf32>
    %214 = arith.truncf %211 : vector<2x8x64xf32> to vector<2x8x64xbf16>
    %215 = vector.extract_strided_slice %174 {offsets = [0, 0, 8], sizes = [2, 64, 8], strides = [1, 1, 1]} : vector<2x64x32xbf16> to vector<2x64x8xbf16>
    "tpu.trace_start"() <{level = 10 : i32, message = "bqk,bkd->bqd"}> : () -> ()
    %cst_94 = arith.constant dense<0.000000e+00> : vector<2x8x8xf32>
    %216 = tpu.matmul %214, %215, %cst_94 {dimension_numbers = #tpu.dot_dimension_numbers<[2], [1], [1], [2], [0, 0, 0, 1, 1, 2], [0], [0]>} : vector<2x8x64xbf16>, vector<2x64x8xbf16>, vector<2x8x8xf32> -> vector<2x8x8xf32>
    "tpu.trace_stop"() : () -> ()
    %217 = tpu.reciprocal %213 {approx = true} : vector<2x8x1xf32> -> vector<2x8x1xf32>
    %218 = vector.broadcast %217 : vector<2x8x1xf32> to vector<2x8x8xf32>
    %219 = arith.mulf %216, %218 : vector<2x8x8xf32>
    %220 = arith.truncf %219 : vector<2x8x8xf32> to vector<2x8x8xbf16>
    %221 = vector.extract_strided_slice %176 {offsets = [8, 0], sizes = [8, 32], strides = [1, 1]} : vector<32x32xbf16> to vector<8x32xbf16>
    "tpu.trace_start"() <{level = 10 : i32, message = "bqd,de->bqe"}> : () -> ()
    %cst_95 = arith.constant dense<0.000000e+00> : vector<2x8x32xf32>
    %222 = tpu.matmul %220, %221, %cst_95 {dimension_numbers = #tpu.dot_dimension_numbers<[2], [0], [0, 1], [1], [0, 0, 0, 1, 1, 1], [], []>} : vector<2x8x8xbf16>, vector<8x32xbf16>, vector<2x8x32xf32> -> vector<2x8x32xf32>
    "tpu.trace_stop"() : () -> ()
    %223 = arith.addf %201, %222 : vector<2x8x32xf32>
    %224 = vector.extract_strided_slice %172 {offsets = [0, 0, 16], sizes = [2, 8, 8], strides = [1, 1, 1]} : vector<2x8x32xbf16> to vector<2x8x8xbf16>
    %225 = vector.extract_strided_slice %173 {offsets = [0, 0, 16], sizes = [2, 64, 8], strides = [1, 1, 1]} : vector<2x64x32xbf16> to vector<2x64x8xbf16>
    "tpu.trace_start"() <{level = 10 : i32, message = "bqd,bkd->bqk"}> : () -> ()
    %cst_96 = arith.constant dense<0.000000e+00> : vector<2x8x64xf32>
    %226 = tpu.matmul %224, %225, %cst_96 {dimension_numbers = #tpu.dot_dimension_numbers<[2], [2], [1], [1], [0, 0, 0, 1, 1, 1], [0], [0]>} : vector<2x8x8xbf16>, vector<2x64x8xbf16>, vector<2x8x64xf32> -> vector<2x8x64xf32>
    "tpu.trace_stop"() : () -> ()
    %227 = vector.broadcast %7 : vector<2x1x64xf32> to vector<2x8x64xf32>
    %228 = arith.addf %226, %227 : vector<2x8x64xf32>
    %cst_97 = arith.constant dense<0xFF800000> : vector<2x8xf32>
    %229 = vector.multi_reduction <maximumf>, %228, %cst_97 [2] : vector<2x8x64xf32> to vector<2x8xf32>
    %230 = vector.shape_cast %229 : vector<2x8xf32> to vector<2x8x1xf32>
    %231 = vector.broadcast %230 : vector<2x8x1xf32> to vector<2x8x64xf32>
    %232 = arith.subf %228, %231 : vector<2x8x64xf32>
    %233 = math.exp %232 : vector<2x8x64xf32>
    %cst_98 = arith.constant dense<0.000000e+00> : vector<2x8xf32>
    %234 = vector.multi_reduction <add>, %233, %cst_98 [2] : vector<2x8x64xf32> to vector<2x8xf32>
    %235 = vector.shape_cast %234 : vector<2x8xf32> to vector<2x8x1xf32>
    %236 = arith.truncf %233 : vector<2x8x64xf32> to vector<2x8x64xbf16>
    %237 = vector.extract_strided_slice %174 {offsets = [0, 0, 16], sizes = [2, 64, 8], strides = [1, 1, 1]} : vector<2x64x32xbf16> to vector<2x64x8xbf16>
    "tpu.trace_start"() <{level = 10 : i32, message = "bqk,bkd->bqd"}> : () -> ()
    %cst_99 = arith.constant dense<0.000000e+00> : vector<2x8x8xf32>
    %238 = tpu.matmul %236, %237, %cst_99 {dimension_numbers = #tpu.dot_dimension_numbers<[2], [1], [1], [2], [0, 0, 0, 1, 1, 2], [0], [0]>} : vector<2x8x64xbf16>, vector<2x64x8xbf16>, vector<2x8x8xf32> -> vector<2x8x8xf32>
    "tpu.trace_stop"() : () -> ()
    %239 = tpu.reciprocal %235 {approx = true} : vector<2x8x1xf32> -> vector<2x8x1xf32>
    %240 = vector.broadcast %239 : vector<2x8x1xf32> to vector<2x8x8xf32>
    %241 = arith.mulf %238, %240 : vector<2x8x8xf32>
    %242 = arith.truncf %241 : vector<2x8x8xf32> to vector<2x8x8xbf16>
    %243 = vector.extract_strided_slice %176 {offsets = [16, 0], sizes = [8, 32], strides = [1, 1]} : vector<32x32xbf16> to vector<8x32xbf16>
    "tpu.trace_start"() <{level = 10 : i32, message = "bqd,de->bqe"}> : () -> ()
    %cst_100 = arith.constant dense<0.000000e+00> : vector<2x8x32xf32>
    %244 = tpu.matmul %242, %243, %cst_100 {dimension_numbers = #tpu.dot_dimension_numbers<[2], [0], [0, 1], [1], [0, 0, 0, 1, 1, 1], [], []>} : vector<2x8x8xbf16>, vector<8x32xbf16>, vector<2x8x32xf32> -> vector<2x8x32xf32>
    "tpu.trace_stop"() : () -> ()
    %245 = arith.addf %223, %244 : vector<2x8x32xf32>
    %246 = vector.extract_strided_slice %172 {offsets = [0, 0, 24], sizes = [2, 8, 8], strides = [1, 1, 1]} : vector<2x8x32xbf16> to vector<2x8x8xbf16>
    %247 = vector.extract_strided_slice %173 {offsets = [0, 0, 24], sizes = [2, 64, 8], strides = [1, 1, 1]} : vector<2x64x32xbf16> to vector<2x64x8xbf16>
    "tpu.trace_start"() <{level = 10 : i32, message = "bqd,bkd->bqk"}> : () -> ()
    %cst_101 = arith.constant dense<0.000000e+00> : vector<2x8x64xf32>
    %248 = tpu.matmul %246, %247, %cst_101 {dimension_numbers = #tpu.dot_dimension_numbers<[2], [2], [1], [1], [0, 0, 0, 1, 1, 1], [0], [0]>} : vector<2x8x8xbf16>, vector<2x64x8xbf16>, vector<2x8x64xf32> -> vector<2x8x64xf32>
    "tpu.trace_stop"() : () -> ()
    %249 = vector.broadcast %7 : vector<2x1x64xf32> to vector<2x8x64xf32>
    %250 = arith.addf %248, %249 : vector<2x8x64xf32>
    %cst_102 = arith.constant dense<0xFF800000> : vector<2x8xf32>
    %251 = vector.multi_reduction <maximumf>, %250, %cst_102 [2] : vector<2x8x64xf32> to vector<2x8xf32>
    %252 = vector.shape_cast %251 : vector<2x8xf32> to vector<2x8x1xf32>
    %253 = vector.broadcast %252 : vector<2x8x1xf32> to vector<2x8x64xf32>
    %254 = arith.subf %250, %253 : vector<2x8x64xf32>
    %255 = math.exp %254 : vector<2x8x64xf32>
    %cst_103 = arith.constant dense<0.000000e+00> : vector<2x8xf32>
    %256 = vector.multi_reduction <add>, %255, %cst_103 [2] : vector<2x8x64xf32> to vector<2x8xf32>
    %257 = vector.shape_cast %256 : vector<2x8xf32> to vector<2x8x1xf32>
    %258 = arith.truncf %255 : vector<2x8x64xf32> to vector<2x8x64xbf16>
    %259 = vector.extract_strided_slice %174 {offsets = [0, 0, 24], sizes = [2, 64, 8], strides = [1, 1, 1]} : vector<2x64x32xbf16> to vector<2x64x8xbf16>
    "tpu.trace_start"() <{level = 10 : i32, message = "bqk,bkd->bqd"}> : () -> ()
    %cst_104 = arith.constant dense<0.000000e+00> : vector<2x8x8xf32>
    %260 = tpu.matmul %258, %259, %cst_104 {dimension_numbers = #tpu.dot_dimension_numbers<[2], [1], [1], [2], [0, 0, 0, 1, 1, 2], [0], [0]>} : vector<2x8x64xbf16>, vector<2x64x8xbf16>, vector<2x8x8xf32> -> vector<2x8x8xf32>
    "tpu.trace_stop"() : () -> ()
    %261 = tpu.reciprocal %257 {approx = true} : vector<2x8x1xf32> -> vector<2x8x1xf32>
    %262 = vector.broadcast %261 : vector<2x8x1xf32> to vector<2x8x8xf32>
    %263 = arith.mulf %260, %262 : vector<2x8x8xf32>
    %264 = arith.truncf %263 : vector<2x8x8xf32> to vector<2x8x8xbf16>
    %265 = vector.extract_strided_slice %176 {offsets = [24, 0], sizes = [8, 32], strides = [1, 1]} : vector<32x32xbf16> to vector<8x32xbf16>
    "tpu.trace_start"() <{level = 10 : i32, message = "bqd,de->bqe"}> : () -> ()
    %cst_105 = arith.constant dense<0.000000e+00> : vector<2x8x32xf32>
    %266 = tpu.matmul %264, %265, %cst_105 {dimension_numbers = #tpu.dot_dimension_numbers<[2], [0], [0, 1], [1], [0, 0, 0, 1, 1, 1], [], []>} : vector<2x8x8xbf16>, vector<8x32xbf16>, vector<2x8x32xf32> -> vector<2x8x32xf32>
    "tpu.trace_stop"() : () -> ()
    %267 = arith.addf %245, %266 : vector<2x8x32xf32>
    %268 = vector.shape_cast %178 : vector<1x32xf32> to vector<1x1x32xf32>
    %269 = vector.broadcast %268 : vector<1x1x32xf32> to vector<2x8x32xf32>
    %270 = arith.addf %267, %269 : vector<2x8x32xf32>
    %c0_106 = arith.constant 0 : index
    %c0_107 = arith.constant 0 : index
    %c0_108 = arith.constant 0 : index
    %271 = vector.load %arg24[%c0_106, %c0_107, %c0_108] : memref<2x2x32xf32, #tpu.memory_space<vmem>>, vector<1x2x32xf32>
    %272 = vector.shape_cast %271 : vector<1x2x32xf32> to vector<2x32xf32>
    %273 = arith.addf %161, %270 : vector<2x8x32xf32>
    %cst_109 = arith.constant dense<0.000000e+00> : vector<2x8xf32>
    %274 = vector.multi_reduction <add>, %273, %cst_109 [2] : vector<2x8x32xf32> to vector<2x8xf32>
    %275 = vector.shape_cast %274 : vector<2x8xf32> to vector<2x8x1xf32>
    %cst_110 = arith.constant 3.200000e+01 : f32
    %276 = vector.broadcast %cst_110 : f32 to vector<2x8x1xf32>
    %277 = arith.divf %275, %276 : vector<2x8x1xf32>
    %278 = vector.broadcast %277 : vector<2x8x1xf32> to vector<2x8x32xf32>
    %279 = arith.subf %273, %278 : vector<2x8x32xf32>
    %280 = arith.mulf %279, %279 : vector<2x8x32xf32>
    %cst_111 = arith.constant dense<0.000000e+00> : vector<2x8xf32>
    %281 = vector.multi_reduction <add>, %280, %cst_111 [2] : vector<2x8x32xf32> to vector<2x8xf32>
    %282 = vector.shape_cast %281 : vector<2x8xf32> to vector<2x8x1xf32>
    %cst_112 = arith.constant 3.200000e+01 : f32
    %283 = vector.broadcast %cst_112 : f32 to vector<2x8x1xf32>
    %284 = arith.divf %282, %283 : vector<2x8x1xf32>
    %285 = vector.broadcast %277 : vector<2x8x1xf32> to vector<2x8x32xf32>
    %286 = arith.subf %273, %285 : vector<2x8x32xf32>
    %cst_113 = arith.constant 9.99999974E-6 : f32
    %287 = vector.broadcast %cst_113 : f32 to vector<2x8x1xf32>
    %288 = arith.addf %284, %287 : vector<2x8x1xf32>
    %289 = math.rsqrt %288 : vector<2x8x1xf32>
    %290 = vector.broadcast %289 : vector<2x8x1xf32> to vector<2x8x32xf32>
    %291 = arith.mulf %286, %290 : vector<2x8x32xf32>
    %292 = vector.extract_strided_slice %272 {offsets = [0, 0], sizes = [1, 32], strides = [1, 1]} : vector<2x32xf32> to vector<1x32xf32>
    %293 = vector.shape_cast %292 : vector<1x32xf32> to vector<1x1x32xf32>
    %294 = vector.broadcast %293 : vector<1x1x32xf32> to vector<2x8x32xf32>
    %295 = arith.mulf %291, %294 : vector<2x8x32xf32>
    %296 = vector.extract_strided_slice %272 {offsets = [1, 0], sizes = [1, 32], strides = [1, 1]} : vector<2x32xf32> to vector<1x32xf32>
    %297 = vector.shape_cast %296 : vector<1x32xf32> to vector<1x1x32xf32>
    %298 = vector.broadcast %297 : vector<1x1x32xf32> to vector<2x8x32xf32>
    %299 = arith.addf %295, %298 : vector<2x8x32xf32>
    %300 = arith.truncf %299 : vector<2x8x32xf32> to vector<2x8x32xbf16>
    %c0_114 = arith.constant 0 : index
    %c0_115 = arith.constant 0 : index
    %c0_116 = arith.constant 0 : index
    %301 = vector.load %arg19[%c0_114, %c0_115, %c0_116] : memref<2x32x64xbf16, #tpu.memory_space<vmem>>, vector<1x32x64xbf16>
    %302 = vector.shape_cast %301 : vector<1x32x64xbf16> to vector<32x64xbf16>
    %c0_117 = arith.constant 0 : index
    %c0_118 = arith.constant 0 : index
    %c0_119 = arith.constant 0 : index
    %303 = vector.load %arg20[%c0_117, %c0_118, %c0_119] : memref<2x1x64xf32, #tpu.memory_space<vmem>>, vector<1x1x64xf32>
    %304 = vector.shape_cast %303 : vector<1x1x64xf32> to vector<1x64xf32>
    "tpu.trace_start"() <{level = 10 : i32, message = "bsi,io->bso"}> : () -> ()
    %cst_120 = arith.constant dense<0.000000e+00> : vector<2x8x64xf32>
    %305 = tpu.matmul %300, %302, %cst_120 {dimension_numbers = #tpu.dot_dimension_numbers<[2], [0], [0, 1], [1], [0, 0, 0, 1, 1, 1], [], []>} : vector<2x8x32xbf16>, vector<32x64xbf16>, vector<2x8x64xf32> -> vector<2x8x64xf32>
    "tpu.trace_stop"() : () -> ()
    %306 = vector.shape_cast %304 : vector<1x64xf32> to vector<1x1x64xf32>
    %307 = vector.broadcast %306 : vector<1x1x64xf32> to vector<2x8x64xf32>
    %308 = arith.addf %305, %307 : vector<2x8x64xf32>
    %cst_121 = arith.constant 0.000000e+00 : f32
    %309 = vector.broadcast %cst_121 : f32 to vector<2x8x64xf32>
    %310 = arith.maximumf %308, %309 : vector<2x8x64xf32>
    %311 = arith.truncf %310 : vector<2x8x64xf32> to vector<2x8x64xbf16>
    %c0_122 = arith.constant 0 : index
    %c0_123 = arith.constant 0 : index
    %c0_124 = arith.constant 0 : index
    %312 = vector.load %arg21[%c0_122, %c0_123, %c0_124] : memref<2x64x32xbf16, #tpu.memory_space<vmem>>, vector<1x64x32xbf16>
    %313 = vector.shape_cast %312 : vector<1x64x32xbf16> to vector<64x32xbf16>
    %c0_125 = arith.constant 0 : index
    %c0_126 = arith.constant 0 : index
    %c0_127 = arith.constant 0 : index
    %314 = vector.load %arg22[%c0_125, %c0_126, %c0_127] : memref<2x1x32xf32, #tpu.memory_space<vmem>>, vector<1x1x32xf32>
    %315 = vector.shape_cast %314 : vector<1x1x32xf32> to vector<1x32xf32>
    "tpu.trace_start"() <{level = 10 : i32, message = "bsi,io->bso"}> : () -> ()
    %cst_128 = arith.constant dense<0.000000e+00> : vector<2x8x32xf32>
    %316 = tpu.matmul %311, %313, %cst_128 {dimension_numbers = #tpu.dot_dimension_numbers<[2], [0], [0, 1], [1], [0, 0, 0, 1, 1, 1], [], []>} : vector<2x8x64xbf16>, vector<64x32xbf16>, vector<2x8x32xf32> -> vector<2x8x32xf32>
    "tpu.trace_stop"() : () -> ()
    %317 = vector.shape_cast %315 : vector<1x32xf32> to vector<1x1x32xf32>
    %318 = vector.broadcast %317 : vector<1x1x32xf32> to vector<2x8x32xf32>
    %319 = arith.addf %316, %318 : vector<2x8x32xf32>
    %c0_129 = arith.constant 0 : index
    %c0_130 = arith.constant 0 : index
    %c0_131 = arith.constant 0 : index
    %320 = vector.load %arg25[%c0_129, %c0_130, %c0_131] : memref<2x2x32xf32, #tpu.memory_space<vmem>>, vector<1x2x32xf32>
    %321 = vector.shape_cast %320 : vector<1x2x32xf32> to vector<2x32xf32>
    %322 = arith.addf %299, %319 : vector<2x8x32xf32>
    %cst_132 = arith.constant dense<0.000000e+00> : vector<2x8xf32>
    %323 = vector.multi_reduction <add>, %322, %cst_132 [2] : vector<2x8x32xf32> to vector<2x8xf32>
    %324 = vector.shape_cast %323 : vector<2x8xf32> to vector<2x8x1xf32>
    %cst_133 = arith.constant 3.200000e+01 : f32
    %325 = vector.broadcast %cst_133 : f32 to vector<2x8x1xf32>
    %326 = arith.divf %324, %325 : vector<2x8x1xf32>
    %327 = vector.broadcast %326 : vector<2x8x1xf32> to vector<2x8x32xf32>
    %328 = arith.subf %322, %327 : vector<2x8x32xf32>
    %329 = arith.mulf %328, %328 : vector<2x8x32xf32>
    %cst_134 = arith.constant dense<0.000000e+00> : vector<2x8xf32>
    %330 = vector.multi_reduction <add>, %329, %cst_134 [2] : vector<2x8x32xf32> to vector<2x8xf32>
    %331 = vector.shape_cast %330 : vector<2x8xf32> to vector<2x8x1xf32>
    %cst_135 = arith.constant 3.200000e+01 : f32
    %332 = vector.broadcast %cst_135 : f32 to vector<2x8x1xf32>
    %333 = arith.divf %331, %332 : vector<2x8x1xf32>
    %334 = vector.broadcast %326 : vector<2x8x1xf32> to vector<2x8x32xf32>
    %335 = arith.subf %322, %334 : vector<2x8x32xf32>
    %cst_136 = arith.constant 9.99999974E-6 : f32
    %336 = vector.broadcast %cst_136 : f32 to vector<2x8x1xf32>
    %337 = arith.addf %333, %336 : vector<2x8x1xf32>
    %338 = math.rsqrt %337 : vector<2x8x1xf32>
    %339 = vector.broadcast %338 : vector<2x8x1xf32> to vector<2x8x32xf32>
    %340 = arith.mulf %335, %339 : vector<2x8x32xf32>
    %341 = vector.extract_strided_slice %321 {offsets = [0, 0], sizes = [1, 32], strides = [1, 1]} : vector<2x32xf32> to vector<1x32xf32>
    %342 = vector.shape_cast %341 : vector<1x32xf32> to vector<1x1x32xf32>
    %343 = vector.broadcast %342 : vector<1x1x32xf32> to vector<2x8x32xf32>
    %344 = arith.mulf %340, %343 : vector<2x8x32xf32>
    %345 = vector.extract_strided_slice %321 {offsets = [1, 0], sizes = [1, 32], strides = [1, 1]} : vector<2x32xf32> to vector<1x32xf32>
    %346 = vector.shape_cast %345 : vector<1x32xf32> to vector<1x1x32xf32>
    %347 = vector.broadcast %346 : vector<1x1x32xf32> to vector<2x8x32xf32>
    %348 = arith.addf %344, %347 : vector<2x8x32xf32>
    %349 = arith.addf %348, %1 : vector<2x8x32xf32>
    %350 = arith.truncf %349 : vector<2x8x32xf32> to vector<2x8x32xbf16>
    %c1 = arith.constant 1 : index
    %c0_137 = arith.constant 0 : index
    %c0_138 = arith.constant 0 : index
    %351 = vector.load %arg5[%c1, %c0_137, %c0_138] : memref<2x32x64xbf16, #tpu.memory_space<vmem>>, vector<1x32x64xbf16>
    %352 = vector.shape_cast %351 : vector<1x32x64xbf16> to vector<32x64xbf16>
    %c1_139 = arith.constant 1 : index
    %c0_140 = arith.constant 0 : index
    %c0_141 = arith.constant 0 : index
    %353 = vector.load %arg6[%c1_139, %c0_140, %c0_141] : memref<2x1x64xf32, #tpu.memory_space<vmem>>, vector<1x1x64xf32>
    %354 = vector.shape_cast %353 : vector<1x1x64xf32> to vector<1x64xf32>
    "tpu.trace_start"() <{level = 10 : i32, message = "bsi,io->bso"}> : () -> ()
    %cst_142 = arith.constant dense<0.000000e+00> : vector<2x8x64xf32>
    %355 = tpu.matmul %350, %352, %cst_142 {dimension_numbers = #tpu.dot_dimension_numbers<[2], [0], [0, 1], [1], [0, 0, 0, 1, 1, 1], [], []>} : vector<2x8x32xbf16>, vector<32x64xbf16>, vector<2x8x64xf32> -> vector<2x8x64xf32>
    "tpu.trace_stop"() : () -> ()
    %356 = vector.shape_cast %354 : vector<1x64xf32> to vector<1x1x64xf32>
    %357 = vector.broadcast %356 : vector<1x1x64xf32> to vector<2x8x64xf32>
    %358 = arith.addf %355, %357 : vector<2x8x64xf32>
    %359 = arith.truncf %358 : vector<2x8x64xf32> to vector<2x8x64xbf16>
    %360 = vector.extract_strided_slice %359 {offsets = [0, 0, 0], sizes = [2, 8, 32], strides = [1, 1, 1]} : vector<2x8x64xbf16> to vector<2x8x32xbf16>
    %361 = vector.extract_strided_slice %359 {offsets = [0, 0, 32], sizes = [2, 8, 32], strides = [1, 1, 1]} : vector<2x8x64xbf16> to vector<2x8x32xbf16>
    %362 = arith.truncf %348 : vector<2x8x32xf32> to vector<2x8x32xbf16>
    %c1_143 = arith.constant 1 : index
    %c0_144 = arith.constant 0 : index
    %c0_145 = arith.constant 0 : index
    %363 = vector.load %arg7[%c1_143, %c0_144, %c0_145] : memref<2x32x32xbf16, #tpu.memory_space<vmem>>, vector<1x32x32xbf16>
    %364 = vector.shape_cast %363 : vector<1x32x32xbf16> to vector<32x32xbf16>
    %c1_146 = arith.constant 1 : index
    %c0_147 = arith.constant 0 : index
    %c0_148 = arith.constant 0 : index
    %365 = vector.load %arg8[%c1_146, %c0_147, %c0_148] : memref<2x1x32xf32, #tpu.memory_space<vmem>>, vector<1x1x32xf32>
    %366 = vector.shape_cast %365 : vector<1x1x32xf32> to vector<1x32xf32>
    "tpu.trace_start"() <{level = 10 : i32, message = "bsi,io->bso"}> : () -> ()
    %cst_149 = arith.constant dense<0.000000e+00> : vector<2x8x32xf32>
    %367 = tpu.matmul %362, %364, %cst_149 {dimension_numbers = #tpu.dot_dimension_numbers<[2], [0], [0, 1], [1], [0, 0, 0, 1, 1, 1], [], []>} : vector<2x8x32xbf16>, vector<32x32xbf16>, vector<2x8x32xf32> -> vector<2x8x32xf32>
    "tpu.trace_stop"() : () -> ()
    %368 = vector.shape_cast %366 : vector<1x32xf32> to vector<1x1x32xf32>
    %369 = vector.broadcast %368 : vector<1x1x32xf32> to vector<2x8x32xf32>
    %370 = arith.addf %367, %369 : vector<2x8x32xf32>
    %371 = arith.truncf %370 : vector<2x8x32xf32> to vector<2x8x32xbf16>
    %c1_150 = arith.constant 1 : index
    %c0_151 = arith.constant 0 : index
    %c0_152 = arith.constant 0 : index
    %372 = vector.load %arg9[%c1_150, %c0_151, %c0_152] : memref<2x32x32xbf16, #tpu.memory_space<vmem>>, vector<1x32x32xbf16>
    %373 = vector.shape_cast %372 : vector<1x32x32xbf16> to vector<32x32xbf16>
    %c1_153 = arith.constant 1 : index
    %c0_154 = arith.constant 0 : index
    %c0_155 = arith.constant 0 : index
    %374 = vector.load %arg10[%c1_153, %c0_154, %c0_155] : memref<2x1x32xf32, #tpu.memory_space<vmem>>, vector<1x1x32xf32>
    %375 = vector.shape_cast %374 : vector<1x1x32xf32> to vector<1x32xf32>
    %cst_156 = arith.constant 0.000000e+00 : f32
    %376 = vector.broadcast %cst_156 : f32 to vector<2x8x32xf32>
    %377 = vector.extract_strided_slice %360 {offsets = [0, 0, 0], sizes = [2, 8, 8], strides = [1, 1, 1]} : vector<2x8x32xbf16> to vector<2x8x8xbf16>
    %378 = vector.extract_strided_slice %361 {offsets = [0, 0, 0], sizes = [2, 8, 8], strides = [1, 1, 1]} : vector<2x8x32xbf16> to vector<2x8x8xbf16>
    "tpu.trace_start"() <{level = 10 : i32, message = "bqd,bkd->bqk"}> : () -> ()
    %cst_157 = arith.constant dense<0.000000e+00> : vector<2x8x8xf32>
    %379 = tpu.matmul %377, %378, %cst_157 {dimension_numbers = #tpu.dot_dimension_numbers<[2], [2], [1], [1], [0, 0, 0, 1, 1, 1], [0], [0]>} : vector<2x8x8xbf16>, vector<2x8x8xbf16>, vector<2x8x8xf32> -> vector<2x8x8xf32>
    "tpu.trace_stop"() : () -> ()
    %cst_158 = arith.constant dense<0xFF800000> : vector<2x8xf32>
    %380 = vector.multi_reduction <maximumf>, %379, %cst_158 [2] : vector<2x8x8xf32> to vector<2x8xf32>
    %381 = vector.shape_cast %380 : vector<2x8xf32> to vector<2x8x1xf32>
    %382 = vector.broadcast %381 : vector<2x8x1xf32> to vector<2x8x8xf32>
    %383 = arith.subf %379, %382 : vector<2x8x8xf32>
    %384 = math.exp %383 : vector<2x8x8xf32>
    %cst_159 = arith.constant dense<0.000000e+00> : vector<2x8xf32>
    %385 = vector.multi_reduction <add>, %384, %cst_159 [2] : vector<2x8x8xf32> to vector<2x8xf32>
    %386 = vector.shape_cast %385 : vector<2x8xf32> to vector<2x8x1xf32>
    %387 = arith.truncf %384 : vector<2x8x8xf32> to vector<2x8x8xbf16>
    %388 = vector.extract_strided_slice %371 {offsets = [0, 0, 0], sizes = [2, 8, 8], strides = [1, 1, 1]} : vector<2x8x32xbf16> to vector<2x8x8xbf16>
    "tpu.trace_start"() <{level = 10 : i32, message = "bqk,bkd->bqd"}> : () -> ()
    %cst_160 = arith.constant dense<0.000000e+00> : vector<2x8x8xf32>
    %389 = tpu.matmul %387, %388, %cst_160 {dimension_numbers = #tpu.dot_dimension_numbers<[2], [1], [1], [2], [0, 0, 0, 1, 1, 2], [0], [0]>} : vector<2x8x8xbf16>, vector<2x8x8xbf16>, vector<2x8x8xf32> -> vector<2x8x8xf32>
    "tpu.trace_stop"() : () -> ()
    %390 = tpu.reciprocal %386 {approx = true} : vector<2x8x1xf32> -> vector<2x8x1xf32>
    %391 = vector.broadcast %390 : vector<2x8x1xf32> to vector<2x8x8xf32>
    %392 = arith.mulf %389, %391 : vector<2x8x8xf32>
    %393 = arith.truncf %392 : vector<2x8x8xf32> to vector<2x8x8xbf16>
    %394 = vector.extract_strided_slice %373 {offsets = [0, 0], sizes = [8, 32], strides = [1, 1]} : vector<32x32xbf16> to vector<8x32xbf16>
    "tpu.trace_start"() <{level = 10 : i32, message = "bqd,de->bqe"}> : () -> ()
    %cst_161 = arith.constant dense<0.000000e+00> : vector<2x8x32xf32>
    %395 = tpu.matmul %393, %394, %cst_161 {dimension_numbers = #tpu.dot_dimension_numbers<[2], [0], [0, 1], [1], [0, 0, 0, 1, 1, 1], [], []>} : vector<2x8x8xbf16>, vector<8x32xbf16>, vector<2x8x32xf32> -> vector<2x8x32xf32>
    "tpu.trace_stop"() : () -> ()
    %396 = arith.addf %376, %395 : vector<2x8x32xf32>
    %397 = vector.extract_strided_slice %360 {offsets = [0, 0, 8], sizes = [2, 8, 8], strides = [1, 1, 1]} : vector<2x8x32xbf16> to vector<2x8x8xbf16>
    %398 = vector.extract_strided_slice %361 {offsets = [0, 0, 8], sizes = [2, 8, 8], strides = [1, 1, 1]} : vector<2x8x32xbf16> to vector<2x8x8xbf16>
    "tpu.trace_start"() <{level = 10 : i32, message = "bqd,bkd->bqk"}> : () -> ()
    %cst_162 = arith.constant dense<0.000000e+00> : vector<2x8x8xf32>
    %399 = tpu.matmul %397, %398, %cst_162 {dimension_numbers = #tpu.dot_dimension_numbers<[2], [2], [1], [1], [0, 0, 0, 1, 1, 1], [0], [0]>} : vector<2x8x8xbf16>, vector<2x8x8xbf16>, vector<2x8x8xf32> -> vector<2x8x8xf32>
    "tpu.trace_stop"() : () -> ()
    %cst_163 = arith.constant dense<0xFF800000> : vector<2x8xf32>
    %400 = vector.multi_reduction <maximumf>, %399, %cst_163 [2] : vector<2x8x8xf32> to vector<2x8xf32>
    %401 = vector.shape_cast %400 : vector<2x8xf32> to vector<2x8x1xf32>
    %402 = vector.broadcast %401 : vector<2x8x1xf32> to vector<2x8x8xf32>
    %403 = arith.subf %399, %402 : vector<2x8x8xf32>
    %404 = math.exp %403 : vector<2x8x8xf32>
    %cst_164 = arith.constant dense<0.000000e+00> : vector<2x8xf32>
    %405 = vector.multi_reduction <add>, %404, %cst_164 [2] : vector<2x8x8xf32> to vector<2x8xf32>
    %406 = vector.shape_cast %405 : vector<2x8xf32> to vector<2x8x1xf32>
    %407 = arith.truncf %404 : vector<2x8x8xf32> to vector<2x8x8xbf16>
    %408 = vector.extract_strided_slice %371 {offsets = [0, 0, 8], sizes = [2, 8, 8], strides = [1, 1, 1]} : vector<2x8x32xbf16> to vector<2x8x8xbf16>
    "tpu.trace_start"() <{level = 10 : i32, message = "bqk,bkd->bqd"}> : () -> ()
    %cst_165 = arith.constant dense<0.000000e+00> : vector<2x8x8xf32>
    %409 = tpu.matmul %407, %408, %cst_165 {dimension_numbers = #tpu.dot_dimension_numbers<[2], [1], [1], [2], [0, 0, 0, 1, 1, 2], [0], [0]>} : vector<2x8x8xbf16>, vector<2x8x8xbf16>, vector<2x8x8xf32> -> vector<2x8x8xf32>
    "tpu.trace_stop"() : () -> ()
    %410 = tpu.reciprocal %406 {approx = true} : vector<2x8x1xf32> -> vector<2x8x1xf32>
    %411 = vector.broadcast %410 : vector<2x8x1xf32> to vector<2x8x8xf32>
    %412 = arith.mulf %409, %411 : vector<2x8x8xf32>
    %413 = arith.truncf %412 : vector<2x8x8xf32> to vector<2x8x8xbf16>
    %414 = vector.extract_strided_slice %373 {offsets = [8, 0], sizes = [8, 32], strides = [1, 1]} : vector<32x32xbf16> to vector<8x32xbf16>
    "tpu.trace_start"() <{level = 10 : i32, message = "bqd,de->bqe"}> : () -> ()
    %cst_166 = arith.constant dense<0.000000e+00> : vector<2x8x32xf32>
    %415 = tpu.matmul %413, %414, %cst_166 {dimension_numbers = #tpu.dot_dimension_numbers<[2], [0], [0, 1], [1], [0, 0, 0, 1, 1, 1], [], []>} : vector<2x8x8xbf16>, vector<8x32xbf16>, vector<2x8x32xf32> -> vector<2x8x32xf32>
    "tpu.trace_stop"() : () -> ()
    %416 = arith.addf %396, %415 : vector<2x8x32xf32>
    %417 = vector.extract_strided_slice %360 {offsets = [0, 0, 16], sizes = [2, 8, 8], strides = [1, 1, 1]} : vector<2x8x32xbf16> to vector<2x8x8xbf16>
    %418 = vector.extract_strided_slice %361 {offsets = [0, 0, 16], sizes = [2, 8, 8], strides = [1, 1, 1]} : vector<2x8x32xbf16> to vector<2x8x8xbf16>
    "tpu.trace_start"() <{level = 10 : i32, message = "bqd,bkd->bqk"}> : () -> ()
    %cst_167 = arith.constant dense<0.000000e+00> : vector<2x8x8xf32>
    %419 = tpu.matmul %417, %418, %cst_167 {dimension_numbers = #tpu.dot_dimension_numbers<[2], [2], [1], [1], [0, 0, 0, 1, 1, 1], [0], [0]>} : vector<2x8x8xbf16>, vector<2x8x8xbf16>, vector<2x8x8xf32> -> vector<2x8x8xf32>
    "tpu.trace_stop"() : () -> ()
    %cst_168 = arith.constant dense<0xFF800000> : vector<2x8xf32>
    %420 = vector.multi_reduction <maximumf>, %419, %cst_168 [2] : vector<2x8x8xf32> to vector<2x8xf32>
    %421 = vector.shape_cast %420 : vector<2x8xf32> to vector<2x8x1xf32>
    %422 = vector.broadcast %421 : vector<2x8x1xf32> to vector<2x8x8xf32>
    %423 = arith.subf %419, %422 : vector<2x8x8xf32>
    %424 = math.exp %423 : vector<2x8x8xf32>
    %cst_169 = arith.constant dense<0.000000e+00> : vector<2x8xf32>
    %425 = vector.multi_reduction <add>, %424, %cst_169 [2] : vector<2x8x8xf32> to vector<2x8xf32>
    %426 = vector.shape_cast %425 : vector<2x8xf32> to vector<2x8x1xf32>
    %427 = arith.truncf %424 : vector<2x8x8xf32> to vector<2x8x8xbf16>
    %428 = vector.extract_strided_slice %371 {offsets = [0, 0, 16], sizes = [2, 8, 8], strides = [1, 1, 1]} : vector<2x8x32xbf16> to vector<2x8x8xbf16>
    "tpu.trace_start"() <{level = 10 : i32, message = "bqk,bkd->bqd"}> : () -> ()
    %cst_170 = arith.constant dense<0.000000e+00> : vector<2x8x8xf32>
    %429 = tpu.matmul %427, %428, %cst_170 {dimension_numbers = #tpu.dot_dimension_numbers<[2], [1], [1], [2], [0, 0, 0, 1, 1, 2], [0], [0]>} : vector<2x8x8xbf16>, vector<2x8x8xbf16>, vector<2x8x8xf32> -> vector<2x8x8xf32>
    "tpu.trace_stop"() : () -> ()
    %430 = tpu.reciprocal %426 {approx = true} : vector<2x8x1xf32> -> vector<2x8x1xf32>
    %431 = vector.broadcast %430 : vector<2x8x1xf32> to vector<2x8x8xf32>
    %432 = arith.mulf %429, %431 : vector<2x8x8xf32>
    %433 = arith.truncf %432 : vector<2x8x8xf32> to vector<2x8x8xbf16>
    %434 = vector.extract_strided_slice %373 {offsets = [16, 0], sizes = [8, 32], strides = [1, 1]} : vector<32x32xbf16> to vector<8x32xbf16>
    "tpu.trace_start"() <{level = 10 : i32, message = "bqd,de->bqe"}> : () -> ()
    %cst_171 = arith.constant dense<0.000000e+00> : vector<2x8x32xf32>
    %435 = tpu.matmul %433, %434, %cst_171 {dimension_numbers = #tpu.dot_dimension_numbers<[2], [0], [0, 1], [1], [0, 0, 0, 1, 1, 1], [], []>} : vector<2x8x8xbf16>, vector<8x32xbf16>, vector<2x8x32xf32> -> vector<2x8x32xf32>
    "tpu.trace_stop"() : () -> ()
    %436 = arith.addf %416, %435 : vector<2x8x32xf32>
    %437 = vector.extract_strided_slice %360 {offsets = [0, 0, 24], sizes = [2, 8, 8], strides = [1, 1, 1]} : vector<2x8x32xbf16> to vector<2x8x8xbf16>
    %438 = vector.extract_strided_slice %361 {offsets = [0, 0, 24], sizes = [2, 8, 8], strides = [1, 1, 1]} : vector<2x8x32xbf16> to vector<2x8x8xbf16>
    "tpu.trace_start"() <{level = 10 : i32, message = "bqd,bkd->bqk"}> : () -> ()
    %cst_172 = arith.constant dense<0.000000e+00> : vector<2x8x8xf32>
    %439 = tpu.matmul %437, %438, %cst_172 {dimension_numbers = #tpu.dot_dimension_numbers<[2], [2], [1], [1], [0, 0, 0, 1, 1, 1], [0], [0]>} : vector<2x8x8xbf16>, vector<2x8x8xbf16>, vector<2x8x8xf32> -> vector<2x8x8xf32>
    "tpu.trace_stop"() : () -> ()
    %cst_173 = arith.constant dense<0xFF800000> : vector<2x8xf32>
    %440 = vector.multi_reduction <maximumf>, %439, %cst_173 [2] : vector<2x8x8xf32> to vector<2x8xf32>
    %441 = vector.shape_cast %440 : vector<2x8xf32> to vector<2x8x1xf32>
    %442 = vector.broadcast %441 : vector<2x8x1xf32> to vector<2x8x8xf32>
    %443 = arith.subf %439, %442 : vector<2x8x8xf32>
    %444 = math.exp %443 : vector<2x8x8xf32>
    %cst_174 = arith.constant dense<0.000000e+00> : vector<2x8xf32>
    %445 = vector.multi_reduction <add>, %444, %cst_174 [2] : vector<2x8x8xf32> to vector<2x8xf32>
    %446 = vector.shape_cast %445 : vector<2x8xf32> to vector<2x8x1xf32>
    %447 = arith.truncf %444 : vector<2x8x8xf32> to vector<2x8x8xbf16>
    %448 = vector.extract_strided_slice %371 {offsets = [0, 0, 24], sizes = [2, 8, 8], strides = [1, 1, 1]} : vector<2x8x32xbf16> to vector<2x8x8xbf16>
    "tpu.trace_start"() <{level = 10 : i32, message = "bqk,bkd->bqd"}> : () -> ()
    %cst_175 = arith.constant dense<0.000000e+00> : vector<2x8x8xf32>
    %449 = tpu.matmul %447, %448, %cst_175 {dimension_numbers = #tpu.dot_dimension_numbers<[2], [1], [1], [2], [0, 0, 0, 1, 1, 2], [0], [0]>} : vector<2x8x8xbf16>, vector<2x8x8xbf16>, vector<2x8x8xf32> -> vector<2x8x8xf32>
    "tpu.trace_stop"() : () -> ()
    %450 = tpu.reciprocal %446 {approx = true} : vector<2x8x1xf32> -> vector<2x8x1xf32>
    %451 = vector.broadcast %450 : vector<2x8x1xf32> to vector<2x8x8xf32>
    %452 = arith.mulf %449, %451 : vector<2x8x8xf32>
    %453 = arith.truncf %452 : vector<2x8x8xf32> to vector<2x8x8xbf16>
    %454 = vector.extract_strided_slice %373 {offsets = [24, 0], sizes = [8, 32], strides = [1, 1]} : vector<32x32xbf16> to vector<8x32xbf16>
    "tpu.trace_start"() <{level = 10 : i32, message = "bqd,de->bqe"}> : () -> ()
    %cst_176 = arith.constant dense<0.000000e+00> : vector<2x8x32xf32>
    %455 = tpu.matmul %453, %454, %cst_176 {dimension_numbers = #tpu.dot_dimension_numbers<[2], [0], [0, 1], [1], [0, 0, 0, 1, 1, 1], [], []>} : vector<2x8x8xbf16>, vector<8x32xbf16>, vector<2x8x32xf32> -> vector<2x8x32xf32>
    "tpu.trace_stop"() : () -> ()
    %456 = arith.addf %436, %455 : vector<2x8x32xf32>
    %457 = vector.shape_cast %375 : vector<1x32xf32> to vector<1x1x32xf32>
    %458 = vector.broadcast %457 : vector<1x1x32xf32> to vector<2x8x32xf32>
    %459 = arith.addf %456, %458 : vector<2x8x32xf32>
    %c1_177 = arith.constant 1 : index
    %c0_178 = arith.constant 0 : index
    %c0_179 = arith.constant 0 : index
    %460 = vector.load %arg23[%c1_177, %c0_178, %c0_179] : memref<2x2x32xf32, #tpu.memory_space<vmem>>, vector<1x2x32xf32>
    %461 = vector.shape_cast %460 : vector<1x2x32xf32> to vector<2x32xf32>
    %462 = arith.addf %348, %459 : vector<2x8x32xf32>
    %cst_180 = arith.constant dense<0.000000e+00> : vector<2x8xf32>
    %463 = vector.multi_reduction <add>, %462, %cst_180 [2] : vector<2x8x32xf32> to vector<2x8xf32>
    %464 = vector.shape_cast %463 : vector<2x8xf32> to vector<2x8x1xf32>
    %cst_181 = arith.constant 3.200000e+01 : f32
    %465 = vector.broadcast %cst_181 : f32 to vector<2x8x1xf32>
    %466 = arith.divf %464, %465 : vector<2x8x1xf32>
    %467 = vector.broadcast %466 : vector<2x8x1xf32> to vector<2x8x32xf32>
    %468 = arith.subf %462, %467 : vector<2x8x32xf32>
    %469 = arith.mulf %468, %468 : vector<2x8x32xf32>
    %cst_182 = arith.constant dense<0.000000e+00> : vector<2x8xf32>
    %470 = vector.multi_reduction <add>, %469, %cst_182 [2] : vector<2x8x32xf32> to vector<2x8xf32>
    %471 = vector.shape_cast %470 : vector<2x8xf32> to vector<2x8x1xf32>
    %cst_183 = arith.constant 3.200000e+01 : f32
    %472 = vector.broadcast %cst_183 : f32 to vector<2x8x1xf32>
    %473 = arith.divf %471, %472 : vector<2x8x1xf32>
    %474 = vector.broadcast %466 : vector<2x8x1xf32> to vector<2x8x32xf32>
    %475 = arith.subf %462, %474 : vector<2x8x32xf32>
    %cst_184 = arith.constant 9.99999974E-6 : f32
    %476 = vector.broadcast %cst_184 : f32 to vector<2x8x1xf32>
    %477 = arith.addf %473, %476 : vector<2x8x1xf32>
    %478 = math.rsqrt %477 : vector<2x8x1xf32>
    %479 = vector.broadcast %478 : vector<2x8x1xf32> to vector<2x8x32xf32>
    %480 = arith.mulf %475, %479 : vector<2x8x32xf32>
    %481 = vector.extract_strided_slice %461 {offsets = [0, 0], sizes = [1, 32], strides = [1, 1]} : vector<2x32xf32> to vector<1x32xf32>
    %482 = vector.shape_cast %481 : vector<1x32xf32> to vector<1x1x32xf32>
    %483 = vector.broadcast %482 : vector<1x1x32xf32> to vector<2x8x32xf32>
    %484 = arith.mulf %480, %483 : vector<2x8x32xf32>
    %485 = vector.extract_strided_slice %461 {offsets = [1, 0], sizes = [1, 32], strides = [1, 1]} : vector<2x32xf32> to vector<1x32xf32>
    %486 = vector.shape_cast %485 : vector<1x32xf32> to vector<1x1x32xf32>
    %487 = vector.broadcast %486 : vector<1x1x32xf32> to vector<2x8x32xf32>
    %488 = arith.addf %484, %487 : vector<2x8x32xf32>
    %489 = arith.addf %488, %1 : vector<2x8x32xf32>
    %490 = arith.truncf %489 : vector<2x8x32xf32> to vector<2x8x32xbf16>
    %c1_185 = arith.constant 1 : index
    %c0_186 = arith.constant 0 : index
    %c0_187 = arith.constant 0 : index
    %491 = vector.load %arg11[%c1_185, %c0_186, %c0_187] : memref<2x32x32xbf16, #tpu.memory_space<vmem>>, vector<1x32x32xbf16>
    %492 = vector.shape_cast %491 : vector<1x32x32xbf16> to vector<32x32xbf16>
    %c1_188 = arith.constant 1 : index
    %c0_189 = arith.constant 0 : index
    %c0_190 = arith.constant 0 : index
    %493 = vector.load %arg12[%c1_188, %c0_189, %c0_190] : memref<2x1x32xf32, #tpu.memory_space<vmem>>, vector<1x1x32xf32>
    %494 = vector.shape_cast %493 : vector<1x1x32xf32> to vector<1x32xf32>
    "tpu.trace_start"() <{level = 10 : i32, message = "bsi,io->bso"}> : () -> ()
    %cst_191 = arith.constant dense<0.000000e+00> : vector<2x8x32xf32>
    %495 = tpu.matmul %490, %492, %cst_191 {dimension_numbers = #tpu.dot_dimension_numbers<[2], [0], [0, 1], [1], [0, 0, 0, 1, 1, 1], [], []>} : vector<2x8x32xbf16>, vector<32x32xbf16>, vector<2x8x32xf32> -> vector<2x8x32xf32>
    "tpu.trace_stop"() : () -> ()
    %496 = vector.shape_cast %494 : vector<1x32xf32> to vector<1x1x32xf32>
    %497 = vector.broadcast %496 : vector<1x1x32xf32> to vector<2x8x32xf32>
    %498 = arith.addf %495, %497 : vector<2x8x32xf32>
    %499 = arith.truncf %498 : vector<2x8x32xf32> to vector<2x8x32xbf16>
    %500 = vector.extract_strided_slice %14 {offsets = [0, 0, 32], sizes = [2, 64, 32], strides = [1, 1, 1]} : vector<2x64x64xbf16> to vector<2x64x32xbf16>
    %501 = vector.extract_strided_slice %21 {offsets = [0, 0, 32], sizes = [2, 64, 32], strides = [1, 1, 1]} : vector<2x64x64xbf16> to vector<2x64x32xbf16>
    %c1_192 = arith.constant 1 : index
    %c0_193 = arith.constant 0 : index
    %c0_194 = arith.constant 0 : index
    %502 = vector.load %arg17[%c1_192, %c0_193, %c0_194] : memref<2x32x32xbf16, #tpu.memory_space<vmem>>, vector<1x32x32xbf16>
    %503 = vector.shape_cast %502 : vector<1x32x32xbf16> to vector<32x32xbf16>
    %c1_195 = arith.constant 1 : index
    %c0_196 = arith.constant 0 : index
    %c0_197 = arith.constant 0 : index
    %504 = vector.load %arg18[%c1_195, %c0_196, %c0_197] : memref<2x1x32xf32, #tpu.memory_space<vmem>>, vector<1x1x32xf32>
    %505 = vector.shape_cast %504 : vector<1x1x32xf32> to vector<1x32xf32>
    %cst_198 = arith.constant 0.000000e+00 : f32
    %506 = vector.broadcast %cst_198 : f32 to vector<2x8x32xf32>
    %507 = vector.extract_strided_slice %499 {offsets = [0, 0, 0], sizes = [2, 8, 8], strides = [1, 1, 1]} : vector<2x8x32xbf16> to vector<2x8x8xbf16>
    %508 = vector.extract_strided_slice %500 {offsets = [0, 0, 0], sizes = [2, 64, 8], strides = [1, 1, 1]} : vector<2x64x32xbf16> to vector<2x64x8xbf16>
    "tpu.trace_start"() <{level = 10 : i32, message = "bqd,bkd->bqk"}> : () -> ()
    %cst_199 = arith.constant dense<0.000000e+00> : vector<2x8x64xf32>
    %509 = tpu.matmul %507, %508, %cst_199 {dimension_numbers = #tpu.dot_dimension_numbers<[2], [2], [1], [1], [0, 0, 0, 1, 1, 1], [0], [0]>} : vector<2x8x8xbf16>, vector<2x64x8xbf16>, vector<2x8x64xf32> -> vector<2x8x64xf32>
    "tpu.trace_stop"() : () -> ()
    %510 = vector.broadcast %7 : vector<2x1x64xf32> to vector<2x8x64xf32>
    %511 = arith.addf %509, %510 : vector<2x8x64xf32>
    %cst_200 = arith.constant dense<0xFF800000> : vector<2x8xf32>
    %512 = vector.multi_reduction <maximumf>, %511, %cst_200 [2] : vector<2x8x64xf32> to vector<2x8xf32>
    %513 = vector.shape_cast %512 : vector<2x8xf32> to vector<2x8x1xf32>
    %514 = vector.broadcast %513 : vector<2x8x1xf32> to vector<2x8x64xf32>
    %515 = arith.subf %511, %514 : vector<2x8x64xf32>
    %516 = math.exp %515 : vector<2x8x64xf32>
    %cst_201 = arith.constant dense<0.000000e+00> : vector<2x8xf32>
    %517 = vector.multi_reduction <add>, %516, %cst_201 [2] : vector<2x8x64xf32> to vector<2x8xf32>
    %518 = vector.shape_cast %517 : vector<2x8xf32> to vector<2x8x1xf32>
    %519 = arith.truncf %516 : vector<2x8x64xf32> to vector<2x8x64xbf16>
    %520 = vector.extract_strided_slice %501 {offsets = [0, 0, 0], sizes = [2, 64, 8], strides = [1, 1, 1]} : vector<2x64x32xbf16> to vector<2x64x8xbf16>
    "tpu.trace_start"() <{level = 10 : i32, message = "bqk,bkd->bqd"}> : () -> ()
    %cst_202 = arith.constant dense<0.000000e+00> : vector<2x8x8xf32>
    %521 = tpu.matmul %519, %520, %cst_202 {dimension_numbers = #tpu.dot_dimension_numbers<[2], [1], [1], [2], [0, 0, 0, 1, 1, 2], [0], [0]>} : vector<2x8x64xbf16>, vector<2x64x8xbf16>, vector<2x8x8xf32> -> vector<2x8x8xf32>
    "tpu.trace_stop"() : () -> ()
    %522 = tpu.reciprocal %518 {approx = true} : vector<2x8x1xf32> -> vector<2x8x1xf32>
    %523 = vector.broadcast %522 : vector<2x8x1xf32> to vector<2x8x8xf32>
    %524 = arith.mulf %521, %523 : vector<2x8x8xf32>
    %525 = arith.truncf %524 : vector<2x8x8xf32> to vector<2x8x8xbf16>
    %526 = vector.extract_strided_slice %503 {offsets = [0, 0], sizes = [8, 32], strides = [1, 1]} : vector<32x32xbf16> to vector<8x32xbf16>
    "tpu.trace_start"() <{level = 10 : i32, message = "bqd,de->bqe"}> : () -> ()
    %cst_203 = arith.constant dense<0.000000e+00> : vector<2x8x32xf32>
    %527 = tpu.matmul %525, %526, %cst_203 {dimension_numbers = #tpu.dot_dimension_numbers<[2], [0], [0, 1], [1], [0, 0, 0, 1, 1, 1], [], []>} : vector<2x8x8xbf16>, vector<8x32xbf16>, vector<2x8x32xf32> -> vector<2x8x32xf32>
    "tpu.trace_stop"() : () -> ()
    %528 = arith.addf %506, %527 : vector<2x8x32xf32>
    %529 = vector.extract_strided_slice %499 {offsets = [0, 0, 8], sizes = [2, 8, 8], strides = [1, 1, 1]} : vector<2x8x32xbf16> to vector<2x8x8xbf16>
    %530 = vector.extract_strided_slice %500 {offsets = [0, 0, 8], sizes = [2, 64, 8], strides = [1, 1, 1]} : vector<2x64x32xbf16> to vector<2x64x8xbf16>
    "tpu.trace_start"() <{level = 10 : i32, message = "bqd,bkd->bqk"}> : () -> ()
    %cst_204 = arith.constant dense<0.000000e+00> : vector<2x8x64xf32>
    %531 = tpu.matmul %529, %530, %cst_204 {dimension_numbers = #tpu.dot_dimension_numbers<[2], [2], [1], [1], [0, 0, 0, 1, 1, 1], [0], [0]>} : vector<2x8x8xbf16>, vector<2x64x8xbf16>, vector<2x8x64xf32> -> vector<2x8x64xf32>
    "tpu.trace_stop"() : () -> ()
    %532 = vector.broadcast %7 : vector<2x1x64xf32> to vector<2x8x64xf32>
    %533 = arith.addf %531, %532 : vector<2x8x64xf32>
    %cst_205 = arith.constant dense<0xFF800000> : vector<2x8xf32>
    %534 = vector.multi_reduction <maximumf>, %533, %cst_205 [2] : vector<2x8x64xf32> to vector<2x8xf32>
    %535 = vector.shape_cast %534 : vector<2x8xf32> to vector<2x8x1xf32>
    %536 = vector.broadcast %535 : vector<2x8x1xf32> to vector<2x8x64xf32>
    %537 = arith.subf %533, %536 : vector<2x8x64xf32>
    %538 = math.exp %537 : vector<2x8x64xf32>
    %cst_206 = arith.constant dense<0.000000e+00> : vector<2x8xf32>
    %539 = vector.multi_reduction <add>, %538, %cst_206 [2] : vector<2x8x64xf32> to vector<2x8xf32>
    %540 = vector.shape_cast %539 : vector<2x8xf32> to vector<2x8x1xf32>
    %541 = arith.truncf %538 : vector<2x8x64xf32> to vector<2x8x64xbf16>
    %542 = vector.extract_strided_slice %501 {offsets = [0, 0, 8], sizes = [2, 64, 8], strides = [1, 1, 1]} : vector<2x64x32xbf16> to vector<2x64x8xbf16>
    "tpu.trace_start"() <{level = 10 : i32, message = "bqk,bkd->bqd"}> : () -> ()
    %cst_207 = arith.constant dense<0.000000e+00> : vector<2x8x8xf32>
    %543 = tpu.matmul %541, %542, %cst_207 {dimension_numbers = #tpu.dot_dimension_numbers<[2], [1], [1], [2], [0, 0, 0, 1, 1, 2], [0], [0]>} : vector<2x8x64xbf16>, vector<2x64x8xbf16>, vector<2x8x8xf32> -> vector<2x8x8xf32>
    "tpu.trace_stop"() : () -> ()
    %544 = tpu.reciprocal %540 {approx = true} : vector<2x8x1xf32> -> vector<2x8x1xf32>
    %545 = vector.broadcast %544 : vector<2x8x1xf32> to vector<2x8x8xf32>
    %546 = arith.mulf %543, %545 : vector<2x8x8xf32>
    %547 = arith.truncf %546 : vector<2x8x8xf32> to vector<2x8x8xbf16>
    %548 = vector.extract_strided_slice %503 {offsets = [8, 0], sizes = [8, 32], strides = [1, 1]} : vector<32x32xbf16> to vector<8x32xbf16>
    "tpu.trace_start"() <{level = 10 : i32, message = "bqd,de->bqe"}> : () -> ()
    %cst_208 = arith.constant dense<0.000000e+00> : vector<2x8x32xf32>
    %549 = tpu.matmul %547, %548, %cst_208 {dimension_numbers = #tpu.dot_dimension_numbers<[2], [0], [0, 1], [1], [0, 0, 0, 1, 1, 1], [], []>} : vector<2x8x8xbf16>, vector<8x32xbf16>, vector<2x8x32xf32> -> vector<2x8x32xf32>
    "tpu.trace_stop"() : () -> ()
    %550 = arith.addf %528, %549 : vector<2x8x32xf32>
    %551 = vector.extract_strided_slice %499 {offsets = [0, 0, 16], sizes = [2, 8, 8], strides = [1, 1, 1]} : vector<2x8x32xbf16> to vector<2x8x8xbf16>
    %552 = vector.extract_strided_slice %500 {offsets = [0, 0, 16], sizes = [2, 64, 8], strides = [1, 1, 1]} : vector<2x64x32xbf16> to vector<2x64x8xbf16>
    "tpu.trace_start"() <{level = 10 : i32, message = "bqd,bkd->bqk"}> : () -> ()
    %cst_209 = arith.constant dense<0.000000e+00> : vector<2x8x64xf32>
    %553 = tpu.matmul %551, %552, %cst_209 {dimension_numbers = #tpu.dot_dimension_numbers<[2], [2], [1], [1], [0, 0, 0, 1, 1, 1], [0], [0]>} : vector<2x8x8xbf16>, vector<2x64x8xbf16>, vector<2x8x64xf32> -> vector<2x8x64xf32>
    "tpu.trace_stop"() : () -> ()
    %554 = vector.broadcast %7 : vector<2x1x64xf32> to vector<2x8x64xf32>
    %555 = arith.addf %553, %554 : vector<2x8x64xf32>
    %cst_210 = arith.constant dense<0xFF800000> : vector<2x8xf32>
    %556 = vector.multi_reduction <maximumf>, %555, %cst_210 [2] : vector<2x8x64xf32> to vector<2x8xf32>
    %557 = vector.shape_cast %556 : vector<2x8xf32> to vector<2x8x1xf32>
    %558 = vector.broadcast %557 : vector<2x8x1xf32> to vector<2x8x64xf32>
    %559 = arith.subf %555, %558 : vector<2x8x64xf32>
    %560 = math.exp %559 : vector<2x8x64xf32>
    %cst_211 = arith.constant dense<0.000000e+00> : vector<2x8xf32>
    %561 = vector.multi_reduction <add>, %560, %cst_211 [2] : vector<2x8x64xf32> to vector<2x8xf32>
    %562 = vector.shape_cast %561 : vector<2x8xf32> to vector<2x8x1xf32>
    %563 = arith.truncf %560 : vector<2x8x64xf32> to vector<2x8x64xbf16>
    %564 = vector.extract_strided_slice %501 {offsets = [0, 0, 16], sizes = [2, 64, 8], strides = [1, 1, 1]} : vector<2x64x32xbf16> to vector<2x64x8xbf16>
    "tpu.trace_start"() <{level = 10 : i32, message = "bqk,bkd->bqd"}> : () -> ()
    %cst_212 = arith.constant dense<0.000000e+00> : vector<2x8x8xf32>
    %565 = tpu.matmul %563, %564, %cst_212 {dimension_numbers = #tpu.dot_dimension_numbers<[2], [1], [1], [2], [0, 0, 0, 1, 1, 2], [0], [0]>} : vector<2x8x64xbf16>, vector<2x64x8xbf16>, vector<2x8x8xf32> -> vector<2x8x8xf32>
    "tpu.trace_stop"() : () -> ()
    %566 = tpu.reciprocal %562 {approx = true} : vector<2x8x1xf32> -> vector<2x8x1xf32>
    %567 = vector.broadcast %566 : vector<2x8x1xf32> to vector<2x8x8xf32>
    %568 = arith.mulf %565, %567 : vector<2x8x8xf32>
    %569 = arith.truncf %568 : vector<2x8x8xf32> to vector<2x8x8xbf16>
    %570 = vector.extract_strided_slice %503 {offsets = [16, 0], sizes = [8, 32], strides = [1, 1]} : vector<32x32xbf16> to vector<8x32xbf16>
    "tpu.trace_start"() <{level = 10 : i32, message = "bqd,de->bqe"}> : () -> ()
    %cst_213 = arith.constant dense<0.000000e+00> : vector<2x8x32xf32>
    %571 = tpu.matmul %569, %570, %cst_213 {dimension_numbers = #tpu.dot_dimension_numbers<[2], [0], [0, 1], [1], [0, 0, 0, 1, 1, 1], [], []>} : vector<2x8x8xbf16>, vector<8x32xbf16>, vector<2x8x32xf32> -> vector<2x8x32xf32>
    "tpu.trace_stop"() : () -> ()
    %572 = arith.addf %550, %571 : vector<2x8x32xf32>
    %573 = vector.extract_strided_slice %499 {offsets = [0, 0, 24], sizes = [2, 8, 8], strides = [1, 1, 1]} : vector<2x8x32xbf16> to vector<2x8x8xbf16>
    %574 = vector.extract_strided_slice %500 {offsets = [0, 0, 24], sizes = [2, 64, 8], strides = [1, 1, 1]} : vector<2x64x32xbf16> to vector<2x64x8xbf16>
    "tpu.trace_start"() <{level = 10 : i32, message = "bqd,bkd->bqk"}> : () -> ()
    %cst_214 = arith.constant dense<0.000000e+00> : vector<2x8x64xf32>
    %575 = tpu.matmul %573, %574, %cst_214 {dimension_numbers = #tpu.dot_dimension_numbers<[2], [2], [1], [1], [0, 0, 0, 1, 1, 1], [0], [0]>} : vector<2x8x8xbf16>, vector<2x64x8xbf16>, vector<2x8x64xf32> -> vector<2x8x64xf32>
    "tpu.trace_stop"() : () -> ()
    %576 = vector.broadcast %7 : vector<2x1x64xf32> to vector<2x8x64xf32>
    %577 = arith.addf %575, %576 : vector<2x8x64xf32>
    %cst_215 = arith.constant dense<0xFF800000> : vector<2x8xf32>
    %578 = vector.multi_reduction <maximumf>, %577, %cst_215 [2] : vector<2x8x64xf32> to vector<2x8xf32>
    %579 = vector.shape_cast %578 : vector<2x8xf32> to vector<2x8x1xf32>
    %580 = vector.broadcast %579 : vector<2x8x1xf32> to vector<2x8x64xf32>
    %581 = arith.subf %577, %580 : vector<2x8x64xf32>
    %582 = math.exp %581 : vector<2x8x64xf32>
    %cst_216 = arith.constant dense<0.000000e+00> : vector<2x8xf32>
    %583 = vector.multi_reduction <add>, %582, %cst_216 [2] : vector<2x8x64xf32> to vector<2x8xf32>
    %584 = vector.shape_cast %583 : vector<2x8xf32> to vector<2x8x1xf32>
    %585 = arith.truncf %582 : vector<2x8x64xf32> to vector<2x8x64xbf16>
    %586 = vector.extract_strided_slice %501 {offsets = [0, 0, 24], sizes = [2, 64, 8], strides = [1, 1, 1]} : vector<2x64x32xbf16> to vector<2x64x8xbf16>
    "tpu.trace_start"() <{level = 10 : i32, message = "bqk,bkd->bqd"}> : () -> ()
    %cst_217 = arith.constant dense<0.000000e+00> : vector<2x8x8xf32>
    %587 = tpu.matmul %585, %586, %cst_217 {dimension_numbers = #tpu.dot_dimension_numbers<[2], [1], [1], [2], [0, 0, 0, 1, 1, 2], [0], [0]>} : vector<2x8x64xbf16>, vector<2x64x8xbf16>, vector<2x8x8xf32> -> vector<2x8x8xf32>
    "tpu.trace_stop"() : () -> ()
    %588 = tpu.reciprocal %584 {approx = true} : vector<2x8x1xf32> -> vector<2x8x1xf32>
    %589 = vector.broadcast %588 : vector<2x8x1xf32> to vector<2x8x8xf32>
    %590 = arith.mulf %587, %589 : vector<2x8x8xf32>
    %591 = arith.truncf %590 : vector<2x8x8xf32> to vector<2x8x8xbf16>
    %592 = vector.extract_strided_slice %503 {offsets = [24, 0], sizes = [8, 32], strides = [1, 1]} : vector<32x32xbf16> to vector<8x32xbf16>
    "tpu.trace_start"() <{level = 10 : i32, message = "bqd,de->bqe"}> : () -> ()
    %cst_218 = arith.constant dense<0.000000e+00> : vector<2x8x32xf32>
    %593 = tpu.matmul %591, %592, %cst_218 {dimension_numbers = #tpu.dot_dimension_numbers<[2], [0], [0, 1], [1], [0, 0, 0, 1, 1, 1], [], []>} : vector<2x8x8xbf16>, vector<8x32xbf16>, vector<2x8x32xf32> -> vector<2x8x32xf32>
    "tpu.trace_stop"() : () -> ()
    %594 = arith.addf %572, %593 : vector<2x8x32xf32>
    %595 = vector.shape_cast %505 : vector<1x32xf32> to vector<1x1x32xf32>
    %596 = vector.broadcast %595 : vector<1x1x32xf32> to vector<2x8x32xf32>
    %597 = arith.addf %594, %596 : vector<2x8x32xf32>
    %c1_219 = arith.constant 1 : index
    %c0_220 = arith.constant 0 : index
    %c0_221 = arith.constant 0 : index
    %598 = vector.load %arg24[%c1_219, %c0_220, %c0_221] : memref<2x2x32xf32, #tpu.memory_space<vmem>>, vector<1x2x32xf32>
    %599 = vector.shape_cast %598 : vector<1x2x32xf32> to vector<2x32xf32>
    %600 = arith.addf %488, %597 : vector<2x8x32xf32>
    %cst_222 = arith.constant dense<0.000000e+00> : vector<2x8xf32>
    %601 = vector.multi_reduction <add>, %600, %cst_222 [2] : vector<2x8x32xf32> to vector<2x8xf32>
    %602 = vector.shape_cast %601 : vector<2x8xf32> to vector<2x8x1xf32>
    %cst_223 = arith.constant 3.200000e+01 : f32
    %603 = vector.broadcast %cst_223 : f32 to vector<2x8x1xf32>
    %604 = arith.divf %602, %603 : vector<2x8x1xf32>
    %605 = vector.broadcast %604 : vector<2x8x1xf32> to vector<2x8x32xf32>
    %606 = arith.subf %600, %605 : vector<2x8x32xf32>
    %607 = arith.mulf %606, %606 : vector<2x8x32xf32>
    %cst_224 = arith.constant dense<0.000000e+00> : vector<2x8xf32>
    %608 = vector.multi_reduction <add>, %607, %cst_224 [2] : vector<2x8x32xf32> to vector<2x8xf32>
    %609 = vector.shape_cast %608 : vector<2x8xf32> to vector<2x8x1xf32>
    %cst_225 = arith.constant 3.200000e+01 : f32
    %610 = vector.broadcast %cst_225 : f32 to vector<2x8x1xf32>
    %611 = arith.divf %609, %610 : vector<2x8x1xf32>
    %612 = vector.broadcast %604 : vector<2x8x1xf32> to vector<2x8x32xf32>
    %613 = arith.subf %600, %612 : vector<2x8x32xf32>
    %cst_226 = arith.constant 9.99999974E-6 : f32
    %614 = vector.broadcast %cst_226 : f32 to vector<2x8x1xf32>
    %615 = arith.addf %611, %614 : vector<2x8x1xf32>
    %616 = math.rsqrt %615 : vector<2x8x1xf32>
    %617 = vector.broadcast %616 : vector<2x8x1xf32> to vector<2x8x32xf32>
    %618 = arith.mulf %613, %617 : vector<2x8x32xf32>
    %619 = vector.extract_strided_slice %599 {offsets = [0, 0], sizes = [1, 32], strides = [1, 1]} : vector<2x32xf32> to vector<1x32xf32>
    %620 = vector.shape_cast %619 : vector<1x32xf32> to vector<1x1x32xf32>
    %621 = vector.broadcast %620 : vector<1x1x32xf32> to vector<2x8x32xf32>
    %622 = arith.mulf %618, %621 : vector<2x8x32xf32>
    %623 = vector.extract_strided_slice %599 {offsets = [1, 0], sizes = [1, 32], strides = [1, 1]} : vector<2x32xf32> to vector<1x32xf32>
    %624 = vector.shape_cast %623 : vector<1x32xf32> to vector<1x1x32xf32>
    %625 = vector.broadcast %624 : vector<1x1x32xf32> to vector<2x8x32xf32>
    %626 = arith.addf %622, %625 : vector<2x8x32xf32>
    %627 = arith.truncf %626 : vector<2x8x32xf32> to vector<2x8x32xbf16>
    %c1_227 = arith.constant 1 : index
    %c0_228 = arith.constant 0 : index
    %c0_229 = arith.constant 0 : index
    %628 = vector.load %arg19[%c1_227, %c0_228, %c0_229] : memref<2x32x64xbf16, #tpu.memory_space<vmem>>, vector<1x32x64xbf16>
    %629 = vector.shape_cast %628 : vector<1x32x64xbf16> to vector<32x64xbf16>
    %c1_230 = arith.constant 1 : index
    %c0_231 = arith.constant 0 : index
    %c0_232 = arith.constant 0 : index
    %630 = vector.load %arg20[%c1_230, %c0_231, %c0_232] : memref<2x1x64xf32, #tpu.memory_space<vmem>>, vector<1x1x64xf32>
    %631 = vector.shape_cast %630 : vector<1x1x64xf32> to vector<1x64xf32>
    "tpu.trace_start"() <{level = 10 : i32, message = "bsi,io->bso"}> : () -> ()
    %cst_233 = arith.constant dense<0.000000e+00> : vector<2x8x64xf32>
    %632 = tpu.matmul %627, %629, %cst_233 {dimension_numbers = #tpu.dot_dimension_numbers<[2], [0], [0, 1], [1], [0, 0, 0, 1, 1, 1], [], []>} : vector<2x8x32xbf16>, vector<32x64xbf16>, vector<2x8x64xf32> -> vector<2x8x64xf32>
    "tpu.trace_stop"() : () -> ()
    %633 = vector.shape_cast %631 : vector<1x64xf32> to vector<1x1x64xf32>
    %634 = vector.broadcast %633 : vector<1x1x64xf32> to vector<2x8x64xf32>
    %635 = arith.addf %632, %634 : vector<2x8x64xf32>
    %cst_234 = arith.constant 0.000000e+00 : f32
    %636 = vector.broadcast %cst_234 : f32 to vector<2x8x64xf32>
    %637 = arith.maximumf %635, %636 : vector<2x8x64xf32>
    %638 = arith.truncf %637 : vector<2x8x64xf32> to vector<2x8x64xbf16>
    %c1_235 = arith.constant 1 : index
    %c0_236 = arith.constant 0 : index
    %c0_237 = arith.constant 0 : index
    %639 = vector.load %arg21[%c1_235, %c0_236, %c0_237] : memref<2x64x32xbf16, #tpu.memory_space<vmem>>, vector<1x64x32xbf16>
    %640 = vector.shape_cast %639 : vector<1x64x32xbf16> to vector<64x32xbf16>
    %c1_238 = arith.constant 1 : index
    %c0_239 = arith.constant 0 : index
    %c0_240 = arith.constant 0 : index
    %641 = vector.load %arg22[%c1_238, %c0_239, %c0_240] : memref<2x1x32xf32, #tpu.memory_space<vmem>>, vector<1x1x32xf32>
    %642 = vector.shape_cast %641 : vector<1x1x32xf32> to vector<1x32xf32>
    "tpu.trace_start"() <{level = 10 : i32, message = "bsi,io->bso"}> : () -> ()
    %cst_241 = arith.constant dense<0.000000e+00> : vector<2x8x32xf32>
    %643 = tpu.matmul %638, %640, %cst_241 {dimension_numbers = #tpu.dot_dimension_numbers<[2], [0], [0, 1], [1], [0, 0, 0, 1, 1, 1], [], []>} : vector<2x8x64xbf16>, vector<64x32xbf16>, vector<2x8x32xf32> -> vector<2x8x32xf32>
    "tpu.trace_stop"() : () -> ()
    %644 = vector.shape_cast %642 : vector<1x32xf32> to vector<1x1x32xf32>
    %645 = vector.broadcast %644 : vector<1x1x32xf32> to vector<2x8x32xf32>
    %646 = arith.addf %643, %645 : vector<2x8x32xf32>
    %c1_242 = arith.constant 1 : index
    %c0_243 = arith.constant 0 : index
    %c0_244 = arith.constant 0 : index
    %647 = vector.load %arg25[%c1_242, %c0_243, %c0_244] : memref<2x2x32xf32, #tpu.memory_space<vmem>>, vector<1x2x32xf32>
    %648 = vector.shape_cast %647 : vector<1x2x32xf32> to vector<2x32xf32>
    %649 = arith.addf %626, %646 : vector<2x8x32xf32>
    %cst_245 = arith.constant dense<0.000000e+00> : vector<2x8xf32>
    %650 = vector.multi_reduction <add>, %649, %cst_245 [2] : vector<2x8x32xf32> to vector<2x8xf32>
    %651 = vector.shape_cast %650 : vector<2x8xf32> to vector<2x8x1xf32>
    %cst_246 = arith.constant 3.200000e+01 : f32
    %652 = vector.broadcast %cst_246 : f32 to vector<2x8x1xf32>
    %653 = arith.divf %651, %652 : vector<2x8x1xf32>
    %654 = vector.broadcast %653 : vector<2x8x1xf32> to vector<2x8x32xf32>
    %655 = arith.subf %649, %654 : vector<2x8x32xf32>
    %656 = arith.mulf %655, %655 : vector<2x8x32xf32>
    %cst_247 = arith.constant dense<0.000000e+00> : vector<2x8xf32>
    %657 = vector.multi_reduction <add>, %656, %cst_247 [2] : vector<2x8x32xf32> to vector<2x8xf32>
    %658 = vector.shape_cast %657 : vector<2x8xf32> to vector<2x8x1xf32>
    %cst_248 = arith.constant 3.200000e+01 : f32
    %659 = vector.broadcast %cst_248 : f32 to vector<2x8x1xf32>
    %660 = arith.divf %658, %659 : vector<2x8x1xf32>
    %661 = vector.broadcast %653 : vector<2x8x1xf32> to vector<2x8x32xf32>
    %662 = arith.subf %649, %661 : vector<2x8x32xf32>
    %cst_249 = arith.constant 9.99999974E-6 : f32
    %663 = vector.broadcast %cst_249 : f32 to vector<2x8x1xf32>
    %664 = arith.addf %660, %663 : vector<2x8x1xf32>
    %665 = math.rsqrt %664 : vector<2x8x1xf32>
    %666 = vector.broadcast %665 : vector<2x8x1xf32> to vector<2x8x32xf32>
    %667 = arith.mulf %662, %666 : vector<2x8x32xf32>
    %668 = vector.extract_strided_slice %648 {offsets = [0, 0], sizes = [1, 32], strides = [1, 1]} : vector<2x32xf32> to vector<1x32xf32>
    %669 = vector.shape_cast %668 : vector<1x32xf32> to vector<1x1x32xf32>
    %670 = vector.broadcast %669 : vector<1x1x32xf32> to vector<2x8x32xf32>
    %671 = arith.mulf %667, %670 : vector<2x8x32xf32>
    %672 = vector.extract_strided_slice %648 {offsets = [1, 0], sizes = [1, 32], strides = [1, 1]} : vector<2x32xf32> to vector<1x32xf32>
    %673 = vector.shape_cast %672 : vector<1x32xf32> to vector<1x1x32xf32>
    %674 = vector.broadcast %673 : vector<1x1x32xf32> to vector<2x8x32xf32>
    %675 = arith.addf %671, %674 : vector<2x8x32xf32>
    %c0_250 = arith.constant 0 : index
    %c0_251 = arith.constant 0 : index
    %676 = vector.load %arg26[%c0_250, %c0_251] : memref<2x32xf32, #tpu.memory_space<vmem>>, vector<2x32xf32>
    %cst_252 = arith.constant dense<0.000000e+00> : vector<2x8xf32>
    %677 = vector.multi_reduction <add>, %675, %cst_252 [2] : vector<2x8x32xf32> to vector<2x8xf32>
    %678 = vector.shape_cast %677 : vector<2x8xf32> to vector<2x8x1xf32>
    %cst_253 = arith.constant 3.200000e+01 : f32
    %679 = vector.broadcast %cst_253 : f32 to vector<2x8x1xf32>
    %680 = arith.divf %678, %679 : vector<2x8x1xf32>
    %681 = vector.broadcast %680 : vector<2x8x1xf32> to vector<2x8x32xf32>
    %682 = arith.subf %675, %681 : vector<2x8x32xf32>
    %683 = arith.mulf %682, %682 : vector<2x8x32xf32>
    %cst_254 = arith.constant dense<0.000000e+00> : vector<2x8xf32>
    %684 = vector.multi_reduction <add>, %683, %cst_254 [2] : vector<2x8x32xf32> to vector<2x8xf32>
    %685 = vector.shape_cast %684 : vector<2x8xf32> to vector<2x8x1xf32>
    %cst_255 = arith.constant 3.200000e+01 : f32
    %686 = vector.broadcast %cst_255 : f32 to vector<2x8x1xf32>
    %687 = arith.divf %685, %686 : vector<2x8x1xf32>
    %688 = vector.broadcast %680 : vector<2x8x1xf32> to vector<2x8x32xf32>
    %689 = arith.subf %675, %688 : vector<2x8x32xf32>
    %cst_256 = arith.constant 9.99999974E-6 : f32
    %690 = vector.broadcast %cst_256 : f32 to vector<2x8x1xf32>
    %691 = arith.addf %687, %690 : vector<2x8x1xf32>
    %692 = math.rsqrt %691 : vector<2x8x1xf32>
    %693 = vector.broadcast %692 : vector<2x8x1xf32> to vector<2x8x32xf32>
    %694 = arith.mulf %689, %693 : vector<2x8x32xf32>
    %695 = vector.extract_strided_slice %676 {offsets = [0, 0], sizes = [1, 32], strides = [1, 1]} : vector<2x32xf32> to vector<1x32xf32>
    %696 = vector.shape_cast %695 : vector<1x32xf32> to vector<1x1x32xf32>
    %697 = vector.broadcast %696 : vector<1x1x32xf32> to vector<2x8x32xf32>
    %698 = arith.mulf %694, %697 : vector<2x8x32xf32>
    %699 = vector.extract_strided_slice %676 {offsets = [1, 0], sizes = [1, 32], strides = [1, 1]} : vector<2x32xf32> to vector<1x32xf32>
    %700 = vector.shape_cast %699 : vector<1x32xf32> to vector<1x1x32xf32>
    %701 = vector.broadcast %700 : vector<1x1x32xf32> to vector<2x8x32xf32>
    %702 = arith.addf %698, %701 : vector<2x8x32xf32>
    %c0_257 = arith.constant 0 : index
    %c0_258 = arith.constant 0 : index
    %c0_259 = arith.constant 0 : index
    %703 = vector.load %arg27[%c0_257, %c0_258, %c0_259] : memref<2x8x32xf32, #tpu.memory_space<vmem>>, vector<2x8x32xf32>
    tpu.vector_store %arg27[%c0_257, %c0_258, %c0_259], %702 {strides = array<i32>} : memref<2x8x32xf32, #tpu.memory_space<vmem>>, vector<2x8x32xf32>,
    return
  }
}

</mosaic_0001>

<llo_original>
// kernel: transformer_decoder_forward.1
$region0: #{transformer_decoder_forward.1}
  #allocation0 [shape = 'u32[]', space=smem, size = 0x4, offset = 0x4, fixed_abs, tag = 'smem constant byte address 0x4 - core index']
  #allocation1 [shape = 'u32[72,128]{1,0:T(1,128)}', space=vmem, size = 0x9000, scoped, tag = 'internal scratch']
  %s0 = inlined_call_operand.vmem [shape: f32[2,8,32], index: 0, kind: input, shape index: {}]
  %s1 = inlined_call_operand.vmem [shape: f32[2,64,32], index: 1, kind: input, shape index: {}]
  %s2 = inlined_call_operand.vmem [shape: f32[2,8,32], index: 2, kind: input, shape index: {}]
  %s3 = inlined_call_operand.vmem [shape: f32[2,64,32], index: 3, kind: input, shape index: {}]
  %s4 = inlined_call_operand.vmem [shape: f32[2,1,64], index: 4, kind: input, shape index: {}]
  %s5 = inlined_call_operand.vmem [shape: bf16[2,32,64], index: 5, kind: input, shape index: {}]
  %s6 = inlined_call_operand.vmem [shape: f32[2,1,64], index: 6, kind: input, shape index: {}]
  %s7 = inlined_call_operand.vmem [shape: bf16[2,32,32], index: 7, kind: input, shape index: {}]
  %s8 = inlined_call_operand.vmem [shape: f32[2,1,32], index: 8, kind: input, shape index: {}]
  %s9 = inlined_call_operand.vmem [shape: bf16[2,32,32], index: 9, kind: input, shape index: {}]
  %s10 = inlined_call_operand.vmem [shape: f32[2,1,32], index: 10, kind: input, shape index: {}]
  %s11 = inlined_call_operand.vmem [shape: bf16[2,32,32], index: 11, kind: input, shape index: {}]
  %s12 = inlined_call_operand.vmem [shape: f32[2,1,32], index: 12, kind: input, shape index: {}]
  %s13 = inlined_call_operand.vmem [shape: bf16[32,64], index: 13, kind: input, shape index: {}]
  %s14 = inlined_call_operand.vmem [shape: f32[1,64], index: 14, kind: input, shape index: {}]
  %s15 = inlined_call_operand.vmem [shape: bf16[32,64], index: 15, kind: input, shape index: {}]
  %s16 = inlined_call_operand.vmem [shape: f32[1,64], index: 16, kind: input, shape index: {}]
  %s17 = inlined_call_operand.vmem [shape: bf16[2,32,32], index: 17, kind: input, shape index: {}]
  %s18 = inlined_call_operand.vmem [shape: f32[2,1,32], index: 18, kind: input, shape index: {}]
  %s19 = inlined_call_operand.vmem [shape: bf16[2,32,64], index: 19, kind: input, shape index: {}]
  %s20 = inlined_call_operand.vmem [shape: f32[2,1,64], index: 20, kind: input, shape index: {}]
  %s21 = inlined_call_operand.vmem [shape: bf16[2,64,32], index: 21, kind: input, shape index: {}]
  %s22 = inlined_call_operand.vmem [shape: f32[2,1,32], index: 22, kind: input, shape index: {}]
  %s23 = inlined_call_operand.vmem [shape: f32[2,2,32], index: 23, kind: input, shape index: {}]
  %s24 = inlined_call_operand.vmem [shape: f32[2,2,32], index: 24, kind: input, shape index: {}]
  %s25 = inlined_call_operand.vmem [shape: f32[2,2,32], index: 25, kind: input, shape index: {}]
  %s26 = inlined_call_operand.vmem [shape: f32[2,32], index: 26, kind: input, shape index: {}]
  %s27 = inlined_call_operand.vmem [shape: f32[2,8,32], index: 27, kind: output, shape index: {}]
  %s28 = sld [smem:[#allocation0]]
  $region118: #{transformer_decoder_forward.1} parent=0
    _
  %s30 = ssub.s32 1, %s28
  %s31 = scalar_select 0, %s30, %s28
  // Predicated region
  $region2: #{transformer_decoder_forward.1} parent=0 // pred_check
    _
  $region3: #{transformer_decoder_forward.1} parent=0 // pred_check_branch
    %33 = sbr.rel (0) target = $region5
  $region4: #{transformer_decoder_forward.1} parent=0 // pred_region
    _
  $region5: #{transformer_decoder_forward.1} parent=0 // pred_fallthru
    _
  // Predicated region
  $region6: #{transformer_decoder_forward.1} parent=0 // pred_check
    _
  $region7: #{transformer_decoder_forward.1} parent=0 // pred_check_branch
    %35 = sbr.rel (0) target = $region9
  $region8: #{transformer_decoder_forward.1} parent=0 // pred_region
    _
  $region9: #{transformer_decoder_forward.1} parent=0 // pred_fallthru
    _
  // Predicated region
  $region10: #{transformer_decoder_forward.1} parent=0 // pred_check
    _
  $region11: #{transformer_decoder_forward.1} parent=0 // pred_check_branch
    %37 = sbr.rel (0) target = $region13
  $region12: #{transformer_decoder_forward.1} parent=0 // pred_region
    _
  $region13: #{transformer_decoder_forward.1} parent=0 // pred_fallthru
    _
  // Predicated region
  $region14: #{transformer_decoder_forward.1} parent=0 // pred_check
    _
  $region15: #{transformer_decoder_forward.1} parent=0 // pred_check_branch
    %39 = sbr.rel (0) target = $region17
  $region16: #{transformer_decoder_forward.1} parent=0 // pred_region
    _
  $region17: #{transformer_decoder_forward.1} parent=0 // pred_fallthru
    _
  // Predicated region
  $region18: #{transformer_decoder_forward.1} parent=0 // pred_check
    _
  $region19: #{transformer_decoder_forward.1} parent=0 // pred_check_branch
    %41 = sbr.rel (0) target = $region21
  $region20: #{transformer_decoder_forward.1} parent=0 // pred_region
    _
  $region21: #{transformer_decoder_forward.1} parent=0 // pred_fallthru
    _
  // Predicated region
  $region22: #{transformer_decoder_forward.1} parent=0 // pred_check
    _
  $region23: #{transformer_decoder_forward.1} parent=0 // pred_check_branch
    %43 = sbr.rel (0) target = $region25
  $region24: #{transformer_decoder_forward.1} parent=0 // pred_region
    _
  $region25: #{transformer_decoder_forward.1} parent=0 // pred_fallthru
    _
  // Predicated region
  $region26: #{transformer_decoder_forward.1} parent=0 // pred_check
    _
  $region27: #{transformer_decoder_forward.1} parent=0 // pred_check_branch
    %45 = sbr.rel (0) target = $region29
  $region28: #{transformer_decoder_forward.1} parent=0 // pred_region
    _
  $region29: #{transformer_decoder_forward.1} parent=0 // pred_fallthru
    _
  // Predicated region
  $region30: #{transformer_decoder_forward.1} parent=0 // pred_check
    _
  $region31: #{transformer_decoder_forward.1} parent=0 // pred_check_branch
    %47 = sbr.rel (0) target = $region33
  $region32: #{transformer_decoder_forward.1} parent=0 // pred_region
    _
  $region33: #{transformer_decoder_forward.1} parent=0 // pred_fallthru
    _
  // Predicated region
  $region34: #{transformer_decoder_forward.1} parent=0 // pred_check
    _
  $region35: #{transformer_decoder_forward.1} parent=0 // pred_check_branch
    %49 = sbr.rel (0) target = $region37
  $region36: #{transformer_decoder_forward.1} parent=0 // pred_region
    _
  $region37: #{transformer_decoder_forward.1} parent=0 // pred_fallthru
    _
  // Predicated region
  $region38: #{transformer_decoder_forward.1} parent=0 // pred_check
    _
  $region39: #{transformer_decoder_forward.1} parent=0 // pred_check_branch
    %51 = sbr.rel (0) target = $region41
  $region40: #{transformer_decoder_forward.1} parent=0 // pred_region
    _
  $region41: #{transformer_decoder_forward.1} parent=0 // pred_fallthru
    _
  // Predicated region
  $region42: #{transformer_decoder_forward.1} parent=0 // pred_check
    _
  $region43: #{transformer_decoder_forward.1} parent=0 // pred_check_branch
    %53 = sbr.rel (0) target = $region45
  $region44: #{transformer_decoder_forward.1} parent=0 // pred_region
    _
  $region45: #{transformer_decoder_forward.1} parent=0 // pred_fallthru
    _
  // Predicated region
  $region46: #{transformer_decoder_forward.1} parent=0 // pred_check
    _
  $region47: #{transformer_decoder_forward.1} parent=0 // pred_check_branch
    %55 = sbr.rel (0) target = $region49
  $region48: #{transformer_decoder_forward.1} parent=0 // pred_region
    _
  $region49: #{transformer_decoder_forward.1} parent=0 // pred_fallthru
    _
  // Predicated region
  $region50: #{transformer_decoder_forward.1} parent=0 // pred_check
    _
  $region51: #{transformer_decoder_forward.1} parent=0 // pred_check_branch
    %57 = sbr.rel (0) target = $region53
  $region52: #{transformer_decoder_forward.1} parent=0 // pred_region
    _
  $region53: #{transformer_decoder_forward.1} parent=0 // pred_fallthru
    _
  // Predicated region
  $region54: #{transformer_decoder_forward.1} parent=0 // pred_check
    _
  $region55: #{transformer_decoder_forward.1} parent=0 // pred_check_branch
    %59 = sbr.rel (0) target = $region57
  $region56: #{transformer_decoder_forward.1} parent=0 // pred_region
    _
  $region57: #{transformer_decoder_forward.1} parent=0 // pred_fallthru
    _
  // Predicated region
  $region58: #{transformer_decoder_forward.1} parent=0 // pred_check
    _
  $region59: #{transformer_decoder_forward.1} parent=0 // pred_check_branch
    %61 = sbr.rel (0) target = $region61
  $region60: #{transformer_decoder_forward.1} parent=0 // pred_region
    _
  $region61: #{transformer_decoder_forward.1} parent=0 // pred_fallthru
    _
  // Predicated region
  $region62: #{transformer_decoder_forward.1} parent=0 // pred_check
    _
  $region63: #{transformer_decoder_forward.1} parent=0 // pred_check_branch
    %63 = sbr.rel (0) target = $region65
  $region64: #{transformer_decoder_forward.1} parent=0 // pred_region
    _
  $region65: #{transformer_decoder_forward.1} parent=0 // pred_fallthru
    _
  // Predicated region
  $region66: #{transformer_decoder_forward.1} parent=0 // pred_check
    _
  $region67: #{transformer_decoder_forward.1} parent=0 // pred_check_branch
    %65 = sbr.rel (0) target = $region69
  $region68: #{transformer_decoder_forward.1} parent=0 // pred_region
    _
  $region69: #{transformer_decoder_forward.1} parent=0 // pred_fallthru
    _
  // Predicated region
  $region70: #{transformer_decoder_forward.1} parent=0 // pred_check
    _
  $region71: #{transformer_decoder_forward.1} parent=0 // pred_check_branch
    %67 = sbr.rel (0) target = $region73
  $region72: #{transformer_decoder_forward.1} parent=0 // pred_region
    _
  $region73: #{transformer_decoder_forward.1} parent=0 // pred_fallthru
    _
  // Predicated region
  $region74: #{transformer_decoder_forward.1} parent=0 // pred_check
    _
  $region75: #{transformer_decoder_forward.1} parent=0 // pred_check_branch
    %69 = sbr.rel (0) target = $region77
  $region76: #{transformer_decoder_forward.1} parent=0 // pred_region
    _
  $region77: #{transformer_decoder_forward.1} parent=0 // pred_fallthru
    _
  // Predicated region
  $region78: #{transformer_decoder_forward.1} parent=0 // pred_check
    _
  $region79: #{transformer_decoder_forward.1} parent=0 // pred_check_branch
    %71 = sbr.rel (0) target = $region81
  $region80: #{transformer_decoder_forward.1} parent=0 // pred_region
    _
  $region81: #{transformer_decoder_forward.1} parent=0 // pred_fallthru
    _
  // Predicated region
  $region82: #{transformer_decoder_forward.1} parent=0 // pred_check
    _
  $region83: #{transformer_decoder_forward.1} parent=0 // pred_check_branch
    %73 = sbr.rel (0) target = $region85
  $region84: #{transformer_decoder_forward.1} parent=0 // pred_region
    _
  $region85: #{transformer_decoder_forward.1} parent=0 // pred_fallthru
    _
  // Predicated region
  $region86: #{transformer_decoder_forward.1} parent=0 // pred_check
    _
  $region87: #{transformer_decoder_forward.1} parent=0 // pred_check_branch
    %75 = sbr.rel (0) target = $region89
  $region88: #{transformer_decoder_forward.1} parent=0 // pred_region
    _
  $region89: #{transformer_decoder_forward.1} parent=0 // pred_fallthru
    _
  // Predicated region
  $region90: #{transformer_decoder_forward.1} parent=0 // pred_check
    _
  $region91: #{transformer_decoder_forward.1} parent=0 // pred_check_branch
    %77 = sbr.rel (0) target = $region93
  $region92: #{transformer_decoder_forward.1} parent=0 // pred_region
    _
  $region93: #{transformer_decoder_forward.1} parent=0 // pred_fallthru
    _
  // Predicated region
  $region94: #{transformer_decoder_forward.1} parent=0 // pred_check
    _
  $region95: #{transformer_decoder_forward.1} parent=0 // pred_check_branch
    %79 = sbr.rel (0) target = $region97
  $region96: #{transformer_decoder_forward.1} parent=0 // pred_region
    _
  $region97: #{transformer_decoder_forward.1} parent=0 // pred_fallthru
    _
  // Predicated region
  $region98: #{transformer_decoder_forward.1} parent=0 // pred_check
    _
  $region99: #{transformer_decoder_forward.1} parent=0 // pred_check_branch
    %81 = sbr.rel (0) target = $region101
  $region100: #{transformer_decoder_forward.1} parent=0 // pred_region
    _
  $region101: #{transformer_decoder_forward.1} parent=0 // pred_fallthru
    _
  // Predicated region
  $region102: #{transformer_decoder_forward.1} parent=0 // pred_check
    _
  $region103: #{transformer_decoder_forward.1} parent=0 // pred_check_branch
    %83 = sbr.rel (0) target = $region105
  $region104: #{transformer_decoder_forward.1} parent=0 // pred_region
    _
  $region105: #{transformer_decoder_forward.1} parent=0 // pred_fallthru
    _
  // Predicated region
  $region106: #{transformer_decoder_forward.1} parent=0 // pred_check
    _
  $region107: #{transformer_decoder_forward.1} parent=0 // pred_check_branch
    %85 = sbr.rel (0) target = $region109
  $region108: #{transformer_decoder_forward.1} parent=0 // pred_region
    _
  $region109: #{transformer_decoder_forward.1} parent=0 // pred_fallthru
    _
  %v87 = vld [vmem:[%s0] sm:$0xff]
  %v88 = vld [vmem:[%s0 + $0x8] sm:$0xff]
  %v89 = vld [vmem:[%s2] sm:$0xff]
  %v90 = vld [vmem:[%s2 + $0x8] sm:$0xff]
  %v91 = vld [vmem:[%s1] sm:$0xff]
  %v92 = vld [vmem:[%s1 + $0x8] sm:$0xff]
  %v93 = vld [vmem:[%s1 + $0x10] sm:$0xff]
  %v94 = vld [vmem:[%s1 + $0x18] sm:$0xff]
  %v95 = vld [vmem:[%s1 + $0x20] sm:$0xff]
  %v96 = vld [vmem:[%s1 + $0x28] sm:$0xff]
  %v97 = vld [vmem:[%s1 + $0x30] sm:$0xff]
  %v98 = vld [vmem:[%s1 + $0x38] sm:$0xff]
  %v99 = vld [vmem:[%s1 + $0x40] sm:$0xff]
  %v100 = vld [vmem:[%s1 + $0x48] sm:$0xff]
  %v101 = vld [vmem:[%s1 + $0x50] sm:$0xff]
  %v102 = vld [vmem:[%s1 + $0x58] sm:$0xff]
  %v103 = vld [vmem:[%s1 + $0x60] sm:$0xff]
  %v104 = vld [vmem:[%s1 + $0x68] sm:$0xff]
  %v105 = vld [vmem:[%s1 + $0x70] sm:$0xff]
  %v106 = vld [vmem:[%s1 + $0x78] sm:$0xff]
  %v107 = vpack.c.bf16 %v91, %v91
  %v108 = vpack.c.bf16 %v92, %v92
  %v109 = vpack.c.bf16 %v93, %v93
  %v110 = vpack.c.bf16 %v94, %v94
  %v111 = vpack.c.bf16 %v95, %v95
  %v112 = vpack.c.bf16 %v96, %v96
  %v113 = vpack.c.bf16 %v97, %v97
  %v114 = vpack.c.bf16 %v98, %v98
  %v115 = vpack.c.bf16 %v99, %v99
  %v116 = vpack.c.bf16 %v100, %v100
  %v117 = vpack.c.bf16 %v101, %v101
  %v118 = vpack.c.bf16 %v102, %v102
  %v119 = vpack.c.bf16 %v103, %v103
  %v120 = vpack.c.bf16 %v104, %v104
  %v121 = vpack.c.bf16 %v105, %v105
  %v122 = vpack.c.bf16 %v106, %v106
  %v123 = vld [vmem:[%s3] sm:$0xff]
  %v124 = vld [vmem:[%s3 + $0x8] sm:$0xff]
  %v125 = vld [vmem:[%s3 + $0x10] sm:$0xff]
  %v126 = vld [vmem:[%s3 + $0x18] sm:$0xff]
  %v127 = vld [vmem:[%s3 + $0x20] sm:$0xff]
  %v128 = vld [vmem:[%s3 + $0x28] sm:$0xff]
  %v129 = vld [vmem:[%s3 + $0x30] sm:$0xff]
  %v130 = vld [vmem:[%s3 + $0x38] sm:$0xff]
  %v131 = vld [vmem:[%s3 + $0x40] sm:$0xff]
  %v132 = vld [vmem:[%s3 + $0x48] sm:$0xff]
  %v133 = vld [vmem:[%s3 + $0x50] sm:$0xff]
  %v134 = vld [vmem:[%s3 + $0x58] sm:$0xff]
  %v135 = vld [vmem:[%s3 + $0x60] sm:$0xff]
  %v136 = vld [vmem:[%s3 + $0x68] sm:$0xff]
  %v137 = vld [vmem:[%s3 + $0x70] sm:$0xff]
  %v138 = vld [vmem:[%s3 + $0x78] sm:$0xff]
  %v139 = vadd.f32 %v91, %v123
  %v140 = vadd.f32 %v92, %v124
  %v141 = vadd.f32 %v93, %v125
  %v142 = vadd.f32 %v94, %v126
  %v143 = vadd.f32 %v95, %v127
  %v144 = vadd.f32 %v96, %v128
  %v145 = vadd.f32 %v97, %v129
  %v146 = vadd.f32 %v98, %v130
  %v147 = vadd.f32 %v99, %v131
  %v148 = vadd.f32 %v100, %v132
  %v149 = vadd.f32 %v101, %v133
  %v150 = vadd.f32 %v102, %v134
  %v151 = vadd.f32 %v103, %v135
  %v152 = vadd.f32 %v104, %v136
  %v153 = vadd.f32 %v105, %v137
  %v154 = vadd.f32 %v106, %v138
  %v155 = vpack.c.bf16 %v139, %v139
  %v156 = vpack.c.bf16 %v140, %v140
  %v157 = vpack.c.bf16 %v141, %v141
  %v158 = vpack.c.bf16 %v142, %v142
  %v159 = vpack.c.bf16 %v143, %v143
  %v160 = vpack.c.bf16 %v144, %v144
  %v161 = vpack.c.bf16 %v145, %v145
  %v162 = vpack.c.bf16 %v146, %v146
  %v163 = vpack.c.bf16 %v147, %v147
  %v164 = vpack.c.bf16 %v148, %v148
  %v165 = vpack.c.bf16 %v149, %v149
  %v166 = vpack.c.bf16 %v150, %v150
  %v167 = vpack.c.bf16 %v151, %v151
  %v168 = vpack.c.bf16 %v152, %v152
  %v169 = vpack.c.bf16 %v153, %v153
  %v170 = vpack.c.bf16 %v154, %v154
  %v171 = vld [vmem:[%s4] sm:$0x1]
  %v172 = vld [vmem:[%s4 + $0x1] sm:$0x1]
  %v173 = vld [vmem:[%s13] sm:$0xf]
  %v174 = vld [vmem:[%s13 + $0x4] sm:$0xf]
  %v175 = vld [vmem:[%s13 + $0x8] sm:$0xf]
  %v176 = vld [vmem:[%s13 + $0xc] sm:$0xf]
  %v177 = vld [vmem:[%s14] sm:$0x1]
  %v179 = vperm.slane %v177, 0
  %v197 = vunpack.c.l.b16 %v155
  %v198 = vunpack.c.l.b16 %v156
  %v199 = vunpack.c.l.b16 %v157
  %v200 = vunpack.c.l.b16 %v158
  %v201 = vunpack.c.l.b16 %v159
  %v202 = vunpack.c.l.b16 %v160
  %v203 = vunpack.c.l.b16 %v161
  %v204 = vunpack.c.l.b16 %v162
  %v205 = vunpack.c.l.b16 %v163
  %v206 = vunpack.c.l.b16 %v164
  %v207 = vunpack.c.l.b16 %v165
  %v208 = vunpack.c.l.b16 %v166
  %v209 = vunpack.c.l.b16 %v167
  %v210 = vunpack.c.l.b16 %v168
  %v211 = vunpack.c.l.b16 %v169
  %v212 = vunpack.c.l.b16 %v170
  %v213 = vpack.c.b16 %v198, %v197
  %v214 = vpack.c.b16 %v200, %v199
  %v215 = vpack.c.b16 %v202, %v201
  %v216 = vpack.c.b16 %v204, %v203
  %v217 = vpack.c.b16 %v206, %v205
  %v218 = vpack.c.b16 %v208, %v207
  %v219 = vpack.c.b16 %v210, %v209
  %v220 = vpack.c.b16 %v212, %v211
  %v225 = vunpack.c.l.b16 %v173
  %v226 = vunpack.c.l.b16 %v174
  %v227 = vunpack.c.l.b16 %v175
  %v228 = vunpack.c.l.b16 %v176
  %v229 = vpack.c.b16 %v226, %v225
  %v230 = vpack.c.b16 %v228, %v227
  %vm233 = vcmask 261120
  %v235 = vsel %vm233, %v213, 0
  %v238 = vsel %vm233, %v214, 0
  %v241 = vsel %vm233, %v215, 0
  %v244 = vsel %vm233, %v216, 0
  %v247 = vsel %vm233, %v217, 0
  %v250 = vsel %vm233, %v218, 0
  %v253 = vsel %vm233, %v219, 0
  %v256 = vsel %vm233, %v220, 0
  %258 = vmatpush.bf16.msra.mxu0 0
  %259 = vmatpush.bf16.msra.mxu0 0
  %260 = vmatpush.bf16.msra.mxu0 0
  %261 = vmatpush.bf16.msra.mxu0 0
  %262 = vmatpush.bf16.msra.mxu0 0
  %263 = vmatpush.bf16.msra.mxu0 0
  %264 = vmatpush.bf16.msra.mxu0 %v230
  %265 = vmatpush.bf16.msra.mxu0 %v229
  %266 = vmatmul.bf16.gmra.mxu0 %v235
  %v267 = vpop.f32.mrf.mxu0
  %v268 = vadd.f32 %v179, %v267
  %v269 = vpop.f32.mrf.mxu0
  %v270 = vadd.f32 %v179, %v269
  %271 = vmatmul.bf16.gmra.mxu0 %v238
  %v272 = vpop.f32.mrf.mxu0
  %v273 = vadd.f32 %v179, %v272
  %v274 = vpop.f32.mrf.mxu0
  %v275 = vadd.f32 %v179, %v274
  %276 = vmatmul.bf16.gmra.mxu0 %v241
  %v277 = vpop.f32.mrf.mxu0
  %v278 = vadd.f32 %v179, %v277
  %v279 = vpop.f32.mrf.mxu0
  %v280 = vadd.f32 %v179, %v279
  %281 = vmatmul.bf16.gmra.mxu0 %v244
  %v282 = vpop.f32.mrf.mxu0
  %v283 = vadd.f32 %v179, %v282
  %v284 = vpop.f32.mrf.mxu0
  %v285 = vadd.f32 %v179, %v284
  %286 = vmatmul.bf16.gmra.mxu0 %v247
  %v287 = vpop.f32.mrf.mxu0
  %v288 = vadd.f32 %v179, %v287
  %v289 = vpop.f32.mrf.mxu0
  %v290 = vadd.f32 %v179, %v289
  %291 = vmatmul.bf16.gmra.mxu0 %v250
  %v292 = vpop.f32.mrf.mxu0
  %v293 = vadd.f32 %v179, %v292
  %v294 = vpop.f32.mrf.mxu0
  %v295 = vadd.f32 %v179, %v294
  %296 = vmatmul.bf16.gmra.mxu0 %v253
  %v297 = vpop.f32.mrf.mxu0
  %v298 = vadd.f32 %v179, %v297
  %v299 = vpop.f32.mrf.mxu0
  %v300 = vadd.f32 %v179, %v299
  %301 = vmatmul.bf16.gmra.mxu0 %v256
  %v302 = vpop.f32.mrf.mxu0
  %v303 = vadd.f32 %v179, %v302
  %v304 = vpop.f32.mrf.mxu0
  %v305 = vadd.f32 %v179, %v304
  %306 = vdwg.mxu0
  %v307 = vpack.c.bf16 %v268, %v268
  %v308 = vpack.c.bf16 %v270, %v270
  %v309 = vpack.c.bf16 %v273, %v273
  %v310 = vpack.c.bf16 %v275, %v275
  %v311 = vpack.c.bf16 %v278, %v278
  %v312 = vpack.c.bf16 %v280, %v280
  %v313 = vpack.c.bf16 %v283, %v283
  %v314 = vpack.c.bf16 %v285, %v285
  %v315 = vpack.c.bf16 %v288, %v288
  %v316 = vpack.c.bf16 %v290, %v290
  %v317 = vpack.c.bf16 %v293, %v293
  %v318 = vpack.c.bf16 %v295, %v295
  %v319 = vpack.c.bf16 %v298, %v298
  %v320 = vpack.c.bf16 %v300, %v300
  %v321 = vpack.c.bf16 %v303, %v303
  %v322 = vpack.c.bf16 %v305, %v305
  %v323 = vld [vmem:[%s15] sm:$0xf]
  %v324 = vld [vmem:[%s15 + $0x4] sm:$0xf]
  %v325 = vld [vmem:[%s15 + $0x8] sm:$0xf]
  %v326 = vld [vmem:[%s15 + $0xc] sm:$0xf]
  %v327 = vld [vmem:[%s16] sm:$0x1]
  %v329 = vperm.slane %v327, 0
  %v347 = vunpack.c.l.b16 %v107
  %v348 = vunpack.c.l.b16 %v108
  %v349 = vunpack.c.l.b16 %v109
  %v350 = vunpack.c.l.b16 %v110
  %v351 = vunpack.c.l.b16 %v111
  %v352 = vunpack.c.l.b16 %v112
  %v353 = vunpack.c.l.b16 %v113
  %v354 = vunpack.c.l.b16 %v114
  %v355 = vunpack.c.l.b16 %v115
  %v356 = vunpack.c.l.b16 %v116
  %v357 = vunpack.c.l.b16 %v117
  %v358 = vunpack.c.l.b16 %v118
  %v359 = vunpack.c.l.b16 %v119
  %v360 = vunpack.c.l.b16 %v120
  %v361 = vunpack.c.l.b16 %v121
  %v362 = vunpack.c.l.b16 %v122
  %v363 = vpack.c.b16 %v348, %v347
  %v364 = vpack.c.b16 %v350, %v349
  %v365 = vpack.c.b16 %v352, %v351
  %v366 = vpack.c.b16 %v354, %v353
  %v367 = vpack.c.b16 %v356, %v355
  %v368 = vpack.c.b16 %v358, %v357
  %v369 = vpack.c.b16 %v360, %v359
  %v370 = vpack.c.b16 %v362, %v361
  %v375 = vunpack.c.l.b16 %v323
  %v376 = vunpack.c.l.b16 %v324
  %v377 = vunpack.c.l.b16 %v325
  %v378 = vunpack.c.l.b16 %v326
  %v379 = vpack.c.b16 %v376, %v375
  %v380 = vpack.c.b16 %v378, %v377
  %v384 = vsel %vm233, %v363, 0
  %v387 = vsel %vm233, %v364, 0
  %v390 = vsel %vm233, %v365, 0
  %v393 = vsel %vm233, %v366, 0
  %v396 = vsel %vm233, %v367, 0
  %v399 = vsel %vm233, %v368, 0
  %v402 = vsel %vm233, %v369, 0
  %v405 = vsel %vm233, %v370, 0
  %407 = vmatpush.bf16.msra.mxu0 0
  %408 = vmatpush.bf16.msra.mxu0 0
  %409 = vmatpush.bf16.msra.mxu0 0
  %410 = vmatpush.bf16.msra.mxu0 0
  %411 = vmatpush.bf16.msra.mxu0 0
  %412 = vmatpush.bf16.msra.mxu0 0
  %413 = vmatpush.bf16.msra.mxu0 %v380
  %414 = vmatpush.bf16.msra.mxu0 %v379
  %415 = vmatmul.bf16.gmra.mxu0 %v384
  %v416 = vpop.f32.mrf.mxu0
  %v417 = vadd.f32 %v329, %v416
  %v418 = vpop.f32.mrf.mxu0
  %v419 = vadd.f32 %v329, %v418
  %420 = vmatmul.bf16.gmra.mxu0 %v387
  %v421 = vpop.f32.mrf.mxu0
  %v422 = vadd.f32 %v329, %v421
  %v423 = vpop.f32.mrf.mxu0
  %v424 = vadd.f32 %v329, %v423
  %425 = vmatmul.bf16.gmra.mxu0 %v390
  %v426 = vpop.f32.mrf.mxu0
  %v427 = vadd.f32 %v329, %v426
  %v428 = vpop.f32.mrf.mxu0
  %v429 = vadd.f32 %v329, %v428
  %430 = vmatmul.bf16.gmra.mxu0 %v393
  %v431 = vpop.f32.mrf.mxu0
  %v432 = vadd.f32 %v329, %v431
  %v433 = vpop.f32.mrf.mxu0
  %v434 = vadd.f32 %v329, %v433
  %435 = vmatmul.bf16.gmra.mxu0 %v396
  %v436 = vpop.f32.mrf.mxu0
  %v437 = vadd.f32 %v329, %v436
  %v438 = vpop.f32.mrf.mxu0
  %v439 = vadd.f32 %v329, %v438
  %440 = vmatmul.bf16.gmra.mxu0 %v399
  %v441 = vpop.f32.mrf.mxu0
  %v442 = vadd.f32 %v329, %v441
  %v443 = vpop.f32.mrf.mxu0
  %v444 = vadd.f32 %v329, %v443
  %445 = vmatmul.bf16.gmra.mxu0 %v402
  %v446 = vpop.f32.mrf.mxu0
  %v447 = vadd.f32 %v329, %v446
  %v448 = vpop.f32.mrf.mxu0
  %v449 = vadd.f32 %v329, %v448
  %450 = vmatmul.bf16.gmra.mxu0 %v405
  %v451 = vpop.f32.mrf.mxu0
  %v452 = vadd.f32 %v329, %v451
  %v453 = vpop.f32.mrf.mxu0
  %v454 = vadd.f32 %v329, %v453
  %455 = vdwg.mxu0
  %v456 = vpack.c.bf16 %v417, %v417
  %v457 = vpack.c.bf16 %v419, %v419
  %v458 = vpack.c.bf16 %v422, %v422
  %v459 = vpack.c.bf16 %v424, %v424
  %v460 = vpack.c.bf16 %v427, %v427
  %v461 = vpack.c.bf16 %v429, %v429
  %v462 = vpack.c.bf16 %v432, %v432
  %v463 = vpack.c.bf16 %v434, %v434
  %v464 = vpack.c.bf16 %v437, %v437
  %v465 = vpack.c.bf16 %v439, %v439
  %v466 = vpack.c.bf16 %v442, %v442
  %v467 = vpack.c.bf16 %v444, %v444
  %v468 = vpack.c.bf16 %v447, %v447
  %v469 = vpack.c.bf16 %v449, %v449
  %v470 = vpack.c.bf16 %v452, %v452
  %v471 = vpack.c.bf16 %v454, %v454
  %v472 = vadd.f32 %v87, %v89
  %v473 = vadd.f32 %v88, %v90
  %v474 = vpack.c.bf16 %v472, %v472
  %v475 = vpack.c.bf16 %v473, %v473
  %v476 = vld [vmem:[%s5] sm:$0xf]
  %v477 = vld [vmem:[%s5 + $0x4] sm:$0xf]
  %v478 = vld [vmem:[%s5 + $0x8] sm:$0xf]
  %v479 = vld [vmem:[%s5 + $0xc] sm:$0xf]
  %v480 = vld [vmem:[%s6] sm:$0x1]
  %v482 = vperm.slane %v480, 0
  %v486 = vunpack.c.l.b16 %v474
  %v487 = vunpack.c.l.b16 %v475
  %v488 = vpack.c.b16 %v487, %v486
  %v493 = vunpack.c.l.b16 %v476
  %v494 = vunpack.c.l.b16 %v477
  %v495 = vunpack.c.l.b16 %v478
  %v496 = vunpack.c.l.b16 %v479
  %v497 = vpack.c.b16 %v494, %v493
  %v498 = vpack.c.b16 %v496, %v495
  %v502 = vsel %vm233, %v488, 0
  %504 = vmatpush.bf16.msra.mxu0 0
  %505 = vmatpush.bf16.msra.mxu0 0
  %506 = vmatpush.bf16.msra.mxu0 0
  %507 = vmatpush.bf16.msra.mxu0 0
  %508 = vmatpush.bf16.msra.mxu0 0
  %509 = vmatpush.bf16.msra.mxu0 0
  %510 = vmatpush.bf16.msra.mxu0 %v498
  %511 = vmatpush.bf16.msra.mxu0 %v497
  %512 = vmatmul.bf16.gmra.mxu0 %v502
  %v513 = vpop.f32.mrf.mxu0
  %v514 = vadd.f32 %v482, %v513
  %v515 = vpop.f32.mrf.mxu0
  %v516 = vadd.f32 %v482, %v515
  %517 = vdwg.mxu0
  %v518 = vpack.c.bf16 %v514, %v514
  %v519 = vpack.c.bf16 %v516, %v516
  %v520 = vpack.c.bf16 %v87, %v87
  %v521 = vpack.c.bf16 %v88, %v88
  %v522 = vld [vmem:[%s7] sm:$0xf]
  %v523 = vld [vmem:[%s7 + $0x4] sm:$0xf]
  %v524 = vld [vmem:[%s7 + $0x8] sm:$0xf]
  %v525 = vld [vmem:[%s7 + $0xc] sm:$0xf]
  %v526 = vld [vmem:[%s8] sm:$0x1]
  %v528 = vperm.slane %v526, 0
  %v532 = vunpack.c.l.b16 %v520
  %v533 = vunpack.c.l.b16 %v521
  %v534 = vpack.c.b16 %v533, %v532
  %v539 = vunpack.c.l.b16 %v522
  %v540 = vunpack.c.l.b16 %v523
  %v541 = vunpack.c.l.b16 %v524
  %v542 = vunpack.c.l.b16 %v525
  %v543 = vpack.c.b16 %v540, %v539
  %v544 = vpack.c.b16 %v542, %v541
  %v548 = vsel %vm233, %v534, 0
  %550 = vmatpush.bf16.msra.mxu0 0
  %551 = vmatpush.bf16.msra.mxu0 0
  %552 = vmatpush.bf16.msra.mxu0 0
  %553 = vmatpush.bf16.msra.mxu0 0
  %554 = vmatpush.bf16.msra.mxu0 0
  %555 = vmatpush.bf16.msra.mxu0 0
  %556 = vmatpush.bf16.msra.mxu0 %v544
  %557 = vmatpush.bf16.msra.mxu0 %v543
  %558 = vmatmul.bf16.gmra.mxu0 %v548
  %v559 = vpop.f32.mrf.mxu0
  %v560 = vadd.f32 %v528, %v559
  %v561 = vpop.f32.mrf.mxu0
  %v562 = vadd.f32 %v528, %v561
  %563 = vdwg.mxu0
  %v564 = vpack.c.bf16 %v560, %v560
  %v565 = vpack.c.bf16 %v562, %v562
  %v566 = vld [vmem:[%s9] sm:$0xf]
  %v567 = vld [vmem:[%s9 + $0x4] sm:$0xf]
  %v568 = vld [vmem:[%s9 + $0x8] sm:$0xf]
  %v569 = vld [vmem:[%s9 + $0xc] sm:$0xf]
  %v570 = vld [vmem:[%s10] sm:$0x1]
  %v572 = vunpack.c.l.b16 %v518
  %v573 = vpack.c.b16 %v572, %v572
  %574 = vrot.lane.b32.xlu0 %v573, 96
  %v575 = vpop.permute.xlu0 %574
  %vm576 = vcmask 64512
  %v578 = vsel %vm576, %v518, 0
  %v581 = vsel %vm576, %v575, 0
  %583 = vmatpush.bf16.xpose.msra.mxu0 0
  %584 = vmatpush.bf16.xpose.msra.mxu0 0
  %585 = vmatpush.bf16.xpose.msra.mxu0 0
  %586 = vmatpush.bf16.xpose.msra.mxu0 0
  %587 = vmatpush.bf16.xpose.msra.mxu0 0
  %588 = vmatpush.bf16.xpose.msra.mxu0 0
  %589 = vmatpush.bf16.xpose.msra.mxu0 0
  %590 = vmatpush.bf16.xpose.msra.mxu0 %v581
  %591 = vmatmul.bf16.gmra.mxu0 %v578
  %v592 = vpop.f32.mrf.mxu0
  %v593 = vadd.f32 0.0, %v592
  %v594 = vpop.f32.mrf.mxu0
  %595 = vdwg.mxu0
  %v597 = vunpack.c.l.b16 %v519
  %v598 = vpack.c.b16 %v597, %v597
  %599 = vrot.lane.b32.xlu0 %v598, 96
  %v600 = vpop.permute.xlu0 %599
  %v602 = vsel %vm576, %v519, 0
  %v605 = vsel %vm576, %v600, 0
  %607 = vmatpush.bf16.xpose.msra.mxu0 0
  %608 = vmatpush.bf16.xpose.msra.mxu0 0
  %609 = vmatpush.bf16.xpose.msra.mxu0 0
  %610 = vmatpush.bf16.xpose.msra.mxu0 0
  %611 = vmatpush.bf16.xpose.msra.mxu0 0
  %612 = vmatpush.bf16.xpose.msra.mxu0 0
  %613 = vmatpush.bf16.xpose.msra.mxu0 0
  %614 = vmatpush.bf16.xpose.msra.mxu0 %v605
  %615 = vmatmul.bf16.gmra.mxu0 %v602
  %v616 = vpop.f32.mrf.mxu0
  %v617 = vadd.f32 0.0, %v616
  %v618 = vpop.f32.mrf.mxu0
  %619 = vdwg.mxu0
  %v620 = vsel %vm576, %v593, -inf
  %621 = vmax.xlane.f32.xlu0 %v620
  %v622 = vpop.xlane.xlu0 %621
  %v623 = vsel %vm576, %v617, -inf
  %624 = vmax.xlane.f32.xlu0 %v623
  %v625 = vpop.xlane.xlu0 %624
  %v626 = vsub.f32 %v593, %v622
  %v627 = vsub.f32 %v617, %v625
  %v628 = vmul.f32 %v626, 1.442695
  %v629 = vpow.pop %v628
  %v630 = vmul.f32 %v627, 1.442695
  %v631 = vpow.pop %v630
  %v632 = vsel %vm576, %v629, 0.0
  %633 = vadd.xlane.f32.xlu0 %v632
  %v634 = vpop.xlane.xlu0 %633
  %v635 = vsel %vm576, %v631, 0.0
  %636 = vadd.xlane.f32.xlu0 %v635
  %v637 = vpop.xlane.xlu0 %636
  %v638 = vpack.c.bf16 %v629, %v629
  %v639 = vpack.c.bf16 %v631, %v631
  %v641 = vsel %vm576, %v638, 0
  %vm643 = vcmask 1043456
  %v645 = vsel %vm643, %v564, 0
  %647 = vmatpush.bf16.msra.mxu0 0
  %648 = vmatpush.bf16.msra.mxu0 0
  %649 = vmatpush.bf16.msra.mxu0 0
  %650 = vmatpush.bf16.msra.mxu0 0
  %651 = vmatpush.bf16.msra.mxu0 0
  %652 = vmatpush.bf16.msra.mxu0 0
  %653 = vmatpush.bf16.msra.mxu0 0
  %654 = vmatpush.bf16.msra.mxu0 %v645
  %655 = vmatmul.bf16.gmra.mxu0 %v641
  %v656 = vpop.f32.mrf.mxu0
  %v657 = vadd.f32 0.0, %v656
  %v658 = vpop.f32.mrf.mxu0
  %659 = vdwg.mxu0
  %v661 = vsel %vm576, %v639, 0
  %v664 = vsel %vm643, %v565, 0
  %666 = vmatpush.bf16.msra.mxu0 0
  %667 = vmatpush.bf16.msra.mxu0 0
  %668 = vmatpush.bf16.msra.mxu0 0
  %669 = vmatpush.bf16.msra.mxu0 0
  %670 = vmatpush.bf16.msra.mxu0 0
  %671 = vmatpush.bf16.msra.mxu0 0
  %672 = vmatpush.bf16.msra.mxu0 0
  %673 = vmatpush.bf16.msra.mxu0 %v664
  %674 = vmatmul.bf16.gmra.mxu0 %v661
  %v675 = vpop.f32.mrf.mxu0
  %v676 = vadd.f32 0.0, %v675
  %v677 = vpop.f32.mrf.mxu0
  %678 = vdwg.mxu0
  %v679 = vrcp.pop %v634
  %v680 = vrcp.pop %v637
  %v681 = vmul.f32 %v657, %v679
  %v682 = vmul.f32 %v676, %v680
  %v683 = vpack.c.bf16 %v681, %v681
  %v684 = vpack.c.bf16 %v682, %v682
  %685 = vrot.lane.b32.xlu0 %v573, 120
  %v686 = vpop.permute.xlu0 %685
  %687 = vrot.lane.b32.xlu0 %v573, 88
  %v688 = vpop.permute.xlu0 %687
  %v690 = vsel %vm576, %v686, 0
  %v693 = vsel %vm576, %v688, 0
  %695 = vmatpush.bf16.xpose.msra.mxu0 0
  %696 = vmatpush.bf16.xpose.msra.mxu0 0
  %697 = vmatpush.bf16.xpose.msra.mxu0 0
  %698 = vmatpush.bf16.xpose.msra.mxu0 0
  %699 = vmatpush.bf16.xpose.msra.mxu0 0
  %700 = vmatpush.bf16.xpose.msra.mxu0 0
  %701 = vmatpush.bf16.xpose.msra.mxu0 0
  %702 = vmatpush.bf16.xpose.msra.mxu0 %v693
  %703 = vmatmul.bf16.gmra.mxu0 %v690
  %v704 = vpop.f32.mrf.mxu0
  %v705 = vadd.f32 0.0, %v704
  %v706 = vpop.f32.mrf.mxu0
  %707 = vdwg.mxu0
  %708 = vrot.lane.b32.xlu0 %v598, 120
  %v709 = vpop.permute.xlu0 %708
  %710 = vrot.lane.b32.xlu0 %v598, 88
  %v711 = vpop.permute.xlu0 %710
  %v713 = vsel %vm576, %v709, 0
  %v716 = vsel %vm576, %v711, 0
  %718 = vmatpush.bf16.xpose.msra.mxu0 0
  %719 = vmatpush.bf16.xpose.msra.mxu0 0
  %720 = vmatpush.bf16.xpose.msra.mxu0 0
  %721 = vmatpush.bf16.xpose.msra.mxu0 0
  %722 = vmatpush.bf16.xpose.msra.mxu0 0
  %723 = vmatpush.bf16.xpose.msra.mxu0 0
  %724 = vmatpush.bf16.xpose.msra.mxu0 0
  %725 = vmatpush.bf16.xpose.msra.mxu0 %v716
  %726 = vmatmul.bf16.gmra.mxu0 %v713
  %v727 = vpop.f32.mrf.mxu0
  %v728 = vadd.f32 0.0, %v727
  %v729 = vpop.f32.mrf.mxu0
  %730 = vdwg.mxu0
  %v731 = vsel %vm576, %v705, -inf
  %732 = vmax.xlane.f32.xlu0 %v731
  %v733 = vpop.xlane.xlu0 %732
  %v734 = vsel %vm576, %v728, -inf
  %735 = vmax.xlane.f32.xlu0 %v734
  %v736 = vpop.xlane.xlu0 %735
  %v737 = vsub.f32 %v705, %v733
  %v738 = vsub.f32 %v728, %v736
  %v739 = vmul.f32 %v737, 1.442695
  %v740 = vpow.pop %v739
  %v741 = vmul.f32 %v738, 1.442695
  %v742 = vpow.pop %v741
  %v743 = vsel %vm576, %v740, 0.0
  %744 = vadd.xlane.f32.xlu0 %v743
  %v745 = vpop.xlane.xlu0 %744
  %v746 = vsel %vm576, %v742, 0.0
  %747 = vadd.xlane.f32.xlu0 %v746
  %v748 = vpop.xlane.xlu0 %747
  %v749 = vpack.c.bf16 %v740, %v740
  %v750 = vpack.c.bf16 %v742, %v742
  %v752 = vunpack.c.l.b16 %v564
  %v753 = vpack.c.b16 %v752, %v752
  %754 = vrot.lane.b32.xlu0 %v753, 120
  %v755 = vpop.permute.xlu0 %754
  %v757 = vsel %vm576, %v749, 0
  %v760 = vsel %vm643, %v755, 0
  %762 = vmatpush.bf16.msra.mxu0 0
  %763 = vmatpush.bf16.msra.mxu0 0
  %764 = vmatpush.bf16.msra.mxu0 0
  %765 = vmatpush.bf16.msra.mxu0 0
  %766 = vmatpush.bf16.msra.mxu0 0
  %767 = vmatpush.bf16.msra.mxu0 0
  %768 = vmatpush.bf16.msra.mxu0 0
  %769 = vmatpush.bf16.msra.mxu0 %v760
  %770 = vmatmul.bf16.gmra.mxu0 %v757
  %v771 = vpop.f32.mrf.mxu0
  %v772 = vadd.f32 0.0, %v771
  %v773 = vpop.f32.mrf.mxu0
  %774 = vdwg.mxu0
  %v776 = vunpack.c.l.b16 %v565
  %v777 = vpack.c.b16 %v776, %v776
  %778 = vrot.lane.b32.xlu0 %v777, 120
  %v779 = vpop.permute.xlu0 %778
  %v781 = vsel %vm576, %v750, 0
  %v784 = vsel %vm643, %v779, 0
  %786 = vmatpush.bf16.msra.mxu0 0
  %787 = vmatpush.bf16.msra.mxu0 0
  %788 = vmatpush.bf16.msra.mxu0 0
  %789 = vmatpush.bf16.msra.mxu0 0
  %790 = vmatpush.bf16.msra.mxu0 0
  %791 = vmatpush.bf16.msra.mxu0 0
  %792 = vmatpush.bf16.msra.mxu0 0
  %793 = vmatpush.bf16.msra.mxu0 %v784
  %794 = vmatmul.bf16.gmra.mxu0 %v781
  %v795 = vpop.f32.mrf.mxu0
  %v796 = vadd.f32 0.0, %v795
  %v797 = vpop.f32.mrf.mxu0
  %798 = vdwg.mxu0
  %v799 = vrcp.pop %v745
  %v800 = vrcp.pop %v748
  %v801 = vmul.f32 %v772, %v799
  %v802 = vmul.f32 %v796, %v800
  %v803 = vpack.c.bf16 %v801, %v801
  %v804 = vpack.c.bf16 %v802, %v802
  %v807 = vunpack.c.l.b16 %v803
  %v808 = vunpack.c.l.b16 %v804
  %v809 = vpack.c.b16 %v808, %v807
  %v811 = vsel %vm576, %v809, 0
  %v814 = vsel %vm643, %v567, 0
  %816 = vmatpush.bf16.msra.mxu0 0
  %817 = vmatpush.bf16.msra.mxu0 0
  %818 = vmatpush.bf16.msra.mxu0 0
  %819 = vmatpush.bf16.msra.mxu0 0
  %820 = vmatpush.bf16.msra.mxu0 0
  %821 = vmatpush.bf16.msra.mxu0 0
  %822 = vmatpush.bf16.msra.mxu0 0
  %823 = vmatpush.bf16.msra.mxu0 %v814
  %824 = vmatmul.bf16.gmra.mxu0 %v811
  %v825 = vpop.f32.mrf.mxu0
  %v826 = vadd.f32 0.0, %v825
  %v827 = vpop.f32.mrf.mxu0
  %v828 = vadd.f32 0.0, %v827
  %829 = vdwg.mxu0
  %v832 = vunpack.c.l.b16 %v683
  %v833 = vunpack.c.l.b16 %v684
  %v834 = vpack.c.b16 %v833, %v832
  %v836 = vsel %vm576, %v834, 0
  %v839 = vsel %vm643, %v566, 0
  %841 = vmatpush.bf16.msra.mxu0 0
  %842 = vmatpush.bf16.msra.mxu0 0
  %843 = vmatpush.bf16.msra.mxu0 0
  %844 = vmatpush.bf16.msra.mxu0 0
  %845 = vmatpush.bf16.msra.mxu0 0
  %846 = vmatpush.bf16.msra.mxu0 0
  %847 = vmatpush.bf16.msra.mxu0 0
  %848 = vmatpush.bf16.msra.mxu0 %v839
  %849 = vmatmul.bf16.gmra.mxu0 %v836
  %v850 = vpop.f32.mrf.mxu0
  %v851 = vadd.f32 %v826, %v850
  %v852 = vpop.f32.mrf.mxu0
  %v853 = vadd.f32 %v828, %v852
  %854 = vdwg.mxu0
  %855 = vrot.lane.b32.xlu0 %v573, 112
  %v856 = vpop.permute.xlu0 %855
  %857 = vrot.lane.b32.xlu0 %v573, 80
  %v858 = vpop.permute.xlu0 %857
  %v860 = vsel %vm576, %v856, 0
  %v863 = vsel %vm576, %v858, 0
  %865 = vmatpush.bf16.xpose.msra.mxu0 0
  %866 = vmatpush.bf16.xpose.msra.mxu0 0
  %867 = vmatpush.bf16.xpose.msra.mxu0 0
  %868 = vmatpush.bf16.xpose.msra.mxu0 0
  %869 = vmatpush.bf16.xpose.msra.mxu0 0
  %870 = vmatpush.bf16.xpose.msra.mxu0 0
  %871 = vmatpush.bf16.xpose.msra.mxu0 0
  %872 = vmatpush.bf16.xpose.msra.mxu0 %v863
  %873 = vmatmul.bf16.gmra.mxu0 %v860
  %v874 = vpop.f32.mrf.mxu0
  %v875 = vadd.f32 0.0, %v874
  %v876 = vpop.f32.mrf.mxu0
  %877 = vdwg.mxu0
  %878 = vrot.lane.b32.xlu0 %v598, 112
  %v879 = vpop.permute.xlu0 %878
  %880 = vrot.lane.b32.xlu0 %v598, 80
  %v881 = vpop.permute.xlu0 %880
  %v883 = vsel %vm576, %v879, 0
  %v886 = vsel %vm576, %v881, 0
  %888 = vmatpush.bf16.xpose.msra.mxu0 0
  %889 = vmatpush.bf16.xpose.msra.mxu0 0
  %890 = vmatpush.bf16.xpose.msra.mxu0 0
  %891 = vmatpush.bf16.xpose.msra.mxu0 0
  %892 = vmatpush.bf16.xpose.msra.mxu0 0
  %893 = vmatpush.bf16.xpose.msra.mxu0 0
  %894 = vmatpush.bf16.xpose.msra.mxu0 0
  %895 = vmatpush.bf16.xpose.msra.mxu0 %v886
  %896 = vmatmul.bf16.gmra.mxu0 %v883
  %v897 = vpop.f32.mrf.mxu0
  %v898 = vadd.f32 0.0, %v897
  %v899 = vpop.f32.mrf.mxu0
  %900 = vdwg.mxu0
  %v901 = vsel %vm576, %v875, -inf
  %902 = vmax.xlane.f32.xlu0 %v901
  %v903 = vpop.xlane.xlu0 %902
  %v904 = vsel %vm576, %v898, -inf
  %905 = vmax.xlane.f32.xlu0 %v904
  %v906 = vpop.xlane.xlu0 %905
  %v907 = vsub.f32 %v875, %v903
  %v908 = vsub.f32 %v898, %v906
  %v909 = vmul.f32 %v907, 1.442695
  %v910 = vpow.pop %v909
  %v911 = vmul.f32 %v908, 1.442695
  %v912 = vpow.pop %v911
  %v913 = vsel %vm576, %v910, 0.0
  %914 = vadd.xlane.f32.xlu0 %v913
  %v915 = vpop.xlane.xlu0 %914
  %v916 = vsel %vm576, %v912, 0.0
  %917 = vadd.xlane.f32.xlu0 %v916
  %v918 = vpop.xlane.xlu0 %917
  %v919 = vpack.c.bf16 %v910, %v910
  %v920 = vpack.c.bf16 %v912, %v912
  %921 = vrot.lane.b32.xlu0 %v753, 112
  %v922 = vpop.permute.xlu0 %921
  %v924 = vsel %vm576, %v919, 0
  %v927 = vsel %vm643, %v922, 0
  %929 = vmatpush.bf16.msra.mxu0 0
  %930 = vmatpush.bf16.msra.mxu0 0
  %931 = vmatpush.bf16.msra.mxu0 0
  %932 = vmatpush.bf16.msra.mxu0 0
  %933 = vmatpush.bf16.msra.mxu0 0
  %934 = vmatpush.bf16.msra.mxu0 0
  %935 = vmatpush.bf16.msra.mxu0 0
  %936 = vmatpush.bf16.msra.mxu0 %v927
  %937 = vmatmul.bf16.gmra.mxu0 %v924
  %v938 = vpop.f32.mrf.mxu0
  %v939 = vadd.f32 0.0, %v938
  %v940 = vpop.f32.mrf.mxu0
  %941 = vdwg.mxu0
  %942 = vrot.lane.b32.xlu0 %v777, 112
  %v943 = vpop.permute.xlu0 %942
  %v945 = vsel %vm576, %v920, 0
  %v948 = vsel %vm643, %v943, 0
  %950 = vmatpush.bf16.msra.mxu0 0
  %951 = vmatpush.bf16.msra.mxu0 0
  %952 = vmatpush.bf16.msra.mxu0 0
  %953 = vmatpush.bf16.msra.mxu0 0
  %954 = vmatpush.bf16.msra.mxu0 0
  %955 = vmatpush.bf16.msra.mxu0 0
  %956 = vmatpush.bf16.msra.mxu0 0
  %957 = vmatpush.bf16.msra.mxu0 %v948
  %958 = vmatmul.bf16.gmra.mxu0 %v945
  %v959 = vpop.f32.mrf.mxu0
  %v960 = vadd.f32 0.0, %v959
  %v961 = vpop.f32.mrf.mxu0
  %962 = vdwg.mxu0
  %v963 = vrcp.pop %v915
  %v964 = vrcp.pop %v918
  %v965 = vmul.f32 %v939, %v963
  %v966 = vmul.f32 %v960, %v964
  %v967 = vpack.c.bf16 %v965, %v965
  %v968 = vpack.c.bf16 %v966, %v966
  %v971 = vunpack.c.l.b16 %v967
  %v972 = vunpack.c.l.b16 %v968
  %v973 = vpack.c.b16 %v972, %v971
  %v975 = vsel %vm576, %v973, 0
  %v978 = vsel %vm643, %v568, 0
  %980 = vmatpush.bf16.msra.mxu0 0
  %981 = vmatpush.bf16.msra.mxu0 0
  %982 = vmatpush.bf16.msra.mxu0 0
  %983 = vmatpush.bf16.msra.mxu0 0
  %984 = vmatpush.bf16.msra.mxu0 0
  %985 = vmatpush.bf16.msra.mxu0 0
  %986 = vmatpush.bf16.msra.mxu0 0
  %987 = vmatpush.bf16.msra.mxu0 %v978
  %988 = vmatmul.bf16.gmra.mxu0 %v975
  %v989 = vpop.f32.mrf.mxu0
  %v990 = vadd.f32 0.0, %v989
  %v991 = vpop.f32.mrf.mxu0
  %v992 = vadd.f32 0.0, %v991
  %993 = vdwg.mxu0
  %v994 = vadd.f32 %v851, %v990
  %v995 = vadd.f32 %v853, %v992
  %996 = vrot.lane.b32.xlu0 %v573, 104
  %v997 = vpop.permute.xlu0 %996
  %998 = vrot.lane.b32.xlu0 %v573, 72
  %v999 = vpop.permute.xlu0 %998
  %v1001 = vsel %vm576, %v997, 0
  %v1004 = vsel %vm576, %v999, 0
  %1006 = vmatpush.bf16.xpose.msra.mxu0 0
  %1007 = vmatpush.bf16.xpose.msra.mxu0 0
  %1008 = vmatpush.bf16.xpose.msra.mxu0 0
  %1009 = vmatpush.bf16.xpose.msra.mxu0 0
  %1010 = vmatpush.bf16.xpose.msra.mxu0 0
  %1011 = vmatpush.bf16.xpose.msra.mxu0 0
  %1012 = vmatpush.bf16.xpose.msra.mxu0 0
  %1013 = vmatpush.bf16.xpose.msra.mxu0 %v1004
  %1014 = vmatmul.bf16.gmra.mxu0 %v1001
  %v1015 = vpop.f32.mrf.mxu0
  %v1016 = vadd.f32 0.0, %v1015
  %v1017 = vpop.f32.mrf.mxu0
  %1018 = vdwg.mxu0
  %1019 = vrot.lane.b32.xlu0 %v598, 104
  %v1020 = vpop.permute.xlu0 %1019
  %1021 = vrot.lane.b32.xlu0 %v598, 72
  %v1022 = vpop.permute.xlu0 %1021
  %v1024 = vsel %vm576, %v1020, 0
  %v1027 = vsel %vm576, %v1022, 0
  %1029 = vmatpush.bf16.xpose.msra.mxu0 0
  %1030 = vmatpush.bf16.xpose.msra.mxu0 0
  %1031 = vmatpush.bf16.xpose.msra.mxu0 0
  %1032 = vmatpush.bf16.xpose.msra.mxu0 0
  %1033 = vmatpush.bf16.xpose.msra.mxu0 0
  %1034 = vmatpush.bf16.xpose.msra.mxu0 0
  %1035 = vmatpush.bf16.xpose.msra.mxu0 0
  %1036 = vmatpush.bf16.xpose.msra.mxu0 %v1027
  %1037 = vmatmul.bf16.gmra.mxu0 %v1024
  %v1038 = vpop.f32.mrf.mxu0
  %v1039 = vadd.f32 0.0, %v1038
  %v1040 = vpop.f32.mrf.mxu0
  %1041 = vdwg.mxu0
  %v1042 = vsel %vm576, %v1016, -inf
  %1043 = vmax.xlane.f32.xlu0 %v1042
  %v1044 = vpop.xlane.xlu0 %1043
  %v1045 = vsel %vm576, %v1039, -inf
  %1046 = vmax.xlane.f32.xlu0 %v1045
  %v1047 = vpop.xlane.xlu0 %1046
  %v1048 = vsub.f32 %v1016, %v1044
  %v1049 = vsub.f32 %v1039, %v1047
  %v1050 = vmul.f32 %v1048, 1.442695
  %v1051 = vpow.pop %v1050
  %v1052 = vmul.f32 %v1049, 1.442695
  %v1053 = vpow.pop %v1052
  %v1054 = vsel %vm576, %v1051, 0.0
  %1055 = vadd.xlane.f32.xlu0 %v1054
  %v1056 = vpop.xlane.xlu0 %1055
  %v1057 = vsel %vm576, %v1053, 0.0
  %1058 = vadd.xlane.f32.xlu0 %v1057
  %v1059 = vpop.xlane.xlu0 %1058
  %v1060 = vpack.c.bf16 %v1051, %v1051
  %v1061 = vpack.c.bf16 %v1053, %v1053
  %1062 = vrot.lane.b32.xlu0 %v753, 104
  %v1063 = vpop.permute.xlu0 %1062
  %v1065 = vsel %vm576, %v1060, 0
  %v1068 = vsel %vm643, %v1063, 0
  %1070 = vmatpush.bf16.msra.mxu0 0
  %1071 = vmatpush.bf16.msra.mxu0 0
  %1072 = vmatpush.bf16.msra.mxu0 0
  %1073 = vmatpush.bf16.msra.mxu0 0
  %1074 = vmatpush.bf16.msra.mxu0 0
  %1075 = vmatpush.bf16.msra.mxu0 0
  %1076 = vmatpush.bf16.msra.mxu0 0
  %1077 = vmatpush.bf16.msra.mxu0 %v1068
  %1078 = vmatmul.bf16.gmra.mxu0 %v1065
  %v1079 = vpop.f32.mrf.mxu0
  %v1080 = vadd.f32 0.0, %v1079
  %v1081 = vpop.f32.mrf.mxu0
  %1082 = vdwg.mxu0
  %1083 = vrot.lane.b32.xlu0 %v777, 104
  %v1084 = vpop.permute.xlu0 %1083
  %v1086 = vsel %vm576, %v1061, 0
  %v1089 = vsel %vm643, %v1084, 0
  %1091 = vmatpush.bf16.msra.mxu0 0
  %1092 = vmatpush.bf16.msra.mxu0 0
  %1093 = vmatpush.bf16.msra.mxu0 0
  %1094 = vmatpush.bf16.msra.mxu0 0
  %1095 = vmatpush.bf16.msra.mxu0 0
  %1096 = vmatpush.bf16.msra.mxu0 0
  %1097 = vmatpush.bf16.msra.mxu0 0
  %1098 = vmatpush.bf16.msra.mxu0 %v1089
  %1099 = vmatmul.bf16.gmra.mxu0 %v1086
  %v1100 = vpop.f32.mrf.mxu0
  %v1101 = vadd.f32 0.0, %v1100
  %v1102 = vpop.f32.mrf.mxu0
  %1103 = vdwg.mxu0
  %v1104 = vrcp.pop %v1056
  %v1105 = vrcp.pop %v1059
  %v1106 = vmul.f32 %v1080, %v1104
  %v1107 = vmul.f32 %v1101, %v1105
  %v1108 = vpack.c.bf16 %v1106, %v1106
  %v1109 = vpack.c.bf16 %v1107, %v1107
  %v1112 = vunpack.c.l.b16 %v1108
  %v1113 = vunpack.c.l.b16 %v1109
  %v1114 = vpack.c.b16 %v1113, %v1112
  %v1116 = vsel %vm576, %v1114, 0
  %v1119 = vsel %vm643, %v569, 0
  %1121 = vmatpush.bf16.msra.mxu0 0
  %1122 = vmatpush.bf16.msra.mxu0 0
  %1123 = vmatpush.bf16.msra.mxu0 0
  %1124 = vmatpush.bf16.msra.mxu0 0
  %1125 = vmatpush.bf16.msra.mxu0 0
  %1126 = vmatpush.bf16.msra.mxu0 0
  %1127 = vmatpush.bf16.msra.mxu0 0
  %1128 = vmatpush.bf16.msra.mxu0 %v1119
  %1129 = vmatmul.bf16.gmra.mxu0 %v1116
  %v1130 = vpop.f32.mrf.mxu0
  %v1131 = vadd.f32 0.0, %v1130
  %v1132 = vpop.f32.mrf.mxu0
  %v1133 = vadd.f32 0.0, %v1132
  %1134 = vdwg.mxu0
  %v1135 = vadd.f32 %v994, %v1131
  %v1136 = vadd.f32 %v995, %v1133
  %v1138 = vperm.slane %v570, 0
  %v1140 = vadd.f32 %v1135, %v1138
  %v1141 = vadd.f32 %v1136, %v1138
  %v1142 = vld [vmem:[%s23] sm:$0x3]
  %v1143 = vadd.f32 %v87, %v1140
  %v1144 = vadd.f32 %v88, %v1141
  %v1145 = vsel %vm233, %v1143, 0.0
  %1146 = vadd.xlane.f32.xlu0 %v1145
  %v1147 = vpop.xlane.xlu0 %1146
  %v1148 = vsel %vm233, %v1144, 0.0
  %1149 = vadd.xlane.f32.xlu0 %v1148
  %v1150 = vpop.xlane.xlu0 %1149
  %v1151 = vrcp.pop 32.0
  %v1152 = vmul.f32 32.0, %v1151
  %v1153 = vsub.f32 1.0, %v1152
  %v1154 = vmul.f32 %v1151, %v1153
  %v1155 = vadd.f32 %v1151, %v1154
  %vm1156 = vweird.f32 %v1151
  %v1157 = vsel %vm1156, %v1151, %v1155
  %v1158 = vmul.f32 %v1147, %v1157
  %v1159 = vmul.f32 %v1150, %v1157
  %v1160 = vsub.f32 %v1143, %v1158
  %v1161 = vsub.f32 %v1144, %v1159
  %v1162 = vmul.f32 %v1160, %v1160
  %v1163 = vmul.f32 %v1161, %v1161
  %v1164 = vsel %vm233, %v1162, 0.0
  %1165 = vadd.xlane.f32.xlu0 %v1164
  %v1166 = vpop.xlane.xlu0 %1165
  %v1167 = vsel %vm233, %v1163, 0.0
  %1168 = vadd.xlane.f32.xlu0 %v1167
  %v1169 = vpop.xlane.xlu0 %1168
  %v1170 = vmul.f32 %v1166, %v1157
  %v1171 = vmul.f32 %v1169, %v1157
  %v1172 = vadd.f32 %v1170, 1e-05
  %v1173 = vadd.f32 %v1171, 1e-05
  %v1174 = vrsqrt.pop %v1172
  %v1175 = vmul.f32 %v1174, %v1172
  %v1176 = vmul.f32 %v1175, %v1174
  %v1177 = vmul.f32 0.5, %v1176
  %v1178 = vsub.f32 1.5, %v1177
  %v1179 = vmul.f32 %v1174, %v1178
  %vm1180 = vweird.f32 %v1172
  %vm1181 = vweird.f32 %v1174
  %vm1182 = vmor %vm1180, %vm1181
  %v1183 = vsel %vm1182, %v1174, %v1179
  %v1184 = vrsqrt.pop %v1173
  %v1185 = vmul.f32 %v1184, %v1173
  %v1186 = vmul.f32 %v1185, %v1184
  %v1187 = vmul.f32 0.5, %v1186
  %v1188 = vsub.f32 1.5, %v1187
  %v1189 = vmul.f32 %v1184, %v1188
  %vm1190 = vweird.f32 %v1173
  %vm1191 = vweird.f32 %v1184
  %vm1192 = vmor %vm1190, %vm1191
  %v1193 = vsel %vm1192, %v1184, %v1189
  %v1194 = vmul.f32 %v1160, %v1183
  %v1195 = vmul.f32 %v1161, %v1193
  %v1196 = vperm.slane %v1142, 0
  %v1197 = vmul.f32 %v1194, %v1196
  %v1198 = vmul.f32 %v1195, %v1196
  %v1199 = vperm.slane %v1142, 1
  %v1200 = vadd.f32 %v1197, %v1199
  %v1201 = vadd.f32 %v1198, %v1199
  %v1202 = vadd.f32 %v1200, %v89
  %v1203 = vadd.f32 %v1201, %v90
  %v1204 = vpack.c.bf16 %v1202, %v1202
  %v1205 = vpack.c.bf16 %v1203, %v1203
  %v1206 = vld [vmem:[%s11] sm:$0xf]
  %v1207 = vld [vmem:[%s11 + $0x4] sm:$0xf]
  %v1208 = vld [vmem:[%s11 + $0x8] sm:$0xf]
  %v1209 = vld [vmem:[%s11 + $0xc] sm:$0xf]
  %v1210 = vld [vmem:[%s12] sm:$0x1]
  %v1212 = vperm.slane %v1210, 0
  %v1216 = vunpack.c.l.b16 %v1204
  %v1217 = vunpack.c.l.b16 %v1205
  %v1218 = vpack.c.b16 %v1217, %v1216
  %v1223 = vunpack.c.l.b16 %v1206
  %v1224 = vunpack.c.l.b16 %v1207
  %v1225 = vunpack.c.l.b16 %v1208
  %v1226 = vunpack.c.l.b16 %v1209
  %v1227 = vpack.c.b16 %v1224, %v1223
  %v1228 = vpack.c.b16 %v1226, %v1225
  %v1232 = vsel %vm233, %v1218, 0
  %1234 = vmatpush.bf16.msra.mxu0 0
  %1235 = vmatpush.bf16.msra.mxu0 0
  %1236 = vmatpush.bf16.msra.mxu0 0
  %1237 = vmatpush.bf16.msra.mxu0 0
  %1238 = vmatpush.bf16.msra.mxu0 0
  %1239 = vmatpush.bf16.msra.mxu0 0
  %1240 = vmatpush.bf16.msra.mxu0 %v1228
  %1241 = vmatpush.bf16.msra.mxu0 %v1227
  %1242 = vmatmul.bf16.gmra.mxu0 %v1232
  %v1243 = vpop.f32.mrf.mxu0
  %v1244 = vadd.f32 %v1212, %v1243
  %v1245 = vpop.f32.mrf.mxu0
  %v1246 = vadd.f32 %v1212, %v1245
  %1247 = vdwg.mxu0
  %v1248 = vpack.c.bf16 %v1244, %v1244
  %v1249 = vpack.c.bf16 %v1246, %v1246
  %v1250 = vld [vmem:[%s17] sm:$0xf]
  %v1251 = vld [vmem:[%s17 + $0x4] sm:$0xf]
  %v1252 = vld [vmem:[%s17 + $0x8] sm:$0xf]
  %v1253 = vld [vmem:[%s17 + $0xc] sm:$0xf]
  %v1254 = vld [vmem:[%s18] sm:$0x1]
  %v1257 = vperm.slane %v171, 0
  %v1258 = vperm.slane %v172, 0
  %v1269 = vunpack.c.l.b16 %v307
  %v1270 = vunpack.c.l.b16 %v308
  %v1271 = vunpack.c.l.b16 %v309
  %v1272 = vunpack.c.l.b16 %v310
  %v1273 = vunpack.c.l.b16 %v311
  %v1274 = vunpack.c.l.b16 %v312
  %v1275 = vunpack.c.l.b16 %v313
  %v1276 = vunpack.c.l.b16 %v314
  %v1277 = vpack.c.b16 %v1270, %v1269
  %v1278 = vpack.c.b16 %v1272, %v1271
  %v1279 = vpack.c.b16 %v1274, %v1273
  %v1280 = vpack.c.b16 %v1276, %v1275
  %v1282 = vsel %vm576, %v1248, 0
  %v1285 = vsel %vm576, %v1277, 0
  %v1288 = vsel %vm576, %v1278, 0
  %v1291 = vsel %vm576, %v1279, 0
  %v1294 = vsel %vm576, %v1280, 0
  %1296 = vmatpush.bf16.xpose.msra.mxu0 0
  %1297 = vmatpush.bf16.xpose.msra.mxu0 0
  %1298 = vmatpush.bf16.xpose.msra.mxu0 0
  %1299 = vmatpush.bf16.xpose.msra.mxu0 0
  %1300 = vmatpush.bf16.xpose.msra.mxu0 %v1294
  %1301 = vmatpush.bf16.xpose.msra.mxu0 %v1291
  %1302 = vmatpush.bf16.xpose.msra.mxu0 %v1288
  %1303 = vmatpush.bf16.xpose.msra.mxu0 %v1285
  %1304 = vmatmul.bf16.gmra.mxu0 %v1282
  %v1305 = vpop.f32.mrf.mxu0
  %v1306 = vadd.f32 %v1257, %v1305
  %v1307 = vpop.f32.mrf.mxu0
  %1308 = vdwg.mxu0
  %v1317 = vunpack.c.l.b16 %v315
  %v1318 = vunpack.c.l.b16 %v316
  %v1319 = vunpack.c.l.b16 %v317
  %v1320 = vunpack.c.l.b16 %v318
  %v1321 = vunpack.c.l.b16 %v319
  %v1322 = vunpack.c.l.b16 %v320
  %v1323 = vunpack.c.l.b16 %v321
  %v1324 = vunpack.c.l.b16 %v322
  %v1325 = vpack.c.b16 %v1318, %v1317
  %v1326 = vpack.c.b16 %v1320, %v1319
  %v1327 = vpack.c.b16 %v1322, %v1321
  %v1328 = vpack.c.b16 %v1324, %v1323
  %v1330 = vsel %vm576, %v1249, 0
  %v1333 = vsel %vm576, %v1325, 0
  %v1336 = vsel %vm576, %v1326, 0
  %v1339 = vsel %vm576, %v1327, 0
  %v1342 = vsel %vm576, %v1328, 0
  %1344 = vmatpush.bf16.xpose.msra.mxu0 0
  %1345 = vmatpush.bf16.xpose.msra.mxu0 0
  %1346 = vmatpush.bf16.xpose.msra.mxu0 0
  %1347 = vmatpush.bf16.xpose.msra.mxu0 0
  %1348 = vmatpush.bf16.xpose.msra.mxu0 %v1342
  %1349 = vmatpush.bf16.xpose.msra.mxu0 %v1339
  %1350 = vmatpush.bf16.xpose.msra.mxu0 %v1336
  %1351 = vmatpush.bf16.xpose.msra.mxu0 %v1333
  %1352 = vmatmul.bf16.gmra.mxu0 %v1330
  %v1353 = vpop.f32.mrf.mxu0
  %v1354 = vadd.f32 %v1258, %v1353
  %v1355 = vpop.f32.mrf.mxu0
  %1356 = vdwg.mxu0
  %vm1357 = vcmask 523264
  %v1358 = vsel %vm1357, %v1306, -inf
  %1359 = vmax.xlane.f32.xlu0 %v1358
  %v1360 = vpop.xlane.xlu0 %1359
  %v1361 = vsel %vm1357, %v1354, -inf
  %1362 = vmax.xlane.f32.xlu0 %v1361
  %v1363 = vpop.xlane.xlu0 %1362
  %v1364 = vsub.f32 %v1306, %v1360
  %v1365 = vsub.f32 %v1354, %v1363
  %v1366 = vmul.f32 %v1364, 1.442695
  %v1367 = vpow.pop %v1366
  %v1368 = vmul.f32 %v1365, 1.442695
  %v1369 = vpow.pop %v1368
  %v1370 = vsel %vm1357, %v1367, 0.0
  %1371 = vadd.xlane.f32.xlu0 %v1370
  %v1372 = vpop.xlane.xlu0 %1371
  %v1373 = vsel %vm1357, %v1369, 0.0
  %1374 = vadd.xlane.f32.xlu0 %v1373
  %v1375 = vpop.xlane.xlu0 %1374
  %v1376 = vpack.c.bf16 %v1367, %v1367
  %v1377 = vpack.c.bf16 %v1369, %v1369
  %v1386 = vunpack.c.l.b16 %v456
  %v1387 = vunpack.c.l.b16 %v457
  %v1388 = vunpack.c.l.b16 %v458
  %v1389 = vunpack.c.l.b16 %v459
  %v1390 = vunpack.c.l.b16 %v460
  %v1391 = vunpack.c.l.b16 %v461
  %v1392 = vunpack.c.l.b16 %v462
  %v1393 = vunpack.c.l.b16 %v463
  %v1394 = vpack.c.b16 %v1387, %v1386
  %v1395 = vpack.c.b16 %v1389, %v1388
  %v1396 = vpack.c.b16 %v1391, %v1390
  %v1397 = vpack.c.b16 %v1393, %v1392
  %v1403 = vsel %vm1357, %v1376, 0
  %1405 = vmatpush.bf16.msra.mxu0 0
  %1406 = vmatpush.bf16.msra.mxu0 0
  %1407 = vmatpush.bf16.msra.mxu0 0
  %1408 = vmatpush.bf16.msra.mxu0 0
  %1409 = vmatpush.bf16.msra.mxu0 %v1397
  %1410 = vmatpush.bf16.msra.mxu0 %v1396
  %1411 = vmatpush.bf16.msra.mxu0 %v1395
  %1412 = vmatpush.bf16.msra.mxu0 %v1394
  %1413 = vmatmul.bf16.gmra.mxu0 %v1403
  %v1414 = vpop.f32.mrf.mxu0
  %v1415 = vadd.f32 0.0, %v1414
  %v1416 = vpop.f32.mrf.mxu0
  %1417 = vdwg.mxu0
  %v1426 = vunpack.c.l.b16 %v464
  %v1427 = vunpack.c.l.b16 %v465
  %v1428 = vunpack.c.l.b16 %v466
  %v1429 = vunpack.c.l.b16 %v467
  %v1430 = vunpack.c.l.b16 %v468
  %v1431 = vunpack.c.l.b16 %v469
  %v1432 = vunpack.c.l.b16 %v470
  %v1433 = vunpack.c.l.b16 %v471
  %v1434 = vpack.c.b16 %v1427, %v1426
  %v1435 = vpack.c.b16 %v1429, %v1428
  %v1436 = vpack.c.b16 %v1431, %v1430
  %v1437 = vpack.c.b16 %v1433, %v1432
  %v1443 = vsel %vm1357, %v1377, 0
  %1445 = vmatpush.bf16.msra.mxu0 0
  %1446 = vmatpush.bf16.msra.mxu0 0
  %1447 = vmatpush.bf16.msra.mxu0 0
  %1448 = vmatpush.bf16.msra.mxu0 0
  %1449 = vmatpush.bf16.msra.mxu0 %v1437
  %1450 = vmatpush.bf16.msra.mxu0 %v1436
  %1451 = vmatpush.bf16.msra.mxu0 %v1435
  %1452 = vmatpush.bf16.msra.mxu0 %v1434
  %1453 = vmatmul.bf16.gmra.mxu0 %v1443
  %v1454 = vpop.f32.mrf.mxu0
  %v1455 = vadd.f32 0.0, %v1454
  %v1456 = vpop.f32.mrf.mxu0
  %1457 = vdwg.mxu0
  %v1458 = vrcp.pop %v1372
  %v1459 = vrcp.pop %v1375
  %v1460 = vmul.f32 %v1415, %v1458
  %v1461 = vmul.f32 %v1455, %v1459
  %v1462 = vpack.c.bf16 %v1460, %v1460
  %v1463 = vpack.c.bf16 %v1461, %v1461
  %v1465 = vunpack.c.l.b16 %v1248
  %v1466 = vpack.c.b16 %v1465, %v1465
  %1467 = vrot.lane.b32.xlu0 %v1466, 120
  %v1468 = vpop.permute.xlu0 %1467
  %1469 = vrot.lane.b32.xlu0 %v1277, 120
  %v1470 = vpop.permute.xlu0 %1469
  %1471 = vrot.lane.b32.xlu0 %v1278, 120
  %v1472 = vpop.permute.xlu0 %1471
  %1473 = vrot.lane.b32.xlu0 %v1279, 120
  %v1474 = vpop.permute.xlu0 %1473
  %1475 = vrot.lane.b32.xlu0 %v1280, 120
  %v1476 = vpop.permute.xlu0 %1475
  %v1478 = vsel %vm576, %v1468, 0
  %v1481 = vsel %vm576, %v1470, 0
  %v1484 = vsel %vm576, %v1472, 0
  %v1487 = vsel %vm576, %v1474, 0
  %v1490 = vsel %vm576, %v1476, 0
  %1492 = vmatpush.bf16.xpose.msra.mxu0 0
  %1493 = vmatpush.bf16.xpose.msra.mxu0 0
  %1494 = vmatpush.bf16.xpose.msra.mxu0 0
  %1495 = vmatpush.bf16.xpose.msra.mxu0 0
  %1496 = vmatpush.bf16.xpose.msra.mxu0 %v1490
  %1497 = vmatpush.bf16.xpose.msra.mxu0 %v1487
  %1498 = vmatpush.bf16.xpose.msra.mxu0 %v1484
  %1499 = vmatpush.bf16.xpose.msra.mxu0 %v1481
  %1500 = vmatmul.bf16.gmra.mxu0 %v1478
  %v1501 = vpop.f32.mrf.mxu0
  %v1502 = vadd.f32 %v1257, %v1501
  %v1503 = vpop.f32.mrf.mxu0
  %1504 = vdwg.mxu0
  %v1506 = vunpack.c.l.b16 %v1249
  %v1507 = vpack.c.b16 %v1506, %v1506
  %1508 = vrot.lane.b32.xlu0 %v1507, 120
  %v1509 = vpop.permute.xlu0 %1508
  %1510 = vrot.lane.b32.xlu0 %v1325, 120
  %v1511 = vpop.permute.xlu0 %1510
  %1512 = vrot.lane.b32.xlu0 %v1326, 120
  %v1513 = vpop.permute.xlu0 %1512
  %1514 = vrot.lane.b32.xlu0 %v1327, 120
  %v1515 = vpop.permute.xlu0 %1514
  %1516 = vrot.lane.b32.xlu0 %v1328, 120
  %v1517 = vpop.permute.xlu0 %1516
  %v1519 = vsel %vm576, %v1509, 0
  %v1522 = vsel %vm576, %v1511, 0
  %v1525 = vsel %vm576, %v1513, 0
  %v1528 = vsel %vm576, %v1515, 0
  %v1531 = vsel %vm576, %v1517, 0
  %1533 = vmatpush.bf16.xpose.msra.mxu0 0
  %1534 = vmatpush.bf16.xpose.msra.mxu0 0
  %1535 = vmatpush.bf16.xpose.msra.mxu0 0
  %1536 = vmatpush.bf16.xpose.msra.mxu0 0
  %1537 = vmatpush.bf16.xpose.msra.mxu0 %v1531
  %1538 = vmatpush.bf16.xpose.msra.mxu0 %v1528
  %1539 = vmatpush.bf16.xpose.msra.mxu0 %v1525
  %1540 = vmatpush.bf16.xpose.msra.mxu0 %v1522
  %1541 = vmatmul.bf16.gmra.mxu0 %v1519
  %v1542 = vpop.f32.mrf.mxu0
  %v1543 = vadd.f32 %v1258, %v1542
  %v1544 = vpop.f32.mrf.mxu0
  %1545 = vdwg.mxu0
  %v1546 = vsel %vm1357, %v1502, -inf
  %1547 = vmax.xlane.f32.xlu0 %v1546
  %v1548 = vpop.xlane.xlu0 %1547
  %v1549 = vsel %vm1357, %v1543, -inf
  %1550 = vmax.xlane.f32.xlu0 %v1549
  %v1551 = vpop.xlane.xlu0 %1550
  %v1552 = vsub.f32 %v1502, %v1548
  %v1553 = vsub.f32 %v1543, %v1551
  %v1554 = vmul.f32 %v1552, 1.442695
  %v1555 = vpow.pop %v1554
  %v1556 = vmul.f32 %v1553, 1.442695
  %v1557 = vpow.pop %v1556
  %v1558 = vsel %vm1357, %v1555, 0.0
  %1559 = vadd.xlane.f32.xlu0 %v1558
  %v1560 = vpop.xlane.xlu0 %1559
  %v1561 = vsel %vm1357, %v1557, 0.0
  %1562 = vadd.xlane.f32.xlu0 %v1561
  %v1563 = vpop.xlane.xlu0 %1562
  %v1564 = vpack.c.bf16 %v1555, %v1555
  %v1565 = vpack.c.bf16 %v1557, %v1557
  %1566 = vrot.lane.b32.xlu0 %v1394, 120
  %v1567 = vpop.permute.xlu0 %1566
  %1568 = vrot.lane.b32.xlu0 %v1395, 120
  %v1569 = vpop.permute.xlu0 %1568
  %1570 = vrot.lane.b32.xlu0 %v1396, 120
  %v1571 = vpop.permute.xlu0 %1570
  %1572 = vrot.lane.b32.xlu0 %v1397, 120
  %v1573 = vpop.permute.xlu0 %1572
  %v1579 = vsel %vm1357, %v1564, 0
  %1581 = vmatpush.bf16.msra.mxu0 0
  %1582 = vmatpush.bf16.msra.mxu0 0
  %1583 = vmatpush.bf16.msra.mxu0 0
  %1584 = vmatpush.bf16.msra.mxu0 0
  %1585 = vmatpush.bf16.msra.mxu0 %v1573
  %1586 = vmatpush.bf16.msra.mxu0 %v1571
  %1587 = vmatpush.bf16.msra.mxu0 %v1569
  %1588 = vmatpush.bf16.msra.mxu0 %v1567
  %1589 = vmatmul.bf16.gmra.mxu0 %v1579
  %v1590 = vpop.f32.mrf.mxu0
  %v1591 = vadd.f32 0.0, %v1590
  %v1592 = vpop.f32.mrf.mxu0
  %1593 = vdwg.mxu0
  %1594 = vrot.lane.b32.xlu0 %v1434, 120
  %v1595 = vpop.permute.xlu0 %1594
  %1596 = vrot.lane.b32.xlu0 %v1435, 120
  %v1597 = vpop.permute.xlu0 %1596
  %1598 = vrot.lane.b32.xlu0 %v1436, 120
  %v1599 = vpop.permute.xlu0 %1598
  %1600 = vrot.lane.b32.xlu0 %v1437, 120
  %v1601 = vpop.permute.xlu0 %1600
  %v1607 = vsel %vm1357, %v1565, 0
  %1609 = vmatpush.bf16.msra.mxu0 0
  %1610 = vmatpush.bf16.msra.mxu0 0
  %1611 = vmatpush.bf16.msra.mxu0 0
  %1612 = vmatpush.bf16.msra.mxu0 0
  %1613 = vmatpush.bf16.msra.mxu0 %v1601
  %1614 = vmatpush.bf16.msra.mxu0 %v1599
  %1615 = vmatpush.bf16.msra.mxu0 %v1597
  %1616 = vmatpush.bf16.msra.mxu0 %v1595
  %1617 = vmatmul.bf16.gmra.mxu0 %v1607
  %v1618 = vpop.f32.mrf.mxu0
  %v1619 = vadd.f32 0.0, %v1618
  %v1620 = vpop.f32.mrf.mxu0
  %1621 = vdwg.mxu0
  %v1622 = vrcp.pop %v1560
  %v1623 = vrcp.pop %v1563
  %v1624 = vmul.f32 %v1591, %v1622
  %v1625 = vmul.f32 %v1619, %v1623
  %v1626 = vpack.c.bf16 %v1624, %v1624
  %v1627 = vpack.c.bf16 %v1625, %v1625
  %v1630 = vunpack.c.l.b16 %v1626
  %v1631 = vunpack.c.l.b16 %v1627
  %v1632 = vpack.c.b16 %v1631, %v1630
  %v1634 = vsel %vm576, %v1632, 0
  %v1637 = vsel %vm643, %v1251, 0
  %1639 = vmatpush.bf16.msra.mxu0 0
  %1640 = vmatpush.bf16.msra.mxu0 0
  %1641 = vmatpush.bf16.msra.mxu0 0
  %1642 = vmatpush.bf16.msra.mxu0 0
  %1643 = vmatpush.bf16.msra.mxu0 0
  %1644 = vmatpush.bf16.msra.mxu0 0
  %1645 = vmatpush.bf16.msra.mxu0 0
  %1646 = vmatpush.bf16.msra.mxu0 %v1637
  %1647 = vmatmul.bf16.gmra.mxu0 %v1634
  %v1648 = vpop.f32.mrf.mxu0
  %v1649 = vadd.f32 0.0, %v1648
  %v1650 = vpop.f32.mrf.mxu0
  %v1651 = vadd.f32 0.0, %v1650
  %1652 = vdwg.mxu0
  %v1655 = vunpack.c.l.b16 %v1462
  %v1656 = vunpack.c.l.b16 %v1463
  %v1657 = vpack.c.b16 %v1656, %v1655
  %v1659 = vsel %vm576, %v1657, 0
  %v1662 = vsel %vm643, %v1250, 0
  %1664 = vmatpush.bf16.msra.mxu0 0
  %1665 = vmatpush.bf16.msra.mxu0 0
  %1666 = vmatpush.bf16.msra.mxu0 0
  %1667 = vmatpush.bf16.msra.mxu0 0
  %1668 = vmatpush.bf16.msra.mxu0 0
  %1669 = vmatpush.bf16.msra.mxu0 0
  %1670 = vmatpush.bf16.msra.mxu0 0
  %1671 = vmatpush.bf16.msra.mxu0 %v1662
  %1672 = vmatmul.bf16.gmra.mxu0 %v1659
  %v1673 = vpop.f32.mrf.mxu0
  %v1674 = vadd.f32 %v1649, %v1673
  %v1675 = vpop.f32.mrf.mxu0
  %v1676 = vadd.f32 %v1651, %v1675
  %1677 = vdwg.mxu0
  %1678 = vrot.lane.b32.xlu0 %v1466, 112
  %v1679 = vpop.permute.xlu0 %1678
  %1680 = vrot.lane.b32.xlu0 %v1277, 112
  %v1681 = vpop.permute.xlu0 %1680
  %1682 = vrot.lane.b32.xlu0 %v1278, 112
  %v1683 = vpop.permute.xlu0 %1682
  %1684 = vrot.lane.b32.xlu0 %v1279, 112
  %v1685 = vpop.permute.xlu0 %1684
  %1686 = vrot.lane.b32.xlu0 %v1280, 112
  %v1687 = vpop.permute.xlu0 %1686
  %v1689 = vsel %vm576, %v1679, 0
  %v1692 = vsel %vm576, %v1681, 0
  %v1695 = vsel %vm576, %v1683, 0
  %v1698 = vsel %vm576, %v1685, 0
  %v1701 = vsel %vm576, %v1687, 0
  %1703 = vmatpush.bf16.xpose.msra.mxu0 0
  %1704 = vmatpush.bf16.xpose.msra.mxu0 0
  %1705 = vmatpush.bf16.xpose.msra.mxu0 0
  %1706 = vmatpush.bf16.xpose.msra.mxu0 0
  %1707 = vmatpush.bf16.xpose.msra.mxu0 %v1701
  %1708 = vmatpush.bf16.xpose.msra.mxu0 %v1698
  %1709 = vmatpush.bf16.xpose.msra.mxu0 %v1695
  %1710 = vmatpush.bf16.xpose.msra.mxu0 %v1692
  %1711 = vmatmul.bf16.gmra.mxu0 %v1689
  %v1712 = vpop.f32.mrf.mxu0
  %v1713 = vadd.f32 %v1257, %v1712
  %v1714 = vpop.f32.mrf.mxu0
  %1715 = vdwg.mxu0
  %1716 = vrot.lane.b32.xlu0 %v1507, 112
  %v1717 = vpop.permute.xlu0 %1716
  %1718 = vrot.lane.b32.xlu0 %v1325, 112
  %v1719 = vpop.permute.xlu0 %1718
  %1720 = vrot.lane.b32.xlu0 %v1326, 112
  %v1721 = vpop.permute.xlu0 %1720
  %1722 = vrot.lane.b32.xlu0 %v1327, 112
  %v1723 = vpop.permute.xlu0 %1722
  %1724 = vrot.lane.b32.xlu0 %v1328, 112
  %v1725 = vpop.permute.xlu0 %1724
  %v1727 = vsel %vm576, %v1717, 0
  %v1730 = vsel %vm576, %v1719, 0
  %v1733 = vsel %vm576, %v1721, 0
  %v1736 = vsel %vm576, %v1723, 0
  %v1739 = vsel %vm576, %v1725, 0
  %1741 = vmatpush.bf16.xpose.msra.mxu0 0
  %1742 = vmatpush.bf16.xpose.msra.mxu0 0
  %1743 = vmatpush.bf16.xpose.msra.mxu0 0
  %1744 = vmatpush.bf16.xpose.msra.mxu0 0
  %1745 = vmatpush.bf16.xpose.msra.mxu0 %v1739
  %1746 = vmatpush.bf16.xpose.msra.mxu0 %v1736
  %1747 = vmatpush.bf16.xpose.msra.mxu0 %v1733
  %1748 = vmatpush.bf16.xpose.msra.mxu0 %v1730
  %1749 = vmatmul.bf16.gmra.mxu0 %v1727
  %v1750 = vpop.f32.mrf.mxu0
  %v1751 = vadd.f32 %v1258, %v1750
  %v1752 = vpop.f32.mrf.mxu0
  %1753 = vdwg.mxu0
  %v1754 = vsel %vm1357, %v1713, -inf
  %1755 = vmax.xlane.f32.xlu0 %v1754
  %v1756 = vpop.xlane.xlu0 %1755
  %v1757 = vsel %vm1357, %v1751, -inf
  %1758 = vmax.xlane.f32.xlu0 %v1757
  %v1759 = vpop.xlane.xlu0 %1758
  %v1760 = vsub.f32 %v1713, %v1756
  %v1761 = vsub.f32 %v1751, %v1759
  %v1762 = vmul.f32 %v1760, 1.442695
  %v1763 = vpow.pop %v1762
  %v1764 = vmul.f32 %v1761, 1.442695
  %v1765 = vpow.pop %v1764
  %v1766 = vsel %vm1357, %v1763, 0.0
  %1767 = vadd.xlane.f32.xlu0 %v1766
  %v1768 = vpop.xlane.xlu0 %1767
  %v1769 = vsel %vm1357, %v1765, 0.0
  %1770 = vadd.xlane.f32.xlu0 %v1769
  %v1771 = vpop.xlane.xlu0 %1770
  %v1772 = vpack.c.bf16 %v1763, %v1763
  %v1773 = vpack.c.bf16 %v1765, %v1765
  %1774 = vrot.lane.b32.xlu0 %v1394, 112
  %v1775 = vpop.permute.xlu0 %1774
  %1776 = vrot.lane.b32.xlu0 %v1395, 112
  %v1777 = vpop.permute.xlu0 %1776
  %1778 = vrot.lane.b32.xlu0 %v1396, 112
  %v1779 = vpop.permute.xlu0 %1778
  %1780 = vrot.lane.b32.xlu0 %v1397, 112
  %v1781 = vpop.permute.xlu0 %1780
  %v1787 = vsel %vm1357, %v1772, 0
  %1789 = vmatpush.bf16.msra.mxu0 0
  %1790 = vmatpush.bf16.msra.mxu0 0
  %1791 = vmatpush.bf16.msra.mxu0 0
  %1792 = vmatpush.bf16.msra.mxu0 0
  %1793 = vmatpush.bf16.msra.mxu0 %v1781
  %1794 = vmatpush.bf16.msra.mxu0 %v1779
  %1795 = vmatpush.bf16.msra.mxu0 %v1777
  %1796 = vmatpush.bf16.msra.mxu0 %v1775
  %1797 = vmatmul.bf16.gmra.mxu0 %v1787
  %v1798 = vpop.f32.mrf.mxu0
  %v1799 = vadd.f32 0.0, %v1798
  %v1800 = vpop.f32.mrf.mxu0
  %1801 = vdwg.mxu0
  %1802 = vrot.lane.b32.xlu0 %v1434, 112
  %v1803 = vpop.permute.xlu0 %1802
  %1804 = vrot.lane.b32.xlu0 %v1435, 112
  %v1805 = vpop.permute.xlu0 %1804
  %1806 = vrot.lane.b32.xlu0 %v1436, 112
  %v1807 = vpop.permute.xlu0 %1806
  %1808 = vrot.lane.b32.xlu0 %v1437, 112
  %v1809 = vpop.permute.xlu0 %1808
  %v1815 = vsel %vm1357, %v1773, 0
  %1817 = vmatpush.bf16.msra.mxu0 0
  %1818 = vmatpush.bf16.msra.mxu0 0
  %1819 = vmatpush.bf16.msra.mxu0 0
  %1820 = vmatpush.bf16.msra.mxu0 0
  %1821 = vmatpush.bf16.msra.mxu0 %v1809
  %1822 = vmatpush.bf16.msra.mxu0 %v1807
  %1823 = vmatpush.bf16.msra.mxu0 %v1805
  %1824 = vmatpush.bf16.msra.mxu0 %v1803
  %1825 = vmatmul.bf16.gmra.mxu0 %v1815
  %v1826 = vpop.f32.mrf.mxu0
  %v1827 = vadd.f32 0.0, %v1826
  %v1828 = vpop.f32.mrf.mxu0
  %1829 = vdwg.mxu0
  %v1830 = vrcp.pop %v1768
  %v1831 = vrcp.pop %v1771
  %v1832 = vmul.f32 %v1799, %v1830
  %v1833 = vmul.f32 %v1827, %v1831
  %v1834 = vpack.c.bf16 %v1832, %v1832
  %v1835 = vpack.c.bf16 %v1833, %v1833
  %v1838 = vunpack.c.l.b16 %v1834
  %v1839 = vunpack.c.l.b16 %v1835
  %v1840 = vpack.c.b16 %v1839, %v1838
  %v1842 = vsel %vm576, %v1840, 0
  %v1845 = vsel %vm643, %v1252, 0
  %1847 = vmatpush.bf16.msra.mxu0 0
  %1848 = vmatpush.bf16.msra.mxu0 0
  %1849 = vmatpush.bf16.msra.mxu0 0
  %1850 = vmatpush.bf16.msra.mxu0 0
  %1851 = vmatpush.bf16.msra.mxu0 0
  %1852 = vmatpush.bf16.msra.mxu0 0
  %1853 = vmatpush.bf16.msra.mxu0 0
  %1854 = vmatpush.bf16.msra.mxu0 %v1845
  %1855 = vmatmul.bf16.gmra.mxu0 %v1842
  %v1856 = vpop.f32.mrf.mxu0
  %v1857 = vadd.f32 0.0, %v1856
  %v1858 = vpop.f32.mrf.mxu0
  %v1859 = vadd.f32 0.0, %v1858
  %1860 = vdwg.mxu0
  %v1861 = vadd.f32 %v1674, %v1857
  %v1862 = vadd.f32 %v1676, %v1859
  %1863 = vrot.lane.b32.xlu0 %v1466, 104
  %v1864 = vpop.permute.xlu0 %1863
  %1865 = vrot.lane.b32.xlu0 %v1277, 104
  %v1866 = vpop.permute.xlu0 %1865
  %1867 = vrot.lane.b32.xlu0 %v1278, 104
  %v1868 = vpop.permute.xlu0 %1867
  %1869 = vrot.lane.b32.xlu0 %v1279, 104
  %v1870 = vpop.permute.xlu0 %1869
  %1871 = vrot.lane.b32.xlu0 %v1280, 104
  %v1872 = vpop.permute.xlu0 %1871
  %v1874 = vsel %vm576, %v1864, 0
  %v1877 = vsel %vm576, %v1866, 0
  %v1880 = vsel %vm576, %v1868, 0
  %v1883 = vsel %vm576, %v1870, 0
  %v1886 = vsel %vm576, %v1872, 0
  %1888 = vmatpush.bf16.xpose.msra.mxu0 0
  %1889 = vmatpush.bf16.xpose.msra.mxu0 0
  %1890 = vmatpush.bf16.xpose.msra.mxu0 0
  %1891 = vmatpush.bf16.xpose.msra.mxu0 0
  %1892 = vmatpush.bf16.xpose.msra.mxu0 %v1886
  %1893 = vmatpush.bf16.xpose.msra.mxu0 %v1883
  %1894 = vmatpush.bf16.xpose.msra.mxu0 %v1880
  %1895 = vmatpush.bf16.xpose.msra.mxu0 %v1877
  %1896 = vmatmul.bf16.gmra.mxu0 %v1874
  %v1897 = vpop.f32.mrf.mxu0
  %v1898 = vadd.f32 %v1257, %v1897
  %v1899 = vpop.f32.mrf.mxu0
  %1900 = vdwg.mxu0
  %1901 = vrot.lane.b32.xlu0 %v1507, 104
  %v1902 = vpop.permute.xlu0 %1901
  %1903 = vrot.lane.b32.xlu0 %v1325, 104
  %v1904 = vpop.permute.xlu0 %1903
  %1905 = vrot.lane.b32.xlu0 %v1326, 104
  %v1906 = vpop.permute.xlu0 %1905
  %1907 = vrot.lane.b32.xlu0 %v1327, 104
  %v1908 = vpop.permute.xlu0 %1907
  %1909 = vrot.lane.b32.xlu0 %v1328, 104
  %v1910 = vpop.permute.xlu0 %1909
  %v1912 = vsel %vm576, %v1902, 0
  %v1915 = vsel %vm576, %v1904, 0
  %v1918 = vsel %vm576, %v1906, 0
  %v1921 = vsel %vm576, %v1908, 0
  %v1924 = vsel %vm576, %v1910, 0
  %1926 = vmatpush.bf16.xpose.msra.mxu0 0
  %1927 = vmatpush.bf16.xpose.msra.mxu0 0
  %1928 = vmatpush.bf16.xpose.msra.mxu0 0
  %1929 = vmatpush.bf16.xpose.msra.mxu0 0
  %1930 = vmatpush.bf16.xpose.msra.mxu0 %v1924
  %1931 = vmatpush.bf16.xpose.msra.mxu0 %v1921
  %1932 = vmatpush.bf16.xpose.msra.mxu0 %v1918
  %1933 = vmatpush.bf16.xpose.msra.mxu0 %v1915
  %1934 = vmatmul.bf16.gmra.mxu0 %v1912
  %v1935 = vpop.f32.mrf.mxu0
  %v1936 = vadd.f32 %v1258, %v1935
  %v1937 = vpop.f32.mrf.mxu0
  %1938 = vdwg.mxu0
  %v1939 = vsel %vm1357, %v1898, -inf
  %1940 = vmax.xlane.f32.xlu0 %v1939
  %v1941 = vpop.xlane.xlu0 %1940
  %v1942 = vsel %vm1357, %v1936, -inf
  %1943 = vmax.xlane.f32.xlu0 %v1942
  %v1944 = vpop.xlane.xlu0 %1943
  %v1945 = vsub.f32 %v1898, %v1941
  %v1946 = vsub.f32 %v1936, %v1944
  %v1947 = vmul.f32 %v1945, 1.442695
  %v1948 = vpow.pop %v1947
  %v1949 = vmul.f32 %v1946, 1.442695
  %v1950 = vpow.pop %v1949
  %v1951 = vsel %vm1357, %v1948, 0.0
  %1952 = vadd.xlane.f32.xlu0 %v1951
  %v1953 = vpop.xlane.xlu0 %1952
  %v1954 = vsel %vm1357, %v1950, 0.0
  %1955 = vadd.xlane.f32.xlu0 %v1954
  %v1956 = vpop.xlane.xlu0 %1955
  %v1957 = vpack.c.bf16 %v1948, %v1948
  %v1958 = vpack.c.bf16 %v1950, %v1950
  %1959 = vrot.lane.b32.xlu0 %v1394, 104
  %v1960 = vpop.permute.xlu0 %1959
  %1961 = vrot.lane.b32.xlu0 %v1395, 104
  %v1962 = vpop.permute.xlu0 %1961
  %1963 = vrot.lane.b32.xlu0 %v1396, 104
  %v1964 = vpop.permute.xlu0 %1963
  %1965 = vrot.lane.b32.xlu0 %v1397, 104
  %v1966 = vpop.permute.xlu0 %1965
  %v1972 = vsel %vm1357, %v1957, 0
  %1974 = vmatpush.bf16.msra.mxu0 0
  %1975 = vmatpush.bf16.msra.mxu0 0
  %1976 = vmatpush.bf16.msra.mxu0 0
  %1977 = vmatpush.bf16.msra.mxu0 0
  %1978 = vmatpush.bf16.msra.mxu0 %v1966
  %1979 = vmatpush.bf16.msra.mxu0 %v1964
  %1980 = vmatpush.bf16.msra.mxu0 %v1962
  %1981 = vmatpush.bf16.msra.mxu0 %v1960
  %1982 = vmatmul.bf16.gmra.mxu0 %v1972
  %v1983 = vpop.f32.mrf.mxu0
  %v1984 = vadd.f32 0.0, %v1983
  %v1985 = vpop.f32.mrf.mxu0
  %1986 = vdwg.mxu0
  %1987 = vrot.lane.b32.xlu0 %v1434, 104
  %v1988 = vpop.permute.xlu0 %1987
  %1989 = vrot.lane.b32.xlu0 %v1435, 104
  %v1990 = vpop.permute.xlu0 %1989
  %1991 = vrot.lane.b32.xlu0 %v1436, 104
  %v1992 = vpop.permute.xlu0 %1991
  %1993 = vrot.lane.b32.xlu0 %v1437, 104
  %v1994 = vpop.permute.xlu0 %1993
  %v2000 = vsel %vm1357, %v1958, 0
  %2002 = vmatpush.bf16.msra.mxu0 0
  %2003 = vmatpush.bf16.msra.mxu0 0
  %2004 = vmatpush.bf16.msra.mxu0 0
  %2005 = vmatpush.bf16.msra.mxu0 0
  %2006 = vmatpush.bf16.msra.mxu0 %v1994
  %2007 = vmatpush.bf16.msra.mxu0 %v1992
  %2008 = vmatpush.bf16.msra.mxu0 %v1990
  %2009 = vmatpush.bf16.msra.mxu0 %v1988
  %2010 = vmatmul.bf16.gmra.mxu0 %v2000
  %v2011 = vpop.f32.mrf.mxu0
  %v2012 = vadd.f32 0.0, %v2011
  %v2013 = vpop.f32.mrf.mxu0
  %2014 = vdwg.mxu0
  %v2015 = vrcp.pop %v1953
  %v2016 = vrcp.pop %v1956
  %v2017 = vmul.f32 %v1984, %v2015
  %v2018 = vmul.f32 %v2012, %v2016
  %v2019 = vpack.c.bf16 %v2017, %v2017
  %v2020 = vpack.c.bf16 %v2018, %v2018
  %v2023 = vunpack.c.l.b16 %v2019
  %v2024 = vunpack.c.l.b16 %v2020
  %v2025 = vpack.c.b16 %v2024, %v2023
  %v2027 = vsel %vm576, %v2025, 0
  %v2030 = vsel %vm643, %v1253, 0
  %2032 = vmatpush.bf16.msra.mxu0 0
  %2033 = vmatpush.bf16.msra.mxu0 0
  %2034 = vmatpush.bf16.msra.mxu0 0
  %2035 = vmatpush.bf16.msra.mxu0 0
  %2036 = vmatpush.bf16.msra.mxu0 0
  %2037 = vmatpush.bf16.msra.mxu0 0
  %2038 = vmatpush.bf16.msra.mxu0 0
  %2039 = vmatpush.bf16.msra.mxu0 %v2030
  %2040 = vmatmul.bf16.gmra.mxu0 %v2027
  %v2041 = vpop.f32.mrf.mxu0
  %v2042 = vadd.f32 0.0, %v2041
  %v2043 = vpop.f32.mrf.mxu0
  %v2044 = vadd.f32 0.0, %v2043
  %2045 = vdwg.mxu0
  %v2046 = vadd.f32 %v1861, %v2042
  %v2047 = vadd.f32 %v1862, %v2044
  %v2049 = vperm.slane %v1254, 0
  %v2051 = vadd.f32 %v2046, %v2049
  %v2052 = vadd.f32 %v2047, %v2049
  %v2053 = vld [vmem:[%s24] sm:$0x3]
  %v2054 = vadd.f32 %v1200, %v2051
  %v2055 = vadd.f32 %v1201, %v2052
  %v2056 = vsel %vm233, %v2054, 0.0
  %2057 = vadd.xlane.f32.xlu0 %v2056
  %v2058 = vpop.xlane.xlu0 %2057
  %v2059 = vsel %vm233, %v2055, 0.0
  %2060 = vadd.xlane.f32.xlu0 %v2059
  %v2061 = vpop.xlane.xlu0 %2060
  %v2062 = vmul.f32 %v2058, %v1157
  %v2063 = vmul.f32 %v2061, %v1157
  %v2064 = vsub.f32 %v2054, %v2062
  %v2065 = vsub.f32 %v2055, %v2063
  %v2066 = vmul.f32 %v2064, %v2064
  %v2067 = vmul.f32 %v2065, %v2065
  %v2068 = vsel %vm233, %v2066, 0.0
  %2069 = vadd.xlane.f32.xlu0 %v2068
  %v2070 = vpop.xlane.xlu0 %2069
  %v2071 = vsel %vm233, %v2067, 0.0
  %2072 = vadd.xlane.f32.xlu0 %v2071
  %v2073 = vpop.xlane.xlu0 %2072
  %v2074 = vmul.f32 %v2070, %v1157
  %v2075 = vmul.f32 %v2073, %v1157
  %v2076 = vadd.f32 %v2074, 1e-05
  %v2077 = vadd.f32 %v2075, 1e-05
  %v2078 = vrsqrt.pop %v2076
  %v2079 = vmul.f32 %v2078, %v2076
  %v2080 = vmul.f32 %v2079, %v2078
  %v2081 = vmul.f32 0.5, %v2080
  %v2082 = vsub.f32 1.5, %v2081
  %v2083 = vmul.f32 %v2078, %v2082
  %vm2084 = vweird.f32 %v2076
  %vm2085 = vweird.f32 %v2078
  %vm2086 = vmor %vm2084, %vm2085
  %v2087 = vsel %vm2086, %v2078, %v2083
  %v2088 = vrsqrt.pop %v2077
  %v2089 = vmul.f32 %v2088, %v2077
  %v2090 = vmul.f32 %v2089, %v2088
  %v2091 = vmul.f32 0.5, %v2090
  %v2092 = vsub.f32 1.5, %v2091
  %v2093 = vmul.f32 %v2088, %v2092
  %vm2094 = vweird.f32 %v2077
  %vm2095 = vweird.f32 %v2088
  %vm2096 = vmor %vm2094, %vm2095
  %v2097 = vsel %vm2096, %v2088, %v2093
  %v2098 = vmul.f32 %v2064, %v2087
  %v2099 = vmul.f32 %v2065, %v2097
  %v2100 = vperm.slane %v2053, 0
  %v2101 = vmul.f32 %v2098, %v2100
  %v2102 = vmul.f32 %v2099, %v2100
  %v2103 = vperm.slane %v2053, 1
  %v2104 = vadd.f32 %v2101, %v2103
  %v2105 = vadd.f32 %v2102, %v2103
  %v2106 = vpack.c.bf16 %v2104, %v2104
  %v2107 = vpack.c.bf16 %v2105, %v2105
  %v2108 = vld [vmem:[%s19] sm:$0xf]
  %v2109 = vld [vmem:[%s19 + $0x4] sm:$0xf]
  %v2110 = vld [vmem:[%s19 + $0x8] sm:$0xf]
  %v2111 = vld [vmem:[%s19 + $0xc] sm:$0xf]
  %v2112 = vld [vmem:[%s20] sm:$0x1]
  %v2114 = vperm.slane %v2112, 0
  %v2118 = vunpack.c.l.b16 %v2106
  %v2119 = vunpack.c.l.b16 %v2107
  %v2120 = vpack.c.b16 %v2119, %v2118
  %v2125 = vunpack.c.l.b16 %v2108
  %v2126 = vunpack.c.l.b16 %v2109
  %v2127 = vunpack.c.l.b16 %v2110
  %v2128 = vunpack.c.l.b16 %v2111
  %v2129 = vpack.c.b16 %v2126, %v2125
  %v2130 = vpack.c.b16 %v2128, %v2127
  %v2134 = vsel %vm233, %v2120, 0
  %2136 = vmatpush.bf16.msra.mxu0 0
  %2137 = vmatpush.bf16.msra.mxu0 0
  %2138 = vmatpush.bf16.msra.mxu0 0
  %2139 = vmatpush.bf16.msra.mxu0 0
  %2140 = vmatpush.bf16.msra.mxu0 0
  %2141 = vmatpush.bf16.msra.mxu0 0
  %2142 = vmatpush.bf16.msra.mxu0 %v2130
  %2143 = vmatpush.bf16.msra.mxu0 %v2129
  %2144 = vmatmul.bf16.gmra.mxu0 %v2134
  %v2145 = vpop.f32.mrf.mxu0
  %v2146 = vadd.f32 %v2114, %v2145
  %v2147 = vpop.f32.mrf.mxu0
  %v2148 = vadd.f32 %v2114, %v2147
  %2149 = vdwg.mxu0
  %v2150 = vmax.f32 %v2146, 0.0
  %v2151 = vmax.f32 %v2148, 0.0
  %v2152 = vpack.c.bf16 %v2150, %v2150
  %v2153 = vpack.c.bf16 %v2151, %v2151
  %v2154 = vld [vmem:[%s21] sm:$0xf]
  %v2155 = vld [vmem:[%s21 + $0x4] sm:$0xf]
  %v2156 = vld [vmem:[%s21 + $0x8] sm:$0xf]
  %v2157 = vld [vmem:[%s21 + $0xc] sm:$0xf]
  %v2158 = vld [vmem:[%s21 + $0x10] sm:$0xf]
  %v2159 = vld [vmem:[%s21 + $0x14] sm:$0xf]
  %v2160 = vld [vmem:[%s21 + $0x18] sm:$0xf]
  %v2161 = vld [vmem:[%s21 + $0x1c] sm:$0xf]
  %v2162 = vld [vmem:[%s22] sm:$0x1]
  %v2164 = vperm.slane %v2162, 0
  %v2168 = vunpack.c.l.b16 %v2152
  %v2169 = vunpack.c.l.b16 %v2153
  %v2170 = vpack.c.b16 %v2169, %v2168
  %v2179 = vunpack.c.l.b16 %v2154
  %v2180 = vunpack.c.l.b16 %v2155
  %v2181 = vunpack.c.l.b16 %v2156
  %v2182 = vunpack.c.l.b16 %v2157
  %v2183 = vunpack.c.l.b16 %v2158
  %v2184 = vunpack.c.l.b16 %v2159
  %v2185 = vunpack.c.l.b16 %v2160
  %v2186 = vunpack.c.l.b16 %v2161
  %v2187 = vpack.c.b16 %v2180, %v2179
  %v2188 = vpack.c.b16 %v2182, %v2181
  %v2189 = vpack.c.b16 %v2184, %v2183
  %v2190 = vpack.c.b16 %v2186, %v2185
  %v2196 = vsel %vm1357, %v2170, 0
  %2198 = vmatpush.bf16.msra.mxu0 0
  %2199 = vmatpush.bf16.msra.mxu0 0
  %2200 = vmatpush.bf16.msra.mxu0 0
  %2201 = vmatpush.bf16.msra.mxu0 0
  %2202 = vmatpush.bf16.msra.mxu0 %v2190
  %2203 = vmatpush.bf16.msra.mxu0 %v2189
  %2204 = vmatpush.bf16.msra.mxu0 %v2188
  %2205 = vmatpush.bf16.msra.mxu0 %v2187
  %2206 = vmatmul.bf16.gmra.mxu0 %v2196
  %v2207 = vpop.f32.mrf.mxu0
  %v2208 = vadd.f32 %v2164, %v2207
  %v2209 = vpop.f32.mrf.mxu0
  %v2210 = vadd.f32 %v2164, %v2209
  %2211 = vdwg.mxu0
  %v2212 = vld [vmem:[%s25] sm:$0x3]
  %v2213 = vadd.f32 %v2104, %v2208
  %v2214 = vadd.f32 %v2105, %v2210
  %v2215 = vsel %vm233, %v2213, 0.0
  %2216 = vadd.xlane.f32.xlu0 %v2215
  %v2217 = vpop.xlane.xlu0 %2216
  %v2218 = vsel %vm233, %v2214, 0.0
  %2219 = vadd.xlane.f32.xlu0 %v2218
  %v2220 = vpop.xlane.xlu0 %2219
  %v2221 = vmul.f32 %v2217, %v1157
  %v2222 = vmul.f32 %v2220, %v1157
  %v2223 = vsub.f32 %v2213, %v2221
  %v2224 = vsub.f32 %v2214, %v2222
  %v2225 = vmul.f32 %v2223, %v2223
  %v2226 = vmul.f32 %v2224, %v2224
  %v2227 = vsel %vm233, %v2225, 0.0
  %2228 = vadd.xlane.f32.xlu0 %v2227
  %v2229 = vpop.xlane.xlu0 %2228
  %v2230 = vsel %vm233, %v2226, 0.0
  %2231 = vadd.xlane.f32.xlu0 %v2230
  %v2232 = vpop.xlane.xlu0 %2231
  %v2233 = vmul.f32 %v2229, %v1157
  %v2234 = vmul.f32 %v2232, %v1157
  %v2235 = vadd.f32 %v2233, 1e-05
  %v2236 = vadd.f32 %v2234, 1e-05
  %v2237 = vrsqrt.pop %v2235
  %v2238 = vmul.f32 %v2237, %v2235
  %v2239 = vmul.f32 %v2238, %v2237
  %v2240 = vmul.f32 0.5, %v2239
  %v2241 = vsub.f32 1.5, %v2240
  %v2242 = vmul.f32 %v2237, %v2241
  %vm2243 = vweird.f32 %v2235
  %vm2244 = vweird.f32 %v2237
  %vm2245 = vmor %vm2243, %vm2244
  %v2246 = vsel %vm2245, %v2237, %v2242
  %v2247 = vrsqrt.pop %v2236
  %v2248 = vmul.f32 %v2247, %v2236
  %v2249 = vmul.f32 %v2248, %v2247
  %v2250 = vmul.f32 0.5, %v2249
  %v2251 = vsub.f32 1.5, %v2250
  %v2252 = vmul.f32 %v2247, %v2251
  %vm2253 = vweird.f32 %v2236
  %vm2254 = vweird.f32 %v2247
  %vm2255 = vmor %vm2253, %vm2254
  %v2256 = vsel %vm2255, %v2247, %v2252
  %v2257 = vmul.f32 %v2223, %v2246
  %v2258 = vmul.f32 %v2224, %v2256
  %v2259 = vperm.slane %v2212, 0
  %v2260 = vmul.f32 %v2257, %v2259
  %v2261 = vmul.f32 %v2258, %v2259
  %v2262 = vperm.slane %v2212, 1
  %v2263 = vadd.f32 %v2260, %v2262
  %v2264 = vadd.f32 %v2261, %v2262
  %v2265 = vadd.f32 %v2263, %v89
  %v2266 = vadd.f32 %v2264, %v90
  %v2267 = vpack.c.bf16 %v2265, %v2265
  %v2268 = vpack.c.bf16 %v2266, %v2266
  %s2269 = scalar_lea.vmem %s5, 16
  %v2270 = vld [vmem:[%s2269] sm:$0xf]
  %v2271 = vld [vmem:[%s2269 + $0x4] sm:$0xf]
  %v2272 = vld [vmem:[%s2269 + $0x8] sm:$0xf]
  %v2273 = vld [vmem:[%s2269 + $0xc] sm:$0xf]
  %s2274 = scalar_lea.vmem %s6, 1
  %v2275 = vld [vmem:[%s2274] sm:$0x1]
  %v2277 = vperm.slane %v2275, 0
  %v2281 = vunpack.c.l.b16 %v2267
  %v2282 = vunpack.c.l.b16 %v2268
  %v2283 = vpack.c.b16 %v2282, %v2281
  %v2288 = vunpack.c.l.b16 %v2270
  %v2289 = vunpack.c.l.b16 %v2271
  %v2290 = vunpack.c.l.b16 %v2272
  %v2291 = vunpack.c.l.b16 %v2273
  %v2292 = vpack.c.b16 %v2289, %v2288
  %v2293 = vpack.c.b16 %v2291, %v2290
  %v2297 = vsel %vm233, %v2283, 0
  %2299 = vmatpush.bf16.msra.mxu0 0
  %2300 = vmatpush.bf16.msra.mxu0 0
  %2301 = vmatpush.bf16.msra.mxu0 0
  %2302 = vmatpush.bf16.msra.mxu0 0
  %2303 = vmatpush.bf16.msra.mxu0 0
  %2304 = vmatpush.bf16.msra.mxu0 0
  %2305 = vmatpush.bf16.msra.mxu0 %v2293
  %2306 = vmatpush.bf16.msra.mxu0 %v2292
  %2307 = vmatmul.bf16.gmra.mxu0 %v2297
  %v2308 = vpop.f32.mrf.mxu0
  %v2309 = vadd.f32 %v2277, %v2308
  %v2310 = vpop.f32.mrf.mxu0
  %v2311 = vadd.f32 %v2277, %v2310
  %2312 = vdwg.mxu0
  %v2313 = vpack.c.bf16 %v2309, %v2309
  %v2314 = vpack.c.bf16 %v2311, %v2311
  %v2315 = vpack.c.bf16 %v2263, %v2263
  %v2316 = vpack.c.bf16 %v2264, %v2264
  %s2317 = scalar_lea.vmem %s7, 16
  %v2318 = vld [vmem:[%s2317] sm:$0xf]
  %v2319 = vld [vmem:[%s2317 + $0x4] sm:$0xf]
  %v2320 = vld [vmem:[%s2317 + $0x8] sm:$0xf]
  %v2321 = vld [vmem:[%s2317 + $0xc] sm:$0xf]
  %s2322 = scalar_lea.vmem %s8, 1
  %v2323 = vld [vmem:[%s2322] sm:$0x1]
  %v2325 = vperm.slane %v2323, 0
  %v2329 = vunpack.c.l.b16 %v2315
  %v2330 = vunpack.c.l.b16 %v2316
  %v2331 = vpack.c.b16 %v2330, %v2329
  %v2336 = vunpack.c.l.b16 %v2318
  %v2337 = vunpack.c.l.b16 %v2319
  %v2338 = vunpack.c.l.b16 %v2320
  %v2339 = vunpack.c.l.b16 %v2321
  %v2340 = vpack.c.b16 %v2337, %v2336
  %v2341 = vpack.c.b16 %v2339, %v2338
  %v2345 = vsel %vm233, %v2331, 0
  %2347 = vmatpush.bf16.msra.mxu0 0
  %2348 = vmatpush.bf16.msra.mxu0 0
  %2349 = vmatpush.bf16.msra.mxu0 0
  %2350 = vmatpush.bf16.msra.mxu0 0
  %2351 = vmatpush.bf16.msra.mxu0 0
  %2352 = vmatpush.bf16.msra.mxu0 0
  %2353 = vmatpush.bf16.msra.mxu0 %v2341
  %2354 = vmatpush.bf16.msra.mxu0 %v2340
  %2355 = vmatmul.bf16.gmra.mxu0 %v2345
  %v2356 = vpop.f32.mrf.mxu0
  %v2357 = vadd.f32 %v2325, %v2356
  %v2358 = vpop.f32.mrf.mxu0
  %v2359 = vadd.f32 %v2325, %v2358
  %2360 = vdwg.mxu0
  %v2361 = vpack.c.bf16 %v2357, %v2357
  %v2362 = vpack.c.bf16 %v2359, %v2359
  %s2363 = scalar_lea.vmem %s9, 16
  %v2364 = vld [vmem:[%s2363] sm:$0xf]
  %v2365 = vld [vmem:[%s2363 + $0x4] sm:$0xf]
  %v2366 = vld [vmem:[%s2363 + $0x8] sm:$0xf]
  %v2367 = vld [vmem:[%s2363 + $0xc] sm:$0xf]
  %s2368 = scalar_lea.vmem %s10, 1
  %v2369 = vld [vmem:[%s2368] sm:$0x1]
  %v2371 = vunpack.c.l.b16 %v2313
  %v2372 = vpack.c.b16 %v2371, %v2371
  %2373 = vrot.lane.b32.xlu0 %v2372, 96
  %v2374 = vpop.permute.xlu0 %2373
  %v2376 = vsel %vm576, %v2313, 0
  %v2379 = vsel %vm576, %v2374, 0
  %2381 = vmatpush.bf16.xpose.msra.mxu0 0
  %2382 = vmatpush.bf16.xpose.msra.mxu0 0
  %2383 = vmatpush.bf16.xpose.msra.mxu0 0
  %2384 = vmatpush.bf16.xpose.msra.mxu0 0
  %2385 = vmatpush.bf16.xpose.msra.mxu0 0
  %2386 = vmatpush.bf16.xpose.msra.mxu0 0
  %2387 = vmatpush.bf16.xpose.msra.mxu0 0
  %2388 = vmatpush.bf16.xpose.msra.mxu0 %v2379
  %2389 = vmatmul.bf16.gmra.mxu0 %v2376
  %v2390 = vpop.f32.mrf.mxu0
  %v2391 = vadd.f32 0.0, %v2390
  %v2392 = vpop.f32.mrf.mxu0
  %2393 = vdwg.mxu0
  %v2395 = vunpack.c.l.b16 %v2314
  %v2396 = vpack.c.b16 %v2395, %v2395
  %2397 = vrot.lane.b32.xlu0 %v2396, 96
  %v2398 = vpop.permute.xlu0 %2397
  %v2400 = vsel %vm576, %v2314, 0
  %v2403 = vsel %vm576, %v2398, 0
  %2405 = vmatpush.bf16.xpose.msra.mxu0 0
  %2406 = vmatpush.bf16.xpose.msra.mxu0 0
  %2407 = vmatpush.bf16.xpose.msra.mxu0 0
  %2408 = vmatpush.bf16.xpose.msra.mxu0 0
  %2409 = vmatpush.bf16.xpose.msra.mxu0 0
  %2410 = vmatpush.bf16.xpose.msra.mxu0 0
  %2411 = vmatpush.bf16.xpose.msra.mxu0 0
  %2412 = vmatpush.bf16.xpose.msra.mxu0 %v2403
  %2413 = vmatmul.bf16.gmra.mxu0 %v2400
  %v2414 = vpop.f32.mrf.mxu0
  %v2415 = vadd.f32 0.0, %v2414
  %v2416 = vpop.f32.mrf.mxu0
  %2417 = vdwg.mxu0
  %v2418 = vsel %vm576, %v2391, -inf
  %2419 = vmax.xlane.f32.xlu0 %v2418
  %v2420 = vpop.xlane.xlu0 %2419
  %v2421 = vsel %vm576, %v2415, -inf
  %2422 = vmax.xlane.f32.xlu0 %v2421
  %v2423 = vpop.xlane.xlu0 %2422
  %v2424 = vsub.f32 %v2391, %v2420
  %v2425 = vsub.f32 %v2415, %v2423
  %v2426 = vmul.f32 %v2424, 1.442695
  %v2427 = vpow.pop %v2426
  %v2428 = vmul.f32 %v2425, 1.442695
  %v2429 = vpow.pop %v2428
  %v2430 = vsel %vm576, %v2427, 0.0
  %2431 = vadd.xlane.f32.xlu0 %v2430
  %v2432 = vpop.xlane.xlu0 %2431
  %v2433 = vsel %vm576, %v2429, 0.0
  %2434 = vadd.xlane.f32.xlu0 %v2433
  %v2435 = vpop.xlane.xlu0 %2434
  %v2436 = vpack.c.bf16 %v2427, %v2427
  %v2437 = vpack.c.bf16 %v2429, %v2429
  %v2439 = vsel %vm576, %v2436, 0
  %v2442 = vsel %vm643, %v2361, 0
  %2444 = vmatpush.bf16.msra.mxu0 0
  %2445 = vmatpush.bf16.msra.mxu0 0
  %2446 = vmatpush.bf16.msra.mxu0 0
  %2447 = vmatpush.bf16.msra.mxu0 0
  %2448 = vmatpush.bf16.msra.mxu0 0
  %2449 = vmatpush.bf16.msra.mxu0 0
  %2450 = vmatpush.bf16.msra.mxu0 0
  %2451 = vmatpush.bf16.msra.mxu0 %v2442
  %2452 = vmatmul.bf16.gmra.mxu0 %v2439
  %v2453 = vpop.f32.mrf.mxu0
  %v2454 = vadd.f32 0.0, %v2453
  %v2455 = vpop.f32.mrf.mxu0
  %2456 = vdwg.mxu0
  %v2458 = vsel %vm576, %v2437, 0
  %v2461 = vsel %vm643, %v2362, 0
  %2463 = vmatpush.bf16.msra.mxu0 0
  %2464 = vmatpush.bf16.msra.mxu0 0
  %2465 = vmatpush.bf16.msra.mxu0 0
  %2466 = vmatpush.bf16.msra.mxu0 0
  %2467 = vmatpush.bf16.msra.mxu0 0
  %2468 = vmatpush.bf16.msra.mxu0 0
  %2469 = vmatpush.bf16.msra.mxu0 0
  %2470 = vmatpush.bf16.msra.mxu0 %v2461
  %2471 = vmatmul.bf16.gmra.mxu0 %v2458
  %v2472 = vpop.f32.mrf.mxu0
  %v2473 = vadd.f32 0.0, %v2472
  %v2474 = vpop.f32.mrf.mxu0
  %2475 = vdwg.mxu0
  %v2476 = vrcp.pop %v2432
  %v2477 = vrcp.pop %v2435
  %v2478 = vmul.f32 %v2454, %v2476
  %v2479 = vmul.f32 %v2473, %v2477
  %v2480 = vpack.c.bf16 %v2478, %v2478
  %v2481 = vpack.c.bf16 %v2479, %v2479
  %2482 = vrot.lane.b32.xlu0 %v2372, 120
  %v2483 = vpop.permute.xlu0 %2482
  %2484 = vrot.lane.b32.xlu0 %v2372, 88
  %v2485 = vpop.permute.xlu0 %2484
  %v2487 = vsel %vm576, %v2483, 0
  %v2490 = vsel %vm576, %v2485, 0
  %2492 = vmatpush.bf16.xpose.msra.mxu0 0
  %2493 = vmatpush.bf16.xpose.msra.mxu0 0
  %2494 = vmatpush.bf16.xpose.msra.mxu0 0
  %2495 = vmatpush.bf16.xpose.msra.mxu0 0
  %2496 = vmatpush.bf16.xpose.msra.mxu0 0
  %2497 = vmatpush.bf16.xpose.msra.mxu0 0
  %2498 = vmatpush.bf16.xpose.msra.mxu0 0
  %2499 = vmatpush.bf16.xpose.msra.mxu0 %v2490
  %2500 = vmatmul.bf16.gmra.mxu0 %v2487
  %v2501 = vpop.f32.mrf.mxu0
  %v2502 = vadd.f32 0.0, %v2501
  %v2503 = vpop.f32.mrf.mxu0
  %2504 = vdwg.mxu0
  %2505 = vrot.lane.b32.xlu0 %v2396, 120
  %v2506 = vpop.permute.xlu0 %2505
  %2507 = vrot.lane.b32.xlu0 %v2396, 88
  %v2508 = vpop.permute.xlu0 %2507
  %v2510 = vsel %vm576, %v2506, 0
  %v2513 = vsel %vm576, %v2508, 0
  %2515 = vmatpush.bf16.xpose.msra.mxu0 0
  %2516 = vmatpush.bf16.xpose.msra.mxu0 0
  %2517 = vmatpush.bf16.xpose.msra.mxu0 0
  %2518 = vmatpush.bf16.xpose.msra.mxu0 0
  %2519 = vmatpush.bf16.xpose.msra.mxu0 0
  %2520 = vmatpush.bf16.xpose.msra.mxu0 0
  %2521 = vmatpush.bf16.xpose.msra.mxu0 0
  %2522 = vmatpush.bf16.xpose.msra.mxu0 %v2513
  %2523 = vmatmul.bf16.gmra.mxu0 %v2510
  %v2524 = vpop.f32.mrf.mxu0
  %v2525 = vadd.f32 0.0, %v2524
  %v2526 = vpop.f32.mrf.mxu0
  %2527 = vdwg.mxu0
  %v2528 = vsel %vm576, %v2502, -inf
  %2529 = vmax.xlane.f32.xlu0 %v2528
  %v2530 = vpop.xlane.xlu0 %2529
  %v2531 = vsel %vm576, %v2525, -inf
  %2532 = vmax.xlane.f32.xlu0 %v2531
  %v2533 = vpop.xlane.xlu0 %2532
  %v2534 = vsub.f32 %v2502, %v2530
  %v2535 = vsub.f32 %v2525, %v2533
  %v2536 = vmul.f32 %v2534, 1.442695
  %v2537 = vpow.pop %v2536
  %v2538 = vmul.f32 %v2535, 1.442695
  %v2539 = vpow.pop %v2538
  %v2540 = vsel %vm576, %v2537, 0.0
  %2541 = vadd.xlane.f32.xlu0 %v2540
  %v2542 = vpop.xlane.xlu0 %2541
  %v2543 = vsel %vm576, %v2539, 0.0
  %2544 = vadd.xlane.f32.xlu0 %v2543
  %v2545 = vpop.xlane.xlu0 %2544
  %v2546 = vpack.c.bf16 %v2537, %v2537
  %v2547 = vpack.c.bf16 %v2539, %v2539
  %v2549 = vunpack.c.l.b16 %v2361
  %v2550 = vpack.c.b16 %v2549, %v2549
  %2551 = vrot.lane.b32.xlu0 %v2550, 120
  %v2552 = vpop.permute.xlu0 %2551
  %v2554 = vsel %vm576, %v2546, 0
  %v2557 = vsel %vm643, %v2552, 0
  %2559 = vmatpush.bf16.msra.mxu0 0
  %2560 = vmatpush.bf16.msra.mxu0 0
  %2561 = vmatpush.bf16.msra.mxu0 0
  %2562 = vmatpush.bf16.msra.mxu0 0
  %2563 = vmatpush.bf16.msra.mxu0 0
  %2564 = vmatpush.bf16.msra.mxu0 0
  %2565 = vmatpush.bf16.msra.mxu0 0
  %2566 = vmatpush.bf16.msra.mxu0 %v2557
  %2567 = vmatmul.bf16.gmra.mxu0 %v2554
  %v2568 = vpop.f32.mrf.mxu0
  %v2569 = vadd.f32 0.0, %v2568
  %v2570 = vpop.f32.mrf.mxu0
  %2571 = vdwg.mxu0
  %v2573 = vunpack.c.l.b16 %v2362
  %v2574 = vpack.c.b16 %v2573, %v2573
  %2575 = vrot.lane.b32.xlu0 %v2574, 120
  %v2576 = vpop.permute.xlu0 %2575
  %v2578 = vsel %vm576, %v2547, 0
  %v2581 = vsel %vm643, %v2576, 0
  %2583 = vmatpush.bf16.msra.mxu0 0
  %2584 = vmatpush.bf16.msra.mxu0 0
  %2585 = vmatpush.bf16.msra.mxu0 0
  %2586 = vmatpush.bf16.msra.mxu0 0
  %2587 = vmatpush.bf16.msra.mxu0 0
  %2588 = vmatpush.bf16.msra.mxu0 0
  %2589 = vmatpush.bf16.msra.mxu0 0
  %2590 = vmatpush.bf16.msra.mxu0 %v2581
  %2591 = vmatmul.bf16.gmra.mxu0 %v2578
  %v2592 = vpop.f32.mrf.mxu0
  %v2593 = vadd.f32 0.0, %v2592
  %v2594 = vpop.f32.mrf.mxu0
  %2595 = vdwg.mxu0
  %v2596 = vrcp.pop %v2542
  %v2597 = vrcp.pop %v2545
  %v2598 = vmul.f32 %v2569, %v2596
  %v2599 = vmul.f32 %v2593, %v2597
  %v2600 = vpack.c.bf16 %v2598, %v2598
  %v2601 = vpack.c.bf16 %v2599, %v2599
  %v2604 = vunpack.c.l.b16 %v2600
  %v2605 = vunpack.c.l.b16 %v2601
  %v2606 = vpack.c.b16 %v2605, %v2604
  %v2608 = vsel %vm576, %v2606, 0
  %v2611 = vsel %vm643, %v2365, 0
  %2613 = vmatpush.bf16.msra.mxu0 0
  %2614 = vmatpush.bf16.msra.mxu0 0
  %2615 = vmatpush.bf16.msra.mxu0 0
  %2616 = vmatpush.bf16.msra.mxu0 0
  %2617 = vmatpush.bf16.msra.mxu0 0
  %2618 = vmatpush.bf16.msra.mxu0 0
  %2619 = vmatpush.bf16.msra.mxu0 0
  %2620 = vmatpush.bf16.msra.mxu0 %v2611
  %2621 = vmatmul.bf16.gmra.mxu0 %v2608
  %v2622 = vpop.f32.mrf.mxu0
  %v2623 = vadd.f32 0.0, %v2622
  %v2624 = vpop.f32.mrf.mxu0
  %v2625 = vadd.f32 0.0, %v2624
  %2626 = vdwg.mxu0
  %v2629 = vunpack.c.l.b16 %v2480
  %v2630 = vunpack.c.l.b16 %v2481
  %v2631 = vpack.c.b16 %v2630, %v2629
  %v2633 = vsel %vm576, %v2631, 0
  %v2636 = vsel %vm643, %v2364, 0
  %2638 = vmatpush.bf16.msra.mxu0 0
  %2639 = vmatpush.bf16.msra.mxu0 0
  %2640 = vmatpush.bf16.msra.mxu0 0
  %2641 = vmatpush.bf16.msra.mxu0 0
  %2642 = vmatpush.bf16.msra.mxu0 0
  %2643 = vmatpush.bf16.msra.mxu0 0
  %2644 = vmatpush.bf16.msra.mxu0 0
  %2645 = vmatpush.bf16.msra.mxu0 %v2636
  %2646 = vmatmul.bf16.gmra.mxu0 %v2633
  %v2647 = vpop.f32.mrf.mxu0
  %v2648 = vadd.f32 %v2623, %v2647
  %v2649 = vpop.f32.mrf.mxu0
  %v2650 = vadd.f32 %v2625, %v2649
  %2651 = vdwg.mxu0
  %2652 = vrot.lane.b32.xlu0 %v2372, 112
  %v2653 = vpop.permute.xlu0 %2652
  %2654 = vrot.lane.b32.xlu0 %v2372, 80
  %v2655 = vpop.permute.xlu0 %2654
  %v2657 = vsel %vm576, %v2653, 0
  %v2660 = vsel %vm576, %v2655, 0
  %2662 = vmatpush.bf16.xpose.msra.mxu0 0
  %2663 = vmatpush.bf16.xpose.msra.mxu0 0
  %2664 = vmatpush.bf16.xpose.msra.mxu0 0
  %2665 = vmatpush.bf16.xpose.msra.mxu0 0
  %2666 = vmatpush.bf16.xpose.msra.mxu0 0
  %2667 = vmatpush.bf16.xpose.msra.mxu0 0
  %2668 = vmatpush.bf16.xpose.msra.mxu0 0
  %2669 = vmatpush.bf16.xpose.msra.mxu0 %v2660
  %2670 = vmatmul.bf16.gmra.mxu0 %v2657
  %v2671 = vpop.f32.mrf.mxu0
  %v2672 = vadd.f32 0.0, %v2671
  %v2673 = vpop.f32.mrf.mxu0
  %2674 = vdwg.mxu0
  %2675 = vrot.lane.b32.xlu0 %v2396, 112
  %v2676 = vpop.permute.xlu0 %2675
  %2677 = vrot.lane.b32.xlu0 %v2396, 80
  %v2678 = vpop.permute.xlu0 %2677
  %v2680 = vsel %vm576, %v2676, 0
  %v2683 = vsel %vm576, %v2678, 0
  %2685 = vmatpush.bf16.xpose.msra.mxu0 0
  %2686 = vmatpush.bf16.xpose.msra.mxu0 0
  %2687 = vmatpush.bf16.xpose.msra.mxu0 0
  %2688 = vmatpush.bf16.xpose.msra.mxu0 0
  %2689 = vmatpush.bf16.xpose.msra.mxu0 0
  %2690 = vmatpush.bf16.xpose.msra.mxu0 0
  %2691 = vmatpush.bf16.xpose.msra.mxu0 0
  %2692 = vmatpush.bf16.xpose.msra.mxu0 %v2683
  %2693 = vmatmul.bf16.gmra.mxu0 %v2680
  %v2694 = vpop.f32.mrf.mxu0
  %v2695 = vadd.f32 0.0, %v2694
  %v2696 = vpop.f32.mrf.mxu0
  %2697 = vdwg.mxu0
  %v2698 = vsel %vm576, %v2672, -inf
  %2699 = vmax.xlane.f32.xlu0 %v2698
  %v2700 = vpop.xlane.xlu0 %2699
  %v2701 = vsel %vm576, %v2695, -inf
  %2702 = vmax.xlane.f32.xlu0 %v2701
  %v2703 = vpop.xlane.xlu0 %2702
  %v2704 = vsub.f32 %v2672, %v2700
  %v2705 = vsub.f32 %v2695, %v2703
  %v2706 = vmul.f32 %v2704, 1.442695
  %v2707 = vpow.pop %v2706
  %v2708 = vmul.f32 %v2705, 1.442695
  %v2709 = vpow.pop %v2708
  %v2710 = vsel %vm576, %v2707, 0.0
  %2711 = vadd.xlane.f32.xlu0 %v2710
  %v2712 = vpop.xlane.xlu0 %2711
  %v2713 = vsel %vm576, %v2709, 0.0
  %2714 = vadd.xlane.f32.xlu0 %v2713
  %v2715 = vpop.xlane.xlu0 %2714
  %v2716 = vpack.c.bf16 %v2707, %v2707
  %v2717 = vpack.c.bf16 %v2709, %v2709
  %2718 = vrot.lane.b32.xlu0 %v2550, 112
  %v2719 = vpop.permute.xlu0 %2718
  %v2721 = vsel %vm576, %v2716, 0
  %v2724 = vsel %vm643, %v2719, 0
  %2726 = vmatpush.bf16.msra.mxu0 0
  %2727 = vmatpush.bf16.msra.mxu0 0
  %2728 = vmatpush.bf16.msra.mxu0 0
  %2729 = vmatpush.bf16.msra.mxu0 0
  %2730 = vmatpush.bf16.msra.mxu0 0
  %2731 = vmatpush.bf16.msra.mxu0 0
  %2732 = vmatpush.bf16.msra.mxu0 0
  %2733 = vmatpush.bf16.msra.mxu0 %v2724
  %2734 = vmatmul.bf16.gmra.mxu0 %v2721
  %v2735 = vpop.f32.mrf.mxu0
  %v2736 = vadd.f32 0.0, %v2735
  %v2737 = vpop.f32.mrf.mxu0
  %2738 = vdwg.mxu0
  %2739 = vrot.lane.b32.xlu0 %v2574, 112
  %v2740 = vpop.permute.xlu0 %2739
  %v2742 = vsel %vm576, %v2717, 0
  %v2745 = vsel %vm643, %v2740, 0
  %2747 = vmatpush.bf16.msra.mxu0 0
  %2748 = vmatpush.bf16.msra.mxu0 0
  %2749 = vmatpush.bf16.msra.mxu0 0
  %2750 = vmatpush.bf16.msra.mxu0 0
  %2751 = vmatpush.bf16.msra.mxu0 0
  %2752 = vmatpush.bf16.msra.mxu0 0
  %2753 = vmatpush.bf16.msra.mxu0 0
  %2754 = vmatpush.bf16.msra.mxu0 %v2745
  %2755 = vmatmul.bf16.gmra.mxu0 %v2742
  %v2756 = vpop.f32.mrf.mxu0
  %v2757 = vadd.f32 0.0, %v2756
  %v2758 = vpop.f32.mrf.mxu0
  %2759 = vdwg.mxu0
  %v2760 = vrcp.pop %v2712
  %v2761 = vrcp.pop %v2715
  %v2762 = vmul.f32 %v2736, %v2760
  %v2763 = vmul.f32 %v2757, %v2761
  %v2764 = vpack.c.bf16 %v2762, %v2762
  %v2765 = vpack.c.bf16 %v2763, %v2763
  %v2768 = vunpack.c.l.b16 %v2764
  %v2769 = vunpack.c.l.b16 %v2765
  %v2770 = vpack.c.b16 %v2769, %v2768
  %v2772 = vsel %vm576, %v2770, 0
  %v2775 = vsel %vm643, %v2366, 0
  %2777 = vmatpush.bf16.msra.mxu0 0
  %2778 = vmatpush.bf16.msra.mxu0 0
  %2779 = vmatpush.bf16.msra.mxu0 0
  %2780 = vmatpush.bf16.msra.mxu0 0
  %2781 = vmatpush.bf16.msra.mxu0 0
  %2782 = vmatpush.bf16.msra.mxu0 0
  %2783 = vmatpush.bf16.msra.mxu0 0
  %2784 = vmatpush.bf16.msra.mxu0 %v2775
  %2785 = vmatmul.bf16.gmra.mxu0 %v2772
  %v2786 = vpop.f32.mrf.mxu0
  %v2787 = vadd.f32 0.0, %v2786
  %v2788 = vpop.f32.mrf.mxu0
  %v2789 = vadd.f32 0.0, %v2788
  %2790 = vdwg.mxu0
  %v2791 = vadd.f32 %v2648, %v2787
  %v2792 = vadd.f32 %v2650, %v2789
  %2793 = vrot.lane.b32.xlu0 %v2372, 104
  %v2794 = vpop.permute.xlu0 %2793
  %2795 = vrot.lane.b32.xlu0 %v2372, 72
  %v2796 = vpop.permute.xlu0 %2795
  %v2798 = vsel %vm576, %v2794, 0
  %v2801 = vsel %vm576, %v2796, 0
  %2803 = vmatpush.bf16.xpose.msra.mxu0 0
  %2804 = vmatpush.bf16.xpose.msra.mxu0 0
  %2805 = vmatpush.bf16.xpose.msra.mxu0 0
  %2806 = vmatpush.bf16.xpose.msra.mxu0 0
  %2807 = vmatpush.bf16.xpose.msra.mxu0 0
  %2808 = vmatpush.bf16.xpose.msra.mxu0 0
  %2809 = vmatpush.bf16.xpose.msra.mxu0 0
  %2810 = vmatpush.bf16.xpose.msra.mxu0 %v2801
  %2811 = vmatmul.bf16.gmra.mxu0 %v2798
  %v2812 = vpop.f32.mrf.mxu0
  %v2813 = vadd.f32 0.0, %v2812
  %v2814 = vpop.f32.mrf.mxu0
  %2815 = vdwg.mxu0
  %2816 = vrot.lane.b32.xlu0 %v2396, 104
  %v2817 = vpop.permute.xlu0 %2816
  %2818 = vrot.lane.b32.xlu0 %v2396, 72
  %v2819 = vpop.permute.xlu0 %2818
  %v2821 = vsel %vm576, %v2817, 0
  %v2824 = vsel %vm576, %v2819, 0
  %2826 = vmatpush.bf16.xpose.msra.mxu0 0
  %2827 = vmatpush.bf16.xpose.msra.mxu0 0
  %2828 = vmatpush.bf16.xpose.msra.mxu0 0
  %2829 = vmatpush.bf16.xpose.msra.mxu0 0
  %2830 = vmatpush.bf16.xpose.msra.mxu0 0
  %2831 = vmatpush.bf16.xpose.msra.mxu0 0
  %2832 = vmatpush.bf16.xpose.msra.mxu0 0
  %2833 = vmatpush.bf16.xpose.msra.mxu0 %v2824
  %2834 = vmatmul.bf16.gmra.mxu0 %v2821
  %v2835 = vpop.f32.mrf.mxu0
  %v2836 = vadd.f32 0.0, %v2835
  %v2837 = vpop.f32.mrf.mxu0
  %2838 = vdwg.mxu0
  %v2839 = vsel %vm576, %v2813, -inf
  %2840 = vmax.xlane.f32.xlu0 %v2839
  %v2841 = vpop.xlane.xlu0 %2840
  %v2842 = vsel %vm576, %v2836, -inf
  %2843 = vmax.xlane.f32.xlu0 %v2842
  %v2844 = vpop.xlane.xlu0 %2843
  %v2845 = vsub.f32 %v2813, %v2841
  %v2846 = vsub.f32 %v2836, %v2844
  %v2847 = vmul.f32 %v2845, 1.442695
  %v2848 = vpow.pop %v2847
  %v2849 = vmul.f32 %v2846, 1.442695
  %v2850 = vpow.pop %v2849
  %v2851 = vsel %vm576, %v2848, 0.0
  %2852 = vadd.xlane.f32.xlu0 %v2851
  %v2853 = vpop.xlane.xlu0 %2852
  %v2854 = vsel %vm576, %v2850, 0.0
  %2855 = vadd.xlane.f32.xlu0 %v2854
  %v2856 = vpop.xlane.xlu0 %2855
  %v2857 = vpack.c.bf16 %v2848, %v2848
  %v2858 = vpack.c.bf16 %v2850, %v2850
  %2859 = vrot.lane.b32.xlu0 %v2550, 104
  %v2860 = vpop.permute.xlu0 %2859
  %v2862 = vsel %vm576, %v2857, 0
  %v2865 = vsel %vm643, %v2860, 0
  %2867 = vmatpush.bf16.msra.mxu0 0
  %2868 = vmatpush.bf16.msra.mxu0 0
  %2869 = vmatpush.bf16.msra.mxu0 0
  %2870 = vmatpush.bf16.msra.mxu0 0
  %2871 = vmatpush.bf16.msra.mxu0 0
  %2872 = vmatpush.bf16.msra.mxu0 0
  %2873 = vmatpush.bf16.msra.mxu0 0
  %2874 = vmatpush.bf16.msra.mxu0 %v2865
  %2875 = vmatmul.bf16.gmra.mxu0 %v2862
  %v2876 = vpop.f32.mrf.mxu0
  %v2877 = vadd.f32 0.0, %v2876
  %v2878 = vpop.f32.mrf.mxu0
  %2879 = vdwg.mxu0
  %2880 = vrot.lane.b32.xlu0 %v2574, 104
  %v2881 = vpop.permute.xlu0 %2880
  %v2883 = vsel %vm576, %v2858, 0
  %v2886 = vsel %vm643, %v2881, 0
  %2888 = vmatpush.bf16.msra.mxu0 0
  %2889 = vmatpush.bf16.msra.mxu0 0
  %2890 = vmatpush.bf16.msra.mxu0 0
  %2891 = vmatpush.bf16.msra.mxu0 0
  %2892 = vmatpush.bf16.msra.mxu0 0
  %2893 = vmatpush.bf16.msra.mxu0 0
  %2894 = vmatpush.bf16.msra.mxu0 0
  %2895 = vmatpush.bf16.msra.mxu0 %v2886
  %2896 = vmatmul.bf16.gmra.mxu0 %v2883
  %v2897 = vpop.f32.mrf.mxu0
  %v2898 = vadd.f32 0.0, %v2897
  %v2899 = vpop.f32.mrf.mxu0
  %2900 = vdwg.mxu0
  %v2901 = vrcp.pop %v2853
  %v2902 = vrcp.pop %v2856
  %v2903 = vmul.f32 %v2877, %v2901
  %v2904 = vmul.f32 %v2898, %v2902
  %v2905 = vpack.c.bf16 %v2903, %v2903
  %v2906 = vpack.c.bf16 %v2904, %v2904
  %v2909 = vunpack.c.l.b16 %v2905
  %v2910 = vunpack.c.l.b16 %v2906
  %v2911 = vpack.c.b16 %v2910, %v2909
  %v2913 = vsel %vm576, %v2911, 0
  %v2916 = vsel %vm643, %v2367, 0
  %2918 = vmatpush.bf16.msra.mxu0 0
  %2919 = vmatpush.bf16.msra.mxu0 0
  %2920 = vmatpush.bf16.msra.mxu0 0
  %2921 = vmatpush.bf16.msra.mxu0 0
  %2922 = vmatpush.bf16.msra.mxu0 0
  %2923 = vmatpush.bf16.msra.mxu0 0
  %2924 = vmatpush.bf16.msra.mxu0 0
  %2925 = vmatpush.bf16.msra.mxu0 %v2916
  %2926 = vmatmul.bf16.gmra.mxu0 %v2913
  %v2927 = vpop.f32.mrf.mxu0
  %v2928 = vadd.f32 0.0, %v2927
  %v2929 = vpop.f32.mrf.mxu0
  %v2930 = vadd.f32 0.0, %v2929
  %2931 = vdwg.mxu0
  %v2932 = vadd.f32 %v2791, %v2928
  %v2933 = vadd.f32 %v2792, %v2930
  %v2935 = vperm.slane %v2369, 0
  %v2937 = vadd.f32 %v2932, %v2935
  %v2938 = vadd.f32 %v2933, %v2935
  %s2939 = scalar_lea.vmem %s23, 2
  %v2940 = vld [vmem:[%s2939] sm:$0x3]
  %v2941 = vadd.f32 %v2263, %v2937
  %v2942 = vadd.f32 %v2264, %v2938
  %v2943 = vsel %vm233, %v2941, 0.0
  %2944 = vadd.xlane.f32.xlu0 %v2943
  %v2945 = vpop.xlane.xlu0 %2944
  %v2946 = vsel %vm233, %v2942, 0.0
  %2947 = vadd.xlane.f32.xlu0 %v2946
  %v2948 = vpop.xlane.xlu0 %2947
  %v2949 = vmul.f32 %v2945, %v1157
  %v2950 = vmul.f32 %v2948, %v1157
  %v2951 = vsub.f32 %v2941, %v2949
  %v2952 = vsub.f32 %v2942, %v2950
  %v2953 = vmul.f32 %v2951, %v2951
  %v2954 = vmul.f32 %v2952, %v2952
  %v2955 = vsel %vm233, %v2953, 0.0
  %2956 = vadd.xlane.f32.xlu0 %v2955
  %v2957 = vpop.xlane.xlu0 %2956
  %v2958 = vsel %vm233, %v2954, 0.0
  %2959 = vadd.xlane.f32.xlu0 %v2958
  %v2960 = vpop.xlane.xlu0 %2959
  %v2961 = vmul.f32 %v2957, %v1157
  %v2962 = vmul.f32 %v2960, %v1157
  %v2963 = vadd.f32 %v2961, 1e-05
  %v2964 = vadd.f32 %v2962, 1e-05
  %v2965 = vrsqrt.pop %v2963
  %v2966 = vmul.f32 %v2965, %v2963
  %v2967 = vmul.f32 %v2966, %v2965
  %v2968 = vmul.f32 0.5, %v2967
  %v2969 = vsub.f32 1.5, %v2968
  %v2970 = vmul.f32 %v2965, %v2969
  %vm2971 = vweird.f32 %v2963
  %vm2972 = vweird.f32 %v2965
  %vm2973 = vmor %vm2971, %vm2972
  %v2974 = vsel %vm2973, %v2965, %v2970
  %v2975 = vrsqrt.pop %v2964
  %v2976 = vmul.f32 %v2975, %v2964
  %v2977 = vmul.f32 %v2976, %v2975
  %v2978 = vmul.f32 0.5, %v2977
  %v2979 = vsub.f32 1.5, %v2978
  %v2980 = vmul.f32 %v2975, %v2979
  %vm2981 = vweird.f32 %v2964
  %vm2982 = vweird.f32 %v2975
  %vm2983 = vmor %vm2981, %vm2982
  %v2984 = vsel %vm2983, %v2975, %v2980
  %v2985 = vmul.f32 %v2951, %v2974
  %v2986 = vmul.f32 %v2952, %v2984
  %v2987 = vperm.slane %v2940, 0
  %v2988 = vmul.f32 %v2985, %v2987
  %v2989 = vmul.f32 %v2986, %v2987
  %v2990 = vperm.slane %v2940, 1
  %v2991 = vadd.f32 %v2988, %v2990
  %v2992 = vadd.f32 %v2989, %v2990
  %v2993 = vadd.f32 %v2991, %v89
  %v2994 = vadd.f32 %v2992, %v90
  %v2995 = vpack.c.bf16 %v2993, %v2993
  %v2996 = vpack.c.bf16 %v2994, %v2994
  %s2997 = scalar_lea.vmem %s11, 16
  %v2998 = vld [vmem:[%s2997] sm:$0xf]
  %v2999 = vld [vmem:[%s2997 + $0x4] sm:$0xf]
  %v3000 = vld [vmem:[%s2997 + $0x8] sm:$0xf]
  %v3001 = vld [vmem:[%s2997 + $0xc] sm:$0xf]
  %s3002 = scalar_lea.vmem %s12, 1
  %v3003 = vld [vmem:[%s3002] sm:$0x1]
  %v3005 = vperm.slane %v3003, 0
  %v3009 = vunpack.c.l.b16 %v2995
  %v3010 = vunpack.c.l.b16 %v2996
  %v3011 = vpack.c.b16 %v3010, %v3009
  %v3016 = vunpack.c.l.b16 %v2998
  %v3017 = vunpack.c.l.b16 %v2999
  %v3018 = vunpack.c.l.b16 %v3000
  %v3019 = vunpack.c.l.b16 %v3001
  %v3020 = vpack.c.b16 %v3017, %v3016
  %v3021 = vpack.c.b16 %v3019, %v3018
  %v3025 = vsel %vm233, %v3011, 0
  %3027 = vmatpush.bf16.msra.mxu0 0
  %3028 = vmatpush.bf16.msra.mxu0 0
  %3029 = vmatpush.bf16.msra.mxu0 0
  %3030 = vmatpush.bf16.msra.mxu0 0
  %3031 = vmatpush.bf16.msra.mxu0 0
  %3032 = vmatpush.bf16.msra.mxu0 0
  %3033 = vmatpush.bf16.msra.mxu0 %v3021
  %3034 = vmatpush.bf16.msra.mxu0 %v3020
  %3035 = vmatmul.bf16.gmra.mxu0 %v3025
  %v3036 = vpop.f32.mrf.mxu0
  %v3037 = vadd.f32 %v3005, %v3036
  %v3038 = vpop.f32.mrf.mxu0
  %v3039 = vadd.f32 %v3005, %v3038
  %3040 = vdwg.mxu0
  %v3041 = vpack.c.bf16 %v3037, %v3037
  %v3042 = vpack.c.bf16 %v3039, %v3039
  %s3043 = scalar_lea.vmem %s17, 16
  %v3044 = vld [vmem:[%s3043] sm:$0xf]
  %v3045 = vld [vmem:[%s3043 + $0x4] sm:$0xf]
  %v3046 = vld [vmem:[%s3043 + $0x8] sm:$0xf]
  %v3047 = vld [vmem:[%s3043 + $0xc] sm:$0xf]
  %s3048 = scalar_lea.vmem %s18, 1
  %v3049 = vld [vmem:[%s3048] sm:$0x1]
  %3050 = vrot.lane.b32.xlu0 %v1277, 96
  %v3051 = vpop.permute.xlu0 %3050
  %3052 = vrot.lane.b32.xlu0 %v1278, 96
  %v3053 = vpop.permute.xlu0 %3052
  %3054 = vrot.lane.b32.xlu0 %v1279, 96
  %v3055 = vpop.permute.xlu0 %3054
  %3056 = vrot.lane.b32.xlu0 %v1280, 96
  %v3057 = vpop.permute.xlu0 %3056
  %v3059 = vsel %vm576, %v3041, 0
  %v3062 = vsel %vm576, %v3051, 0
  %v3065 = vsel %vm576, %v3053, 0
  %v3068 = vsel %vm576, %v3055, 0
  %v3071 = vsel %vm576, %v3057, 0
  %3073 = vmatpush.bf16.xpose.msra.mxu0 0
  %3074 = vmatpush.bf16.xpose.msra.mxu0 0
  %3075 = vmatpush.bf16.xpose.msra.mxu0 0
  %3076 = vmatpush.bf16.xpose.msra.mxu0 0
  %3077 = vmatpush.bf16.xpose.msra.mxu0 %v3071
  %3078 = vmatpush.bf16.xpose.msra.mxu0 %v3068
  %3079 = vmatpush.bf16.xpose.msra.mxu0 %v3065
  %3080 = vmatpush.bf16.xpose.msra.mxu0 %v3062
  %3081 = vmatmul.bf16.gmra.mxu0 %v3059
  %v3082 = vpop.f32.mrf.mxu0
  %v3083 = vadd.f32 %v1257, %v3082
  %v3084 = vpop.f32.mrf.mxu0
  %3085 = vdwg.mxu0
  %3086 = vrot.lane.b32.xlu0 %v1325, 96
  %v3087 = vpop.permute.xlu0 %3086
  %3088 = vrot.lane.b32.xlu0 %v1326, 96
  %v3089 = vpop.permute.xlu0 %3088
  %3090 = vrot.lane.b32.xlu0 %v1327, 96
  %v3091 = vpop.permute.xlu0 %3090
  %3092 = vrot.lane.b32.xlu0 %v1328, 96
  %v3093 = vpop.permute.xlu0 %3092
  %v3095 = vsel %vm576, %v3042, 0
  %v3098 = vsel %vm576, %v3087, 0
  %v3101 = vsel %vm576, %v3089, 0
  %v3104 = vsel %vm576, %v3091, 0
  %v3107 = vsel %vm576, %v3093, 0
  %3109 = vmatpush.bf16.xpose.msra.mxu0 0
  %3110 = vmatpush.bf16.xpose.msra.mxu0 0
  %3111 = vmatpush.bf16.xpose.msra.mxu0 0
  %3112 = vmatpush.bf16.xpose.msra.mxu0 0
  %3113 = vmatpush.bf16.xpose.msra.mxu0 %v3107
  %3114 = vmatpush.bf16.xpose.msra.mxu0 %v3104
  %3115 = vmatpush.bf16.xpose.msra.mxu0 %v3101
  %3116 = vmatpush.bf16.xpose.msra.mxu0 %v3098
  %3117 = vmatmul.bf16.gmra.mxu0 %v3095
  %v3118 = vpop.f32.mrf.mxu0
  %v3119 = vadd.f32 %v1258, %v3118
  %v3120 = vpop.f32.mrf.mxu0
  %3121 = vdwg.mxu0
  %v3122 = vsel %vm1357, %v3083, -inf
  %3123 = vmax.xlane.f32.xlu0 %v3122
  %v3124 = vpop.xlane.xlu0 %3123
  %v3125 = vsel %vm1357, %v3119, -inf
  %3126 = vmax.xlane.f32.xlu0 %v3125
  %v3127 = vpop.xlane.xlu0 %3126
  %v3128 = vsub.f32 %v3083, %v3124
  %v3129 = vsub.f32 %v3119, %v3127
  %v3130 = vmul.f32 %v3128, 1.442695
  %v3131 = vpow.pop %v3130
  %v3132 = vmul.f32 %v3129, 1.442695
  %v3133 = vpow.pop %v3132
  %v3134 = vsel %vm1357, %v3131, 0.0
  %3135 = vadd.xlane.f32.xlu0 %v3134
  %v3136 = vpop.xlane.xlu0 %3135
  %v3137 = vsel %vm1357, %v3133, 0.0
  %3138 = vadd.xlane.f32.xlu0 %v3137
  %v3139 = vpop.xlane.xlu0 %3138
  %v3140 = vpack.c.bf16 %v3131, %v3131
  %v3141 = vpack.c.bf16 %v3133, %v3133
  %3142 = vrot.lane.b32.xlu0 %v1394, 96
  %v3143 = vpop.permute.xlu0 %3142
  %3144 = vrot.lane.b32.xlu0 %v1395, 96
  %v3145 = vpop.permute.xlu0 %3144
  %3146 = vrot.lane.b32.xlu0 %v1396, 96
  %v3147 = vpop.permute.xlu0 %3146
  %3148 = vrot.lane.b32.xlu0 %v1397, 96
  %v3149 = vpop.permute.xlu0 %3148
  %v3155 = vsel %vm1357, %v3140, 0
  %3157 = vmatpush.bf16.msra.mxu0 0
  %3158 = vmatpush.bf16.msra.mxu0 0
  %3159 = vmatpush.bf16.msra.mxu0 0
  %3160 = vmatpush.bf16.msra.mxu0 0
  %3161 = vmatpush.bf16.msra.mxu0 %v3149
  %3162 = vmatpush.bf16.msra.mxu0 %v3147
  %3163 = vmatpush.bf16.msra.mxu0 %v3145
  %3164 = vmatpush.bf16.msra.mxu0 %v3143
  %3165 = vmatmul.bf16.gmra.mxu0 %v3155
  %v3166 = vpop.f32.mrf.mxu0
  %v3167 = vadd.f32 0.0, %v3166
  %v3168 = vpop.f32.mrf.mxu0
  %3169 = vdwg.mxu0
  %3170 = vrot.lane.b32.xlu0 %v1434, 96
  %v3171 = vpop.permute.xlu0 %3170
  %3172 = vrot.lane.b32.xlu0 %v1435, 96
  %v3173 = vpop.permute.xlu0 %3172
  %3174 = vrot.lane.b32.xlu0 %v1436, 96
  %v3175 = vpop.permute.xlu0 %3174
  %3176 = vrot.lane.b32.xlu0 %v1437, 96
  %v3177 = vpop.permute.xlu0 %3176
  %v3183 = vsel %vm1357, %v3141, 0
  %3185 = vmatpush.bf16.msra.mxu0 0
  %3186 = vmatpush.bf16.msra.mxu0 0
  %3187 = vmatpush.bf16.msra.mxu0 0
  %3188 = vmatpush.bf16.msra.mxu0 0
  %3189 = vmatpush.bf16.msra.mxu0 %v3177
  %3190 = vmatpush.bf16.msra.mxu0 %v3175
  %3191 = vmatpush.bf16.msra.mxu0 %v3173
  %3192 = vmatpush.bf16.msra.mxu0 %v3171
  %3193 = vmatmul.bf16.gmra.mxu0 %v3183
  %v3194 = vpop.f32.mrf.mxu0
  %v3195 = vadd.f32 0.0, %v3194
  %v3196 = vpop.f32.mrf.mxu0
  %3197 = vdwg.mxu0
  %v3198 = vrcp.pop %v3136
  %v3199 = vrcp.pop %v3139
  %v3200 = vmul.f32 %v3167, %v3198
  %v3201 = vmul.f32 %v3195, %v3199
  %v3202 = vpack.c.bf16 %v3200, %v3200
  %v3203 = vpack.c.bf16 %v3201, %v3201
  %v3205 = vunpack.c.l.b16 %v3041
  %v3206 = vpack.c.b16 %v3205, %v3205
  %3207 = vrot.lane.b32.xlu0 %v3206, 120
  %v3208 = vpop.permute.xlu0 %3207
  %3209 = vrot.lane.b32.xlu0 %v1277, 88
  %v3210 = vpop.permute.xlu0 %3209
  %3211 = vrot.lane.b32.xlu0 %v1278, 88
  %v3212 = vpop.permute.xlu0 %3211
  %3213 = vrot.lane.b32.xlu0 %v1279, 88
  %v3214 = vpop.permute.xlu0 %3213
  %3215 = vrot.lane.b32.xlu0 %v1280, 88
  %v3216 = vpop.permute.xlu0 %3215
  %v3218 = vsel %vm576, %v3208, 0
  %v3221 = vsel %vm576, %v3210, 0
  %v3224 = vsel %vm576, %v3212, 0
  %v3227 = vsel %vm576, %v3214, 0
  %v3230 = vsel %vm576, %v3216, 0
  %3232 = vmatpush.bf16.xpose.msra.mxu0 0
  %3233 = vmatpush.bf16.xpose.msra.mxu0 0
  %3234 = vmatpush.bf16.xpose.msra.mxu0 0
  %3235 = vmatpush.bf16.xpose.msra.mxu0 0
  %3236 = vmatpush.bf16.xpose.msra.mxu0 %v3230
  %3237 = vmatpush.bf16.xpose.msra.mxu0 %v3227
  %3238 = vmatpush.bf16.xpose.msra.mxu0 %v3224
  %3239 = vmatpush.bf16.xpose.msra.mxu0 %v3221
  %3240 = vmatmul.bf16.gmra.mxu0 %v3218
  %v3241 = vpop.f32.mrf.mxu0
  %v3242 = vadd.f32 %v1257, %v3241
  %v3243 = vpop.f32.mrf.mxu0
  %3244 = vdwg.mxu0
  %v3246 = vunpack.c.l.b16 %v3042
  %v3247 = vpack.c.b16 %v3246, %v3246
  %3248 = vrot.lane.b32.xlu0 %v3247, 120
  %v3249 = vpop.permute.xlu0 %3248
  %3250 = vrot.lane.b32.xlu0 %v1325, 88
  %v3251 = vpop.permute.xlu0 %3250
  %3252 = vrot.lane.b32.xlu0 %v1326, 88
  %v3253 = vpop.permute.xlu0 %3252
  %3254 = vrot.lane.b32.xlu0 %v1327, 88
  %v3255 = vpop.permute.xlu0 %3254
  %3256 = vrot.lane.b32.xlu0 %v1328, 88
  %v3257 = vpop.permute.xlu0 %3256
  %v3259 = vsel %vm576, %v3249, 0
  %v3262 = vsel %vm576, %v3251, 0
  %v3265 = vsel %vm576, %v3253, 0
  %v3268 = vsel %vm576, %v3255, 0
  %v3271 = vsel %vm576, %v3257, 0
  %3273 = vmatpush.bf16.xpose.msra.mxu0 0
  %3274 = vmatpush.bf16.xpose.msra.mxu0 0
  %3275 = vmatpush.bf16.xpose.msra.mxu0 0
  %3276 = vmatpush.bf16.xpose.msra.mxu0 0
  %3277 = vmatpush.bf16.xpose.msra.mxu0 %v3271
  %3278 = vmatpush.bf16.xpose.msra.mxu0 %v3268
  %3279 = vmatpush.bf16.xpose.msra.mxu0 %v3265
  %3280 = vmatpush.bf16.xpose.msra.mxu0 %v3262
  %3281 = vmatmul.bf16.gmra.mxu0 %v3259
  %v3282 = vpop.f32.mrf.mxu0
  %v3283 = vadd.f32 %v1258, %v3282
  %v3284 = vpop.f32.mrf.mxu0
  %3285 = vdwg.mxu0
  %v3286 = vsel %vm1357, %v3242, -inf
  %3287 = vmax.xlane.f32.xlu0 %v3286
  %v3288 = vpop.xlane.xlu0 %3287
  %v3289 = vsel %vm1357, %v3283, -inf
  %3290 = vmax.xlane.f32.xlu0 %v3289
  %v3291 = vpop.xlane.xlu0 %3290
  %v3292 = vsub.f32 %v3242, %v3288
  %v3293 = vsub.f32 %v3283, %v3291
  %v3294 = vmul.f32 %v3292, 1.442695
  %v3295 = vpow.pop %v3294
  %v3296 = vmul.f32 %v3293, 1.442695
  %v3297 = vpow.pop %v3296
  %v3298 = vsel %vm1357, %v3295, 0.0
  %3299 = vadd.xlane.f32.xlu0 %v3298
  %v3300 = vpop.xlane.xlu0 %3299
  %v3301 = vsel %vm1357, %v3297, 0.0
  %3302 = vadd.xlane.f32.xlu0 %v3301
  %v3303 = vpop.xlane.xlu0 %3302
  %v3304 = vpack.c.bf16 %v3295, %v3295
  %v3305 = vpack.c.bf16 %v3297, %v3297
  %3306 = vrot.lane.b32.xlu0 %v1394, 88
  %v3307 = vpop.permute.xlu0 %3306
  %3308 = vrot.lane.b32.xlu0 %v1395, 88
  %v3309 = vpop.permute.xlu0 %3308
  %3310 = vrot.lane.b32.xlu0 %v1396, 88
  %v3311 = vpop.permute.xlu0 %3310
  %3312 = vrot.lane.b32.xlu0 %v1397, 88
  %v3313 = vpop.permute.xlu0 %3312
  %v3319 = vsel %vm1357, %v3304, 0
  %3321 = vmatpush.bf16.msra.mxu0 0
  %3322 = vmatpush.bf16.msra.mxu0 0
  %3323 = vmatpush.bf16.msra.mxu0 0
  %3324 = vmatpush.bf16.msra.mxu0 0
  %3325 = vmatpush.bf16.msra.mxu0 %v3313
  %3326 = vmatpush.bf16.msra.mxu0 %v3311
  %3327 = vmatpush.bf16.msra.mxu0 %v3309
  %3328 = vmatpush.bf16.msra.mxu0 %v3307
  %3329 = vmatmul.bf16.gmra.mxu0 %v3319
  %v3330 = vpop.f32.mrf.mxu0
  %v3331 = vadd.f32 0.0, %v3330
  %v3332 = vpop.f32.mrf.mxu0
  %3333 = vdwg.mxu0
  %3334 = vrot.lane.b32.xlu0 %v1434, 88
  %v3335 = vpop.permute.xlu0 %3334
  %3336 = vrot.lane.b32.xlu0 %v1435, 88
  %v3337 = vpop.permute.xlu0 %3336
  %3338 = vrot.lane.b32.xlu0 %v1436, 88
  %v3339 = vpop.permute.xlu0 %3338
  %3340 = vrot.lane.b32.xlu0 %v1437, 88
  %v3341 = vpop.permute.xlu0 %3340
  %v3347 = vsel %vm1357, %v3305, 0
  %3349 = vmatpush.bf16.msra.mxu0 0
  %3350 = vmatpush.bf16.msra.mxu0 0
  %3351 = vmatpush.bf16.msra.mxu0 0
  %3352 = vmatpush.bf16.msra.mxu0 0
  %3353 = vmatpush.bf16.msra.mxu0 %v3341
  %3354 = vmatpush.bf16.msra.mxu0 %v3339
  %3355 = vmatpush.bf16.msra.mxu0 %v3337
  %3356 = vmatpush.bf16.msra.mxu0 %v3335
  %3357 = vmatmul.bf16.gmra.mxu0 %v3347
  %v3358 = vpop.f32.mrf.mxu0
  %v3359 = vadd.f32 0.0, %v3358
  %v3360 = vpop.f32.mrf.mxu0
  %3361 = vdwg.mxu0
  %v3362 = vrcp.pop %v3300
  %v3363 = vrcp.pop %v3303
  %v3364 = vmul.f32 %v3331, %v3362
  %v3365 = vmul.f32 %v3359, %v3363
  %v3366 = vpack.c.bf16 %v3364, %v3364
  %v3367 = vpack.c.bf16 %v3365, %v3365
  %v3370 = vunpack.c.l.b16 %v3366
  %v3371 = vunpack.c.l.b16 %v3367
  %v3372 = vpack.c.b16 %v3371, %v3370
  %v3374 = vsel %vm576, %v3372, 0
  %v3377 = vsel %vm643, %v3045, 0
  %3379 = vmatpush.bf16.msra.mxu0 0
  %3380 = vmatpush.bf16.msra.mxu0 0
  %3381 = vmatpush.bf16.msra.mxu0 0
  %3382 = vmatpush.bf16.msra.mxu0 0
  %3383 = vmatpush.bf16.msra.mxu0 0
  %3384 = vmatpush.bf16.msra.mxu0 0
  %3385 = vmatpush.bf16.msra.mxu0 0
  %3386 = vmatpush.bf16.msra.mxu0 %v3377
  %3387 = vmatmul.bf16.gmra.mxu0 %v3374
  %v3388 = vpop.f32.mrf.mxu0
  %v3389 = vadd.f32 0.0, %v3388
  %v3390 = vpop.f32.mrf.mxu0
  %v3391 = vadd.f32 0.0, %v3390
  %3392 = vdwg.mxu0
  %v3395 = vunpack.c.l.b16 %v3202
  %v3396 = vunpack.c.l.b16 %v3203
  %v3397 = vpack.c.b16 %v3396, %v3395
  %v3399 = vsel %vm576, %v3397, 0
  %v3402 = vsel %vm643, %v3044, 0
  %3404 = vmatpush.bf16.msra.mxu0 0
  %3405 = vmatpush.bf16.msra.mxu0 0
  %3406 = vmatpush.bf16.msra.mxu0 0
  %3407 = vmatpush.bf16.msra.mxu0 0
  %3408 = vmatpush.bf16.msra.mxu0 0
  %3409 = vmatpush.bf16.msra.mxu0 0
  %3410 = vmatpush.bf16.msra.mxu0 0
  %3411 = vmatpush.bf16.msra.mxu0 %v3402
  %3412 = vmatmul.bf16.gmra.mxu0 %v3399
  %v3413 = vpop.f32.mrf.mxu0
  %v3414 = vadd.f32 %v3389, %v3413
  %v3415 = vpop.f32.mrf.mxu0
  %v3416 = vadd.f32 %v3391, %v3415
  %3417 = vdwg.mxu0
  %3418 = vrot.lane.b32.xlu0 %v3206, 112
  %v3419 = vpop.permute.xlu0 %3418
  %3420 = vrot.lane.b32.xlu0 %v1277, 80
  %v3421 = vpop.permute.xlu0 %3420
  %3422 = vrot.lane.b32.xlu0 %v1278, 80
  %v3423 = vpop.permute.xlu0 %3422
  %3424 = vrot.lane.b32.xlu0 %v1279, 80
  %v3425 = vpop.permute.xlu0 %3424
  %3426 = vrot.lane.b32.xlu0 %v1280, 80
  %v3427 = vpop.permute.xlu0 %3426
  %v3429 = vsel %vm576, %v3419, 0
  %v3432 = vsel %vm576, %v3421, 0
  %v3435 = vsel %vm576, %v3423, 0
  %v3438 = vsel %vm576, %v3425, 0
  %v3441 = vsel %vm576, %v3427, 0
  %3443 = vmatpush.bf16.xpose.msra.mxu0 0
  %3444 = vmatpush.bf16.xpose.msra.mxu0 0
  %3445 = vmatpush.bf16.xpose.msra.mxu0 0
  %3446 = vmatpush.bf16.xpose.msra.mxu0 0
  %3447 = vmatpush.bf16.xpose.msra.mxu0 %v3441
  %3448 = vmatpush.bf16.xpose.msra.mxu0 %v3438
  %3449 = vmatpush.bf16.xpose.msra.mxu0 %v3435
  %3450 = vmatpush.bf16.xpose.msra.mxu0 %v3432
  %3451 = vmatmul.bf16.gmra.mxu0 %v3429
  %v3452 = vpop.f32.mrf.mxu0
  %v3453 = vadd.f32 %v1257, %v3452
  %v3454 = vpop.f32.mrf.mxu0
  %3455 = vdwg.mxu0
  %3456 = vrot.lane.b32.xlu0 %v3247, 112
  %v3457 = vpop.permute.xlu0 %3456
  %3458 = vrot.lane.b32.xlu0 %v1325, 80
  %v3459 = vpop.permute.xlu0 %3458
  %3460 = vrot.lane.b32.xlu0 %v1326, 80
  %v3461 = vpop.permute.xlu0 %3460
  %3462 = vrot.lane.b32.xlu0 %v1327, 80
  %v3463 = vpop.permute.xlu0 %3462
  %3464 = vrot.lane.b32.xlu0 %v1328, 80
  %v3465 = vpop.permute.xlu0 %3464
  %v3467 = vsel %vm576, %v3457, 0
  %v3470 = vsel %vm576, %v3459, 0
  %v3473 = vsel %vm576, %v3461, 0
  %v3476 = vsel %vm576, %v3463, 0
  %v3479 = vsel %vm576, %v3465, 0
  %3481 = vmatpush.bf16.xpose.msra.mxu0 0
  %3482 = vmatpush.bf16.xpose.msra.mxu0 0
  %3483 = vmatpush.bf16.xpose.msra.mxu0 0
  %3484 = vmatpush.bf16.xpose.msra.mxu0 0
  %3485 = vmatpush.bf16.xpose.msra.mxu0 %v3479
  %3486 = vmatpush.bf16.xpose.msra.mxu0 %v3476
  %3487 = vmatpush.bf16.xpose.msra.mxu0 %v3473
  %3488 = vmatpush.bf16.xpose.msra.mxu0 %v3470
  %3489 = vmatmul.bf16.gmra.mxu0 %v3467
  %v3490 = vpop.f32.mrf.mxu0
  %v3491 = vadd.f32 %v1258, %v3490
  %v3492 = vpop.f32.mrf.mxu0
  %3493 = vdwg.mxu0
  %v3494 = vsel %vm1357, %v3453, -inf
  %3495 = vmax.xlane.f32.xlu0 %v3494
  %v3496 = vpop.xlane.xlu0 %3495
  %v3497 = vsel %vm1357, %v3491, -inf
  %3498 = vmax.xlane.f32.xlu0 %v3497
  %v3499 = vpop.xlane.xlu0 %3498
  %v3500 = vsub.f32 %v3453, %v3496
  %v3501 = vsub.f32 %v3491, %v3499
  %v3502 = vmul.f32 %v3500, 1.442695
  %v3503 = vpow.pop %v3502
  %v3504 = vmul.f32 %v3501, 1.442695
  %v3505 = vpow.pop %v3504
  %v3506 = vsel %vm1357, %v3503, 0.0
  %3507 = vadd.xlane.f32.xlu0 %v3506
  %v3508 = vpop.xlane.xlu0 %3507
  %v3509 = vsel %vm1357, %v3505, 0.0
  %3510 = vadd.xlane.f32.xlu0 %v3509
  %v3511 = vpop.xlane.xlu0 %3510
  %v3512 = vpack.c.bf16 %v3503, %v3503
  %v3513 = vpack.c.bf16 %v3505, %v3505
  %3514 = vrot.lane.b32.xlu0 %v1394, 80
  %v3515 = vpop.permute.xlu0 %3514
  %3516 = vrot.lane.b32.xlu0 %v1395, 80
  %v3517 = vpop.permute.xlu0 %3516
  %3518 = vrot.lane.b32.xlu0 %v1396, 80
  %v3519 = vpop.permute.xlu0 %3518
  %3520 = vrot.lane.b32.xlu0 %v1397, 80
  %v3521 = vpop.permute.xlu0 %3520
  %v3527 = vsel %vm1357, %v3512, 0
  %3529 = vmatpush.bf16.msra.mxu0 0
  %3530 = vmatpush.bf16.msra.mxu0 0
  %3531 = vmatpush.bf16.msra.mxu0 0
  %3532 = vmatpush.bf16.msra.mxu0 0
  %3533 = vmatpush.bf16.msra.mxu0 %v3521
  %3534 = vmatpush.bf16.msra.mxu0 %v3519
  %3535 = vmatpush.bf16.msra.mxu0 %v3517
  %3536 = vmatpush.bf16.msra.mxu0 %v3515
  %3537 = vmatmul.bf16.gmra.mxu0 %v3527
  %v3538 = vpop.f32.mrf.mxu0
  %v3539 = vadd.f32 0.0, %v3538
  %v3540 = vpop.f32.mrf.mxu0
  %3541 = vdwg.mxu0
  %3542 = vrot.lane.b32.xlu0 %v1434, 80
  %v3543 = vpop.permute.xlu0 %3542
  %3544 = vrot.lane.b32.xlu0 %v1435, 80
  %v3545 = vpop.permute.xlu0 %3544
  %3546 = vrot.lane.b32.xlu0 %v1436, 80
  %v3547 = vpop.permute.xlu0 %3546
  %3548 = vrot.lane.b32.xlu0 %v1437, 80
  %v3549 = vpop.permute.xlu0 %3548
  %v3555 = vsel %vm1357, %v3513, 0
  %3557 = vmatpush.bf16.msra.mxu0 0
  %3558 = vmatpush.bf16.msra.mxu0 0
  %3559 = vmatpush.bf16.msra.mxu0 0
  %3560 = vmatpush.bf16.msra.mxu0 0
  %3561 = vmatpush.bf16.msra.mxu0 %v3549
  %3562 = vmatpush.bf16.msra.mxu0 %v3547
  %3563 = vmatpush.bf16.msra.mxu0 %v3545
  %3564 = vmatpush.bf16.msra.mxu0 %v3543
  %3565 = vmatmul.bf16.gmra.mxu0 %v3555
  %v3566 = vpop.f32.mrf.mxu0
  %v3567 = vadd.f32 0.0, %v3566
  %v3568 = vpop.f32.mrf.mxu0
  %3569 = vdwg.mxu0
  %v3570 = vrcp.pop %v3508
  %v3571 = vrcp.pop %v3511
  %v3572 = vmul.f32 %v3539, %v3570
  %v3573 = vmul.f32 %v3567, %v3571
  %v3574 = vpack.c.bf16 %v3572, %v3572
  %v3575 = vpack.c.bf16 %v3573, %v3573
  %v3578 = vunpack.c.l.b16 %v3574
  %v3579 = vunpack.c.l.b16 %v3575
  %v3580 = vpack.c.b16 %v3579, %v3578
  %v3582 = vsel %vm576, %v3580, 0
  %v3585 = vsel %vm643, %v3046, 0
  %3587 = vmatpush.bf16.msra.mxu0 0
  %3588 = vmatpush.bf16.msra.mxu0 0
  %3589 = vmatpush.bf16.msra.mxu0 0
  %3590 = vmatpush.bf16.msra.mxu0 0
  %3591 = vmatpush.bf16.msra.mxu0 0
  %3592 = vmatpush.bf16.msra.mxu0 0
  %3593 = vmatpush.bf16.msra.mxu0 0
  %3594 = vmatpush.bf16.msra.mxu0 %v3585
  %3595 = vmatmul.bf16.gmra.mxu0 %v3582
  %v3596 = vpop.f32.mrf.mxu0
  %v3597 = vadd.f32 0.0, %v3596
  %v3598 = vpop.f32.mrf.mxu0
  %v3599 = vadd.f32 0.0, %v3598
  %3600 = vdwg.mxu0
  %v3601 = vadd.f32 %v3414, %v3597
  %v3602 = vadd.f32 %v3416, %v3599
  %3603 = vrot.lane.b32.xlu0 %v3206, 104
  %v3604 = vpop.permute.xlu0 %3603
  %3605 = vrot.lane.b32.xlu0 %v1277, 72
  %v3606 = vpop.permute.xlu0 %3605
  %3607 = vrot.lane.b32.xlu0 %v1278, 72
  %v3608 = vpop.permute.xlu0 %3607
  %3609 = vrot.lane.b32.xlu0 %v1279, 72
  %v3610 = vpop.permute.xlu0 %3609
  %3611 = vrot.lane.b32.xlu0 %v1280, 72
  %v3612 = vpop.permute.xlu0 %3611
  %v3614 = vsel %vm576, %v3604, 0
  %v3617 = vsel %vm576, %v3606, 0
  %v3620 = vsel %vm576, %v3608, 0
  %v3623 = vsel %vm576, %v3610, 0
  %v3626 = vsel %vm576, %v3612, 0
  %3628 = vmatpush.bf16.xpose.msra.mxu0 0
  %3629 = vmatpush.bf16.xpose.msra.mxu0 0
  %3630 = vmatpush.bf16.xpose.msra.mxu0 0
  %3631 = vmatpush.bf16.xpose.msra.mxu0 0
  %3632 = vmatpush.bf16.xpose.msra.mxu0 %v3626
  %3633 = vmatpush.bf16.xpose.msra.mxu0 %v3623
  %3634 = vmatpush.bf16.xpose.msra.mxu0 %v3620
  %3635 = vmatpush.bf16.xpose.msra.mxu0 %v3617
  %3636 = vmatmul.bf16.gmra.mxu0 %v3614
  %v3637 = vpop.f32.mrf.mxu0
  %v3638 = vadd.f32 %v1257, %v3637
  %v3639 = vpop.f32.mrf.mxu0
  %3640 = vdwg.mxu0
  %3641 = vrot.lane.b32.xlu0 %v3247, 104
  %v3642 = vpop.permute.xlu0 %3641
  %3643 = vrot.lane.b32.xlu0 %v1325, 72
  %v3644 = vpop.permute.xlu0 %3643
  %3645 = vrot.lane.b32.xlu0 %v1326, 72
  %v3646 = vpop.permute.xlu0 %3645
  %3647 = vrot.lane.b32.xlu0 %v1327, 72
  %v3648 = vpop.permute.xlu0 %3647
  %3649 = vrot.lane.b32.xlu0 %v1328, 72
  %v3650 = vpop.permute.xlu0 %3649
  %v3652 = vsel %vm576, %v3642, 0
  %v3655 = vsel %vm576, %v3644, 0
  %v3658 = vsel %vm576, %v3646, 0
  %v3661 = vsel %vm576, %v3648, 0
  %v3664 = vsel %vm576, %v3650, 0
  %3666 = vmatpush.bf16.xpose.msra.mxu0 0
  %3667 = vmatpush.bf16.xpose.msra.mxu0 0
  %3668 = vmatpush.bf16.xpose.msra.mxu0 0
  %3669 = vmatpush.bf16.xpose.msra.mxu0 0
  %3670 = vmatpush.bf16.xpose.msra.mxu0 %v3664
  %3671 = vmatpush.bf16.xpose.msra.mxu0 %v3661
  %3672 = vmatpush.bf16.xpose.msra.mxu0 %v3658
  %3673 = vmatpush.bf16.xpose.msra.mxu0 %v3655
  %3674 = vmatmul.bf16.gmra.mxu0 %v3652
  %v3675 = vpop.f32.mrf.mxu0
  %v3676 = vadd.f32 %v1258, %v3675
  %v3677 = vpop.f32.mrf.mxu0
  %3678 = vdwg.mxu0
  %v3679 = vsel %vm1357, %v3638, -inf
  %3680 = vmax.xlane.f32.xlu0 %v3679
  %v3681 = vpop.xlane.xlu0 %3680
  %v3682 = vsel %vm1357, %v3676, -inf
  %3683 = vmax.xlane.f32.xlu0 %v3682
  %v3684 = vpop.xlane.xlu0 %3683
  %v3685 = vsub.f32 %v3638, %v3681
  %v3686 = vsub.f32 %v3676, %v3684
  %v3687 = vmul.f32 %v3685, 1.442695
  %v3688 = vpow.pop %v3687
  %v3689 = vmul.f32 %v3686, 1.442695
  %v3690 = vpow.pop %v3689
  %v3691 = vsel %vm1357, %v3688, 0.0
  %3692 = vadd.xlane.f32.xlu0 %v3691
  %v3693 = vpop.xlane.xlu0 %3692
  %v3694 = vsel %vm1357, %v3690, 0.0
  %3695 = vadd.xlane.f32.xlu0 %v3694
  %v3696 = vpop.xlane.xlu0 %3695
  %v3697 = vpack.c.bf16 %v3688, %v3688
  %v3698 = vpack.c.bf16 %v3690, %v3690
  %3699 = vrot.lane.b32.xlu0 %v1394, 72
  %v3700 = vpop.permute.xlu0 %3699
  %3701 = vrot.lane.b32.xlu0 %v1395, 72
  %v3702 = vpop.permute.xlu0 %3701
  %3703 = vrot.lane.b32.xlu0 %v1396, 72
  %v3704 = vpop.permute.xlu0 %3703
  %3705 = vrot.lane.b32.xlu0 %v1397, 72
  %v3706 = vpop.permute.xlu0 %3705
  %v3712 = vsel %vm1357, %v3697, 0
  %3714 = vmatpush.bf16.msra.mxu0 0
  %3715 = vmatpush.bf16.msra.mxu0 0
  %3716 = vmatpush.bf16.msra.mxu0 0
  %3717 = vmatpush.bf16.msra.mxu0 0
  %3718 = vmatpush.bf16.msra.mxu0 %v3706
  %3719 = vmatpush.bf16.msra.mxu0 %v3704
  %3720 = vmatpush.bf16.msra.mxu0 %v3702
  %3721 = vmatpush.bf16.msra.mxu0 %v3700
  %3722 = vmatmul.bf16.gmra.mxu0 %v3712
  %v3723 = vpop.f32.mrf.mxu0
  %v3724 = vadd.f32 0.0, %v3723
  %v3725 = vpop.f32.mrf.mxu0
  %3726 = vdwg.mxu0
  %3727 = vrot.lane.b32.xlu0 %v1434, 72
  %v3728 = vpop.permute.xlu0 %3727
  %3729 = vrot.lane.b32.xlu0 %v1435, 72
  %v3730 = vpop.permute.xlu0 %3729
  %3731 = vrot.lane.b32.xlu0 %v1436, 72
  %v3732 = vpop.permute.xlu0 %3731
  %3733 = vrot.lane.b32.xlu0 %v1437, 72
  %v3734 = vpop.permute.xlu0 %3733
  %v3740 = vsel %vm1357, %v3698, 0
  %3742 = vmatpush.bf16.msra.mxu0 0
  %3743 = vmatpush.bf16.msra.mxu0 0
  %3744 = vmatpush.bf16.msra.mxu0 0
  %3745 = vmatpush.bf16.msra.mxu0 0
  %3746 = vmatpush.bf16.msra.mxu0 %v3734
  %3747 = vmatpush.bf16.msra.mxu0 %v3732
  %3748 = vmatpush.bf16.msra.mxu0 %v3730
  %3749 = vmatpush.bf16.msra.mxu0 %v3728
  %3750 = vmatmul.bf16.gmra.mxu0 %v3740
  %v3751 = vpop.f32.mrf.mxu0
  %v3752 = vadd.f32 0.0, %v3751
  %v3753 = vpop.f32.mrf.mxu0
  %3754 = vdwg.mxu0
  %v3755 = vrcp.pop %v3693
  %v3756 = vrcp.pop %v3696
  %v3757 = vmul.f32 %v3724, %v3755
  %v3758 = vmul.f32 %v3752, %v3756
  %v3759 = vpack.c.bf16 %v3757, %v3757
  %v3760 = vpack.c.bf16 %v3758, %v3758
  %v3763 = vunpack.c.l.b16 %v3759
  %v3764 = vunpack.c.l.b16 %v3760
  %v3765 = vpack.c.b16 %v3764, %v3763
  %v3767 = vsel %vm576, %v3765, 0
  %v3770 = vsel %vm643, %v3047, 0
  %3772 = vmatpush.bf16.msra.mxu0 0
  %3773 = vmatpush.bf16.msra.mxu0 0
  %3774 = vmatpush.bf16.msra.mxu0 0
  %3775 = vmatpush.bf16.msra.mxu0 0
  %3776 = vmatpush.bf16.msra.mxu0 0
  %3777 = vmatpush.bf16.msra.mxu0 0
  %3778 = vmatpush.bf16.msra.mxu0 0
  %3779 = vmatpush.bf16.msra.mxu0 %v3770
  %3780 = vmatmul.bf16.gmra.mxu0 %v3767
  %v3781 = vpop.f32.mrf.mxu0
  %v3782 = vadd.f32 0.0, %v3781
  %v3783 = vpop.f32.mrf.mxu0
  %v3784 = vadd.f32 0.0, %v3783
  %3785 = vdwg.mxu0
  %v3786 = vadd.f32 %v3601, %v3782
  %v3787 = vadd.f32 %v3602, %v3784
  %v3789 = vperm.slane %v3049, 0
  %v3791 = vadd.f32 %v3786, %v3789
  %v3792 = vadd.f32 %v3787, %v3789
  %s3793 = scalar_lea.vmem %s24, 2
  %v3794 = vld [vmem:[%s3793] sm:$0x3]
  %v3795 = vadd.f32 %v2991, %v3791
  %v3796 = vadd.f32 %v2992, %v3792
  %v3797 = vsel %vm233, %v3795, 0.0
  %3798 = vadd.xlane.f32.xlu0 %v3797
  %v3799 = vpop.xlane.xlu0 %3798
  %v3800 = vsel %vm233, %v3796, 0.0
  %3801 = vadd.xlane.f32.xlu0 %v3800
  %v3802 = vpop.xlane.xlu0 %3801
  %v3803 = vmul.f32 %v3799, %v1157
  %v3804 = vmul.f32 %v3802, %v1157
  %v3805 = vsub.f32 %v3795, %v3803
  %v3806 = vsub.f32 %v3796, %v3804
  %v3807 = vmul.f32 %v3805, %v3805
  %v3808 = vmul.f32 %v3806, %v3806
  %v3809 = vsel %vm233, %v3807, 0.0
  %3810 = vadd.xlane.f32.xlu0 %v3809
  %v3811 = vpop.xlane.xlu0 %3810
  %v3812 = vsel %vm233, %v3808, 0.0
  %3813 = vadd.xlane.f32.xlu0 %v3812
  %v3814 = vpop.xlane.xlu0 %3813
  %v3815 = vmul.f32 %v3811, %v1157
  %v3816 = vmul.f32 %v3814, %v1157
  %v3817 = vadd.f32 %v3815, 1e-05
  %v3818 = vadd.f32 %v3816, 1e-05
  %v3819 = vrsqrt.pop %v3817
  %v3820 = vmul.f32 %v3819, %v3817
  %v3821 = vmul.f32 %v3820, %v3819
  %v3822 = vmul.f32 0.5, %v3821
  %v3823 = vsub.f32 1.5, %v3822
  %v3824 = vmul.f32 %v3819, %v3823
  %vm3825 = vweird.f32 %v3817
  %vm3826 = vweird.f32 %v3819
  %vm3827 = vmor %vm3825, %vm3826
  %v3828 = vsel %vm3827, %v3819, %v3824
  %v3829 = vrsqrt.pop %v3818
  %v3830 = vmul.f32 %v3829, %v3818
  %v3831 = vmul.f32 %v3830, %v3829
  %v3832 = vmul.f32 0.5, %v3831
  %v3833 = vsub.f32 1.5, %v3832
  %v3834 = vmul.f32 %v3829, %v3833
  %vm3835 = vweird.f32 %v3818
  %vm3836 = vweird.f32 %v3829
  %vm3837 = vmor %vm3835, %vm3836
  %v3838 = vsel %vm3837, %v3829, %v3834
  %v3839 = vmul.f32 %v3805, %v3828
  %v3840 = vmul.f32 %v3806, %v3838
  %v3841 = vperm.slane %v3794, 0
  %v3842 = vmul.f32 %v3839, %v3841
  %v3843 = vmul.f32 %v3840, %v3841
  %v3844 = vperm.slane %v3794, 1
  %v3845 = vadd.f32 %v3842, %v3844
  %v3846 = vadd.f32 %v3843, %v3844
  %v3847 = vpack.c.bf16 %v3845, %v3845
  %v3848 = vpack.c.bf16 %v3846, %v3846
  %s3849 = scalar_lea.vmem %s19, 16
  %v3850 = vld [vmem:[%s3849] sm:$0xf]
  %v3851 = vld [vmem:[%s3849 + $0x4] sm:$0xf]
  %v3852 = vld [vmem:[%s3849 + $0x8] sm:$0xf]
  %v3853 = vld [vmem:[%s3849 + $0xc] sm:$0xf]
  %s3854 = scalar_lea.vmem %s20, 1
  %v3855 = vld [vmem:[%s3854] sm:$0x1]
  %v3857 = vperm.slane %v3855, 0
  %v3861 = vunpack.c.l.b16 %v3847
  %v3862 = vunpack.c.l.b16 %v3848
  %v3863 = vpack.c.b16 %v3862, %v3861
  %v3868 = vunpack.c.l.b16 %v3850
  %v3869 = vunpack.c.l.b16 %v3851
  %v3870 = vunpack.c.l.b16 %v3852
  %v3871 = vunpack.c.l.b16 %v3853
  %v3872 = vpack.c.b16 %v3869, %v3868
  %v3873 = vpack.c.b16 %v3871, %v3870
  %v3877 = vsel %vm233, %v3863, 0
  %3879 = vmatpush.bf16.msra.mxu0 0
  %3880 = vmatpush.bf16.msra.mxu0 0
  %3881 = vmatpush.bf16.msra.mxu0 0
  %3882 = vmatpush.bf16.msra.mxu0 0
  %3883 = vmatpush.bf16.msra.mxu0 0
  %3884 = vmatpush.bf16.msra.mxu0 0
  %3885 = vmatpush.bf16.msra.mxu0 %v3873
  %3886 = vmatpush.bf16.msra.mxu0 %v3872
  %3887 = vmatmul.bf16.gmra.mxu0 %v3877
  %v3888 = vpop.f32.mrf.mxu0
  %v3889 = vadd.f32 %v3857, %v3888
  %v3890 = vpop.f32.mrf.mxu0
  %v3891 = vadd.f32 %v3857, %v3890
  %3892 = vdwg.mxu0
  %v3893 = vmax.f32 %v3889, 0.0
  %v3894 = vmax.f32 %v3891, 0.0
  %v3895 = vpack.c.bf16 %v3893, %v3893
  %v3896 = vpack.c.bf16 %v3894, %v3894
  %s3897 = scalar_lea.vmem %s21, 32
  %v3898 = vld [vmem:[%s3897] sm:$0xf]
  %v3899 = vld [vmem:[%s3897 + $0x4] sm:$0xf]
  %v3900 = vld [vmem:[%s3897 + $0x8] sm:$0xf]
  %v3901 = vld [vmem:[%s3897 + $0xc] sm:$0xf]
  %v3902 = vld [vmem:[%s3897 + $0x10] sm:$0xf]
  %v3903 = vld [vmem:[%s3897 + $0x14] sm:$0xf]
  %v3904 = vld [vmem:[%s3897 + $0x18] sm:$0xf]
  %v3905 = vld [vmem:[%s3897 + $0x1c] sm:$0xf]
  %s3906 = scalar_lea.vmem %s22, 1
  %v3907 = vld [vmem:[%s3906] sm:$0x1]
  %v3909 = vperm.slane %v3907, 0
  %v3913 = vunpack.c.l.b16 %v3895
  %v3914 = vunpack.c.l.b16 %v3896
  %v3915 = vpack.c.b16 %v3914, %v3913
  %v3924 = vunpack.c.l.b16 %v3898
  %v3925 = vunpack.c.l.b16 %v3899
  %v3926 = vunpack.c.l.b16 %v3900
  %v3927 = vunpack.c.l.b16 %v3901
  %v3928 = vunpack.c.l.b16 %v3902
  %v3929 = vunpack.c.l.b16 %v3903
  %v3930 = vunpack.c.l.b16 %v3904
  %v3931 = vunpack.c.l.b16 %v3905
  %v3932 = vpack.c.b16 %v3925, %v3924
  %v3933 = vpack.c.b16 %v3927, %v3926
  %v3934 = vpack.c.b16 %v3929, %v3928
  %v3935 = vpack.c.b16 %v3931, %v3930
  %v3941 = vsel %vm1357, %v3915, 0
  %3943 = vmatpush.bf16.msra.mxu0 0
  %3944 = vmatpush.bf16.msra.mxu0 0
  %3945 = vmatpush.bf16.msra.mxu0 0
  %3946 = vmatpush.bf16.msra.mxu0 0
  %3947 = vmatpush.bf16.msra.mxu0 %v3935
  %3948 = vmatpush.bf16.msra.mxu0 %v3934
  %3949 = vmatpush.bf16.msra.mxu0 %v3933
  %3950 = vmatpush.bf16.msra.mxu0 %v3932
  %3951 = vmatmul.bf16.gmra.mxu0 %v3941
  %v3952 = vpop.f32.mrf.mxu0
  %v3953 = vadd.f32 %v3909, %v3952
  %v3954 = vpop.f32.mrf.mxu0
  %v3955 = vadd.f32 %v3909, %v3954
  %3956 = vdwg.mxu0
  %s3957 = scalar_lea.vmem %s25, 2
  %v3958 = vld [vmem:[%s3957] sm:$0x3]
  %v3959 = vadd.f32 %v3845, %v3953
  %v3960 = vadd.f32 %v3846, %v3955
  %v3961 = vsel %vm233, %v3959, 0.0
  %3962 = vadd.xlane.f32.xlu0 %v3961
  %v3963 = vpop.xlane.xlu0 %3962
  %v3964 = vsel %vm233, %v3960, 0.0
  %3965 = vadd.xlane.f32.xlu0 %v3964
  %v3966 = vpop.xlane.xlu0 %3965
  %v3967 = vmul.f32 %v3963, %v1157
  %v3968 = vmul.f32 %v3966, %v1157
  %v3969 = vsub.f32 %v3959, %v3967
  %v3970 = vsub.f32 %v3960, %v3968
  %v3971 = vmul.f32 %v3969, %v3969
  %v3972 = vmul.f32 %v3970, %v3970
  %v3973 = vsel %vm233, %v3971, 0.0
  %3974 = vadd.xlane.f32.xlu0 %v3973
  %v3975 = vpop.xlane.xlu0 %3974
  %v3976 = vsel %vm233, %v3972, 0.0
  %3977 = vadd.xlane.f32.xlu0 %v3976
  %v3978 = vpop.xlane.xlu0 %3977
  %v3979 = vmul.f32 %v3975, %v1157
  %v3980 = vmul.f32 %v3978, %v1157
  %v3981 = vadd.f32 %v3979, 1e-05
  %v3982 = vadd.f32 %v3980, 1e-05
  %v3983 = vrsqrt.pop %v3981
  %v3984 = vmul.f32 %v3983, %v3981
  %v3985 = vmul.f32 %v3984, %v3983
  %v3986 = vmul.f32 0.5, %v3985
  %v3987 = vsub.f32 1.5, %v3986
  %v3988 = vmul.f32 %v3983, %v3987
  %vm3989 = vweird.f32 %v3981
  %vm3990 = vweird.f32 %v3983
  %vm3991 = vmor %vm3989, %vm3990
  %v3992 = vsel %vm3991, %v3983, %v3988
  %v3993 = vrsqrt.pop %v3982
  %v3994 = vmul.f32 %v3993, %v3982
  %v3995 = vmul.f32 %v3994, %v3993
  %v3996 = vmul.f32 0.5, %v3995
  %v3997 = vsub.f32 1.5, %v3996
  %v3998 = vmul.f32 %v3993, %v3997
  %vm3999 = vweird.f32 %v3982
  %vm4000 = vweird.f32 %v3993
  %vm4001 = vmor %vm3999, %vm4000
  %v4002 = vsel %vm4001, %v3993, %v3998
  %v4003 = vmul.f32 %v3969, %v3992
  %v4004 = vmul.f32 %v3970, %v4002
  %v4005 = vperm.slane %v3958, 0
  %v4006 = vmul.f32 %v4003, %v4005
  %v4007 = vmul.f32 %v4004, %v4005
  %v4008 = vperm.slane %v3958, 1
  %v4009 = vadd.f32 %v4006, %v4008
  %v4010 = vadd.f32 %v4007, %v4008
  %v4011 = vld [vmem:[%s26] sm:$0x3]
  %v4012 = vsel %vm233, %v4009, 0.0
  %4013 = vadd.xlane.f32.xlu0 %v4012
  %v4014 = vpop.xlane.xlu0 %4013
  %v4015 = vsel %vm233, %v4010, 0.0
  %4016 = vadd.xlane.f32.xlu0 %v4015
  %v4017 = vpop.xlane.xlu0 %4016
  %v4018 = vmul.f32 %v4014, %v1157
  %v4019 = vmul.f32 %v4017, %v1157
  %v4020 = vsub.f32 %v4009, %v4018
  %v4021 = vsub.f32 %v4010, %v4019
  %v4022 = vmul.f32 %v4020, %v4020
  %v4023 = vmul.f32 %v4021, %v4021
  %v4024 = vsel %vm233, %v4022, 0.0
  %4025 = vadd.xlane.f32.xlu0 %v4024
  %v4026 = vpop.xlane.xlu0 %4025
  %v4027 = vsel %vm233, %v4023, 0.0
  %4028 = vadd.xlane.f32.xlu0 %v4027
  %v4029 = vpop.xlane.xlu0 %4028
  %v4030 = vmul.f32 %v4026, %v1157
  %v4031 = vmul.f32 %v4029, %v1157
  %v4032 = vadd.f32 %v4030, 1e-05
  %v4033 = vadd.f32 %v4031, 1e-05
  %v4034 = vrsqrt.pop %v4032
  %v4035 = vmul.f32 %v4034, %v4032
  %v4036 = vmul.f32 %v4035, %v4034
  %v4037 = vmul.f32 0.5, %v4036
  %v4038 = vsub.f32 1.5, %v4037
  %v4039 = vmul.f32 %v4034, %v4038
  %vm4040 = vweird.f32 %v4032
  %vm4041 = vweird.f32 %v4034
  %vm4042 = vmor %vm4040, %vm4041
  %v4043 = vsel %vm4042, %v4034, %v4039
  %v4044 = vrsqrt.pop %v4033
  %v4045 = vmul.f32 %v4044, %v4033
  %v4046 = vmul.f32 %v4045, %v4044
  %v4047 = vmul.f32 0.5, %v4046
  %v4048 = vsub.f32 1.5, %v4047
  %v4049 = vmul.f32 %v4044, %v4048
  %vm4050 = vweird.f32 %v4033
  %vm4051 = vweird.f32 %v4044
  %vm4052 = vmor %vm4050, %vm4051
  %v4053 = vsel %vm4052, %v4044, %v4049
  %v4054 = vmul.f32 %v4020, %v4043
  %v4055 = vmul.f32 %v4021, %v4053
  %v4056 = vperm.slane %v4011, 0
  %v4057 = vmul.f32 %v4054, %v4056
  %v4058 = vmul.f32 %v4055, %v4056
  %v4059 = vperm.slane %v4011, 1
  %v4060 = vadd.f32 %v4057, %v4059
  %v4061 = vadd.f32 %v4058, %v4059
  %4062 = vst.msk [vmem:[%s27] sm:$0xff] %vm233, %v4060
  %4063 = vst.msk [vmem:[%s27 + $0x8] sm:$0xff] %vm233, %v4061
  // Predicated region
  $region110: #{transformer_decoder_forward.1} parent=0 // pred_check
    _
  $region111: #{transformer_decoder_forward.1} parent=0 // pred_check_branch
    %4065 = sbr.rel (0) target = $region113
  $region112: #{transformer_decoder_forward.1} parent=0 // pred_region
    _
  $region113: #{transformer_decoder_forward.1} parent=0 // pred_fallthru
    _
  // Predicated region
  $region114: #{transformer_decoder_forward.1} parent=0 // pred_check
    _
  $region115: #{transformer_decoder_forward.1} parent=0 // pred_check_branch
    %4067 = sbr.rel (0) target = $region117
  $region116: #{transformer_decoder_forward.1} parent=0 // pred_region
    _
  $region117: #{transformer_decoder_forward.1} parent=0 // pred_fallthru
    _

</llo_original>
